<compile_context>
chip_gen: v7x
topology: tpu7x:2x2x1
jax: 0.10.0
libtpu: 0.0.40
codegen_flags: <defaults>
</compile_context>

<pallas_src>
import functools

import jax
import jax.numpy as jnp
from jax.experimental import pallas as pl
from jax.experimental.pallas import tpu as pltpu


def _round_up(x, m):
    return (x + m - 1) // m * m


def _pad_gate_cols(w, H, Hp):
    """Pad the last (4H) axis gate-wise to 4*Hp, preserving torch gate order (i,f,g,o)."""
    pads = [(0, 0)] * (w.ndim - 1)
    return jnp.concatenate(
        [jnp.pad(w[..., g * H:(g + 1) * H], pads + [(0, Hp - H)]) for g in range(4)],
        axis=-1)


def _choose_t_chunk(T, BB, Ep, Hp, Op):
    """Pick a time-chunk size so chunk-scoped buffers stay ~<= 12 MiB (v7x-safe)."""
    per_t = BB * (4 * Hp * 4        # gx_sc (f32)
                  + Hp * 4          # hs_sc (f32)
                  + 2 * Ep * 2      # x block, double-buffered bf16
                  + 2 * Op * 4)     # out block, double-buffered f32
    budget = 12 * 1024 * 1024
    return int(max(1, min(T, 64, budget // per_t)))


def _vmem_limit_bytes(TC, BB, Ep, Hp, Op):
    x_b = 2 * TC * BB * Ep * 2
    out_b = 2 * TC * BB * Op * 4
    w_b = 2 * (Ep * 4 * Hp * 2 + Hp * 4 * Hp * 2 + 4 * Hp * 4 + Hp * Op * 2 + Op * 4)
    scr = TC * BB * 4 * Hp * 4 + (TC + 1) * BB * Hp * 4 + BB * Hp * 4
    est = x_b + out_b + w_b + scr
    return int(min(64 * 1024 * 1024, max(est + (4 << 20), 16 << 20)))


def _rnn_chunk_kernel(x_ref, wih_ref, whh_ref, b_ref, wp_ref, bp_ref,
                      o_ref, gx_sc, hs_sc, c_sc,
                      *, t_chunk, bb, hidden_pad, unroll):
    """One (batch-block, time-chunk) grid step.

    x_ref : (TC*BB, Ep)  bf16, time-major within the chunk ([t, b] flattened)
    o_ref : (TC*BB, Op)  f32 projected outputs
    gx_sc : (TC*BB, 4Hp) f32 precomputed input-to-hidden gates
    hs_sc : ((TC+1)*BB, Hp) f32; rows [0,BB) = h carry-in, rows [(t+1)*BB,...) = h_t
    c_sc  : (BB, Hp) f32 cell-state carry
    """
    TC, BB, Hp = t_chunk, bb, hidden_pad

    # Reset the recurrent carry at the start of each batch block's time sweep
    # (cache=None -> zero initial state).
    @pl.when(pl.program_id(1) == 0)
    def _():
        hs_sc[pl.ds(0, BB), :] = jnp.zeros((BB, Hp), jnp.float32)
        c_sc[...] = jnp.zeros_like(c_sc)

    # ---- phase 1: all input-to-hidden gates of the chunk (bf16 MXU, f32 acc) ----
    gx_sc[...] = (jnp.dot(x_ref[...], wih_ref[...],
                          preferred_element_type=jnp.float32)
                  + b_ref[...])

    # ---- phase 2: serial recurrence; per-gate tiling + bounded unroll ----------
    def step(t, carry):
        row = pl.multiple_of(t * BB, BB)
        row_next = pl.multiple_of((t + 1) * BB, BB)
        h_prev = hs_sc[pl.ds(row, BB), :].astype(jnp.bfloat16)

        def gate(g):
            return (gx_sc[pl.ds(row, BB), pl.ds(g * Hp, Hp)]
                    + jnp.dot(h_prev, whh_ref[:, pl.ds(g * Hp, Hp)],
                              preferred_element_type=jnp.float32))

        i_g = jax.nn.sigmoid(gate(0))
        f_g = jax.nn.sigmoid(gate(1))
        g_g = jnp.tanh(gate(2))
        o_g = jax.nn.sigmoid(gate(3))
        c_new = f_g * c_sc[...] + i_g * g_g
        c_sc[...] = c_new
        hs_sc[pl.ds(row_next, BB), :] = o_g * jnp.tanh(c_new)
        return carry

    jax.lax.fori_loop(0, TC, step, 0, unroll=unroll)

    # carry the chunk's last hidden state into slot 0 for the next time chunk
    hs_sc[pl.ds(0, BB), :] = hs_sc[pl.ds(TC * BB, BB), :]

    # ---- phase 3: one lane-dense projection matmul + store ---------------------
    hs = hs_sc[pl.ds(BB, TC * BB), :].astype(jnp.bfloat16)
    out = jnp.dot(hs, wp_ref[...], preferred_element_type=jnp.float32) + bp_ref[...]
    o_ref[...] = out.astype(o_ref.dtype)


def rnn_predictor_forward(x_ids, params, *, t_chunk=None):
    """Forward pass of RNNPredictor (cache=None path).

    Args:
        x_ids:  int32 [B, T] token ids
        params: dict of weights (see init_params)
        t_chunk: optional time-chunk override (else chosen from a VMEM budget)
    Returns:
        output: f32 [B, T, O]
    """
    embed_tbl = params["embed"]          # [V, E]
    w_ih = params["w_ih"]                # [E, 4H]
    w_hh = params["w_hh"]                # [H, 4H]
    b = params["b"]                      # [1, 4H] (b_ih + b_hh folded)
    w_proj = params["w_proj"]            # [H, O]
    b_proj = params["b_proj"]            # [1, O]

    B, T = x_ids.shape
    E = embed_tbl.shape[1]
    H = w_hh.shape[0]
    O = w_proj.shape[1]

    # ---- tile-friendly padded sizes ----------------------------------------
    if B <= 8:
        Bp, BB = 8, 8                    # single batch block
    else:
        Bp = _round_up(B, 32)            # two batch blocks, bf16-sublane friendly
        BB = Bp // 2
    nb = Bp // BB
    Ep = _round_up(E, 128)
    Hp = _round_up(H, 128)
    Op = _round_up(O, 128)

    TC = int(t_chunk) if t_chunk is not None else _choose_t_chunk(T, BB, Ep, Hp, Op)
    Tp = _round_up(T, TC)
    nt = Tp // TC
    unroll = max(1, min(TC, 8))

    # ---- weight padding / dtype (zeros are numerically exact) ---------------
    w_ih_p = _pad_gate_cols(jnp.pad(w_ih, ((0, Ep - E), (0, 0))), H, Hp).astype(jnp.bfloat16)
    w_hh_p = _pad_gate_cols(jnp.pad(w_hh, ((0, Hp - H), (0, 0))), H, Hp).astype(jnp.bfloat16)
    b_p = _pad_gate_cols(b, H, Hp).astype(jnp.float32)                       # [1, 4Hp]
    w_proj_p = jnp.pad(w_proj, ((0, Hp - H), (0, Op - O))).astype(jnp.bfloat16)
    b_proj_p = jnp.pad(b_proj, ((0, 0), (0, Op - O))).astype(jnp.float32)    # [1, Op]

    # ---- embedding gather + dropout(p=0) identity + layout glue (XLA) -------
    embed = jnp.take(embed_tbl, x_ids, axis=0)                 # [B, T, E]
    x_tm = jnp.transpose(embed, (1, 0, 2))                     # [T, B, E] time-major
    x_tm = jnp.pad(x_tm, ((0, Tp - T), (0, Bp - B), (0, Ep - E)))
    # batch blocks outermost; (time, within-block batch) flattened per block
    x_blk = (x_tm.reshape(Tp, nb, BB, Ep)
                  .transpose(1, 0, 2, 3)
                  .reshape(nb, Tp * BB, Ep)
                  .astype(jnp.bfloat16))                       # [nb, Tp*BB, Ep]

    kernel = functools.partial(_rnn_chunk_kernel,
                               t_chunk=TC, bb=BB, hidden_pad=Hp, unroll=unroll)

    grid_spec = pltpu.PrefetchScalarGridSpec(
        num_scalar_prefetch=0,
        grid=(nb, nt),
        in_specs=[
            # per-chunk activations (pipelined)
            pl.BlockSpec((None, TC * BB, Ep), lambda bi, ti: (bi, ti, 0)),
            # weights / biases: constant index maps -> stay VMEM-resident
            pl.BlockSpec((Ep, 4 * Hp), lambda bi, ti: (0, 0)),
            pl.BlockSpec((Hp, 4 * Hp), lambda bi, ti: (0, 0)),
            pl.BlockSpec((1, 4 * Hp), lambda bi, ti: (0, 0)),
            pl.BlockSpec((Hp, Op), lambda bi, ti: (0, 0)),
            pl.BlockSpec((1, Op), lambda bi, ti: (0, 0)),
        ],
        out_specs=pl.BlockSpec((None, TC * BB, Op), lambda bi, ti: (bi, ti, 0)),
        scratch_shapes=[
            pltpu.VMEM((TC * BB, 4 * Hp), jnp.float32),        # chunk input gates
            pltpu.VMEM(((TC + 1) * BB, Hp), jnp.float32),      # h carry + stacked h_t
            pltpu.VMEM((BB, Hp), jnp.float32),                 # c carry
        ],
    )

    out_blk = pl.pallas_call(
        kernel,
        out_shape=jax.ShapeDtypeStruct((nb, Tp * BB, Op), jnp.float32),
        grid_spec=grid_spec,
        compiler_params=pltpu.CompilerParams(
            dimension_semantics=("parallel", "arbitrary"),
            vmem_limit_bytes=_vmem_limit_bytes(TC, BB, Ep, Hp, Op)),
    )(x_blk, w_ih_p, w_hh_p, b_p, w_proj_p, b_proj_p)

    # ---- undo padding / layout ----------------------------------------------
    out = (out_blk.reshape(nb, Tp, BB, Op)
                  .transpose(1, 0, 2, 3)
                  .reshape(Tp, Bp, Op)[:T, :B, :O])            # [T, B, O]
    return jnp.transpose(out, (1, 0, 2))                       # [B, T, O]


def rnn_predictor_reference(x_ids, params):
    """Pure-JAX f32 reference (matches torch.nn.LSTM semantics, gate order i,f,g,o)."""
    embed = jnp.take(params["embed"], x_ids, axis=0)      # [B, T, E]
    B = embed.shape[0]
    H = params["w_hh"].shape[0]

    def step(carry, x_t):
        h, c = carry
        gates = x_t @ params["w_ih"] + h @ params["w_hh"] + params["b"][0]
        i = jax.nn.sigmoid(gates[:, 0 * H:1 * H])
        f = jax.nn.sigmoid(gates[:, 1 * H:2 * H])
        g = jnp.tanh(gates[:, 2 * H:3 * H])
        o = jax.nn.sigmoid(gates[:, 3 * H:4 * H])
        c = f * c + i * g
        h = o * jnp.tanh(c)
        return (h, c), h

    h0 = jnp.zeros((B, H), jnp.float32)
    c0 = jnp.zeros((B, H), jnp.float32)
    _, hs = jax.lax.scan(step, (h0, c0), jnp.transpose(embed, (1, 0, 2)))
    hs = jnp.transpose(hs, (1, 0, 2))                     # [B, T, H]
    return hs @ params["w_proj"] + params["b_proj"][0]


def init_params(key, vocab_size, embed_dim, hidden_dim, output_dim):
    ks = jax.random.split(key, 7)
    s = 0.1
    return {
        "embed":  s * jax.random.normal(ks[0], (vocab_size, embed_dim), jnp.float32),
        "w_ih":   s * jax.random.normal(ks[1], (embed_dim, 4 * hidden_dim), jnp.float32),
        "w_hh":   s * jax.random.normal(ks[2], (hidden_dim, 4 * hidden_dim), jnp.float32),
        # torch has b_ih + b_hh; fold into one bias row
        "b":      s * jax.random.normal(ks[3], (1, 4 * hidden_dim), jnp.float32),
        "w_proj": s * jax.random.normal(ks[4], (hidden_dim, output_dim), jnp.float32),
        "b_proj": s * jax.random.normal(ks[5], (1, output_dim), jnp.float32),
    }


if __name__ == "__main__":
    vocab_size, embed_dim, hidden_dim, output_dim = 50, 16, 32, 24

    key = jax.random.PRNGKey(0)
    k_param, k_ids1, k_ids2 = jax.random.split(key, 3)
    params = init_params(k_param, vocab_size, embed_dim, hidden_dim, output_dim)

    # ---- test 1: small demo shape (single batch block, single time chunk) ----
    batch, seq = 2, 8
    x_ids = jax.random.randint(k_ids1, (batch, seq), 0, vocab_size, dtype=jnp.int32)
    out = jax.block_until_ready(rnn_predictor_forward(x_ids, params))
    ref = jax.block_until_ready(rnn_predictor_reference(x_ids, params))
    assert out.shape == (batch, seq, output_dim)
    # bf16 MXU operands (f32 accumulation) -> relaxed tolerance vs f32 reference
    assert jnp.allclose(out, ref, atol=2e-2, rtol=2e-2), "mismatch vs JAX reference (test 1)"

    # ---- test 2: exercises multi-chunk time carry, batch blocks and T padding ----
    batch2, seq2 = 10, 7
    x_ids2 = jax.random.randint(k_ids2, (batch2, seq2), 0, vocab_size, dtype=jnp.int32)
    out2 = jax.block_until_ready(rnn_predictor_forward(x_ids2, params, t_chunk=4))
    ref2 = jax.block_until_ready(rnn_predictor_reference(x_ids2, params))
    assert out2.shape == (batch2, seq2, output_dim)
    assert jnp.allclose(out2, ref2, atol=2e-2, rtol=2e-2), "mismatch vs JAX reference (test 2)"

    print("KERNEL_OK")
</pallas_src>

<mosaic_0001>
module attributes {stable_mosaic.version = 11 : i64} {
  func.func @_rnn_chunk_kernel(%arg0: i32, %arg1: i32, %arg2: memref<1x64x128xbf16, #tpu.memory_space<vmem>>, %arg3: memref<128x512xbf16, #tpu.memory_space<vmem>>, %arg4: memref<128x512xbf16, #tpu.memory_space<vmem>>, %arg5: memref<1x512xf32, #tpu.memory_space<vmem>>, %arg6: memref<128x128xbf16, #tpu.memory_space<vmem>>, %arg7: memref<1x128xf32, #tpu.memory_space<vmem>>, %arg8: memref<1x64x128xf32, #tpu.memory_space<vmem>>, %arg9: memref<64x512xf32, #tpu.memory_space<vmem>>, %arg10: memref<72x128xf32, #tpu.memory_space<vmem>>, %arg11: memref<8x128xf32, #tpu.memory_space<vmem>>) attributes {dimension_semantics = [#tpu.dimension_semantics<parallel>, #tpu.dimension_semantics<arbitrary>], iteration_bounds = array<i64: 1, 1>, scalar_prefetch = 0 : i64, scratch_operands = 3 : i64, tpu.core_type = #tpu.core_type<tc>, window_params = [{transform_indices = @transform_0, window_bounds = array<i64: 1, 64, 128>}, {pipeline_mode = #tpu.pipeline_mode<synchronous>, transform_indices = @transform_1, window_bounds = array<i64: 128, 512>}, {pipeline_mode = #tpu.pipeline_mode<synchronous>, transform_indices = @transform_2, window_bounds = array<i64: 128, 512>}, {pipeline_mode = #tpu.pipeline_mode<synchronous>, transform_indices = @transform_3, window_bounds = array<i64: 1, 512>}, {pipeline_mode = #tpu.pipeline_mode<synchronous>, transform_indices = @transform_4, window_bounds = array<i64: 128, 128>}, {pipeline_mode = #tpu.pipeline_mode<synchronous>, transform_indices = @transform_5, window_bounds = array<i64: 1, 128>}, {transform_indices = @transform_6, window_bounds = array<i64: 1, 64, 128>}]} {
    %c0_i32 = arith.constant 0 : i32
    %0 = arith.cmpi eq, %arg1, %c0_i32 : i32
    %1 = arith.extui %0 : i1 to i32
    %c0_i32_0 = arith.constant 0 : i32
    %2 = arith.cmpi ne, %1, %c0_i32_0 : i32
    scf.if %2 {
      %cst_243 = arith.constant 0.000000e+00 : f32
      %447 = vector.broadcast %cst_243 : f32 to vector<8x128xf32>
      %c0_244 = arith.constant 0 : index
      %c0_245 = arith.constant 0 : index
      %448 = vector.load %arg10[%c0_244, %c0_245] : memref<72x128xf32, #tpu.memory_space<vmem>>, vector<8x128xf32>
      tpu.vector_store %arg10[%c0_244, %c0_245], %447 {strides = array<i32>} : memref<72x128xf32, #tpu.memory_space<vmem>>, vector<8x128xf32>,
      %cst_246 = arith.constant 0.000000e+00 : f32
      %449 = vector.broadcast %cst_246 : f32 to vector<8x128xf32>
      %c0_247 = arith.constant 0 : index
      %c0_248 = arith.constant 0 : index
      %450 = vector.load %arg11[%c0_247, %c0_248] : memref<8x128xf32, #tpu.memory_space<vmem>>, vector<8x128xf32>
      tpu.vector_store %arg11[%c0_247, %c0_248], %449 {strides = array<i32>} : memref<8x128xf32, #tpu.memory_space<vmem>>, vector<8x128xf32>,
    } else {
    }
    %c0 = arith.constant 0 : index
    %c0_1 = arith.constant 0 : index
    %c0_2 = arith.constant 0 : index
    %3 = vector.load %arg2[%c0, %c0_1, %c0_2] : memref<1x64x128xbf16, #tpu.memory_space<vmem>>, vector<1x64x128xbf16>
    %4 = vector.shape_cast %3 : vector<1x64x128xbf16> to vector<64x128xbf16>
    %c0_3 = arith.constant 0 : index
    %c0_4 = arith.constant 0 : index
    %5 = vector.load %arg3[%c0_3, %c0_4] : memref<128x512xbf16, #tpu.memory_space<vmem>>, vector<128x512xbf16>
    %cst = arith.constant dense<0.000000e+00> : vector<64x512xf32>
    %6 = tpu.matmul %4, %5, %cst {dimension_numbers = #tpu.dot_dimension_numbers<[1], [0], [0], [1], [0, 0, 1, 1], [], []>} : vector<64x128xbf16>, vector<128x512xbf16>, vector<64x512xf32> -> vector<64x512xf32>
    %c0_5 = arith.constant 0 : index
    %c0_6 = arith.constant 0 : index
    %7 = vector.load %arg5[%c0_5, %c0_6] : memref<1x512xf32, #tpu.memory_space<vmem>>, vector<1x512xf32>
    %8 = vector.broadcast %7 : vector<1x512xf32> to vector<64x512xf32>
    %9 = arith.addf %6, %8 : vector<64x512xf32>
    %c0_7 = arith.constant 0 : index
    %c0_8 = arith.constant 0 : index
    %10 = vector.load %arg9[%c0_7, %c0_8] : memref<64x512xf32, #tpu.memory_space<vmem>>, vector<64x512xf32>
    tpu.vector_store %arg9[%c0_7, %c0_8], %9 {strides = array<i32>} : memref<64x512xf32, #tpu.memory_space<vmem>>, vector<64x512xf32>,
    %c0_i32_9 = arith.constant 0 : i32
    %c8_i32 = arith.constant 8 : i32
    %11 = arith.muli %c0_i32_9, %c8_i32 : i32
    %12 = tpu.assume_multiple %11, 8 : i32
    %c1_i32 = arith.constant 1 : i32
    %13 = arith.addi %c0_i32_9, %c1_i32 : i32
    %c8_i32_10 = arith.constant 8 : i32
    %14 = arith.muli %13, %c8_i32_10 : i32
    %15 = tpu.assume_multiple %14, 8 : i32
    %16 = arith.index_cast %12 : i32 to index
    %c0_11 = arith.constant 0 : index
    %17 = vector.load %arg10[%16, %c0_11] : memref<72x128xf32, #tpu.memory_space<vmem>>, vector<8x128xf32>
    %18 = arith.truncf %17 : vector<8x128xf32> to vector<8x128xbf16>
    %19 = arith.index_cast %12 : i32 to index
    %c0_12 = arith.constant 0 : index
    %20 = vector.load %arg9[%19, %c0_12] : memref<64x512xf32, #tpu.memory_space<vmem>>, vector<8x128xf32>
    %c0_13 = arith.constant 0 : index
    %c0_14 = arith.constant 0 : index
    %21 = vector.load %arg4[%c0_13, %c0_14] : memref<128x512xbf16, #tpu.memory_space<vmem>>, vector<128x128xbf16>
    %cst_15 = arith.constant dense<0.000000e+00> : vector<8x128xf32>
    %22 = tpu.matmul %18, %21, %cst_15 {dimension_numbers = #tpu.dot_dimension_numbers<[1], [0], [0], [1], [0, 0, 1, 1], [], []>} : vector<8x128xbf16>, vector<128x128xbf16>, vector<8x128xf32> -> vector<8x128xf32>
    %23 = arith.addf %20, %22 : vector<8x128xf32>
    %24 = arith.negf %23 : vector<8x128xf32>
    %25 = math.exp %24 : vector<8x128xf32>
    %cst_16 = arith.constant 1.000000e+00 : f32
    %26 = vector.broadcast %cst_16 : f32 to vector<8x128xf32>
    %27 = arith.addf %26, %25 : vector<8x128xf32>
    %28 = arith.divf %26, %27 : vector<8x128xf32>
    %29 = arith.index_cast %12 : i32 to index
    %c128 = arith.constant 128 : index
    %30 = vector.load %arg9[%29, %c128] : memref<64x512xf32, #tpu.memory_space<vmem>>, vector<8x128xf32>
    %c0_17 = arith.constant 0 : index
    %c128_18 = arith.constant 128 : index
    %31 = vector.load %arg4[%c0_17, %c128_18] : memref<128x512xbf16, #tpu.memory_space<vmem>>, vector<128x128xbf16>
    %cst_19 = arith.constant dense<0.000000e+00> : vector<8x128xf32>
    %32 = tpu.matmul %18, %31, %cst_19 {dimension_numbers = #tpu.dot_dimension_numbers<[1], [0], [0], [1], [0, 0, 1, 1], [], []>} : vector<8x128xbf16>, vector<128x128xbf16>, vector<8x128xf32> -> vector<8x128xf32>
    %33 = arith.addf %30, %32 : vector<8x128xf32>
    %34 = arith.negf %33 : vector<8x128xf32>
    %35 = math.exp %34 : vector<8x128xf32>
    %cst_20 = arith.constant 1.000000e+00 : f32
    %36 = vector.broadcast %cst_20 : f32 to vector<8x128xf32>
    %37 = arith.addf %36, %35 : vector<8x128xf32>
    %38 = arith.divf %36, %37 : vector<8x128xf32>
    %39 = arith.index_cast %12 : i32 to index
    %c256 = arith.constant 256 : index
    %40 = vector.load %arg9[%39, %c256] : memref<64x512xf32, #tpu.memory_space<vmem>>, vector<8x128xf32>
    %c0_21 = arith.constant 0 : index
    %c256_22 = arith.constant 256 : index
    %41 = vector.load %arg4[%c0_21, %c256_22] : memref<128x512xbf16, #tpu.memory_space<vmem>>, vector<128x128xbf16>
    %cst_23 = arith.constant dense<0.000000e+00> : vector<8x128xf32>
    %42 = tpu.matmul %18, %41, %cst_23 {dimension_numbers = #tpu.dot_dimension_numbers<[1], [0], [0], [1], [0, 0, 1, 1], [], []>} : vector<8x128xbf16>, vector<128x128xbf16>, vector<8x128xf32> -> vector<8x128xf32>
    %43 = arith.addf %40, %42 : vector<8x128xf32>
    %44 = math.tanh %43 : vector<8x128xf32>
    %45 = arith.index_cast %12 : i32 to index
    %c384 = arith.constant 384 : index
    %46 = vector.load %arg9[%45, %c384] : memref<64x512xf32, #tpu.memory_space<vmem>>, vector<8x128xf32>
    %c0_24 = arith.constant 0 : index
    %c384_25 = arith.constant 384 : index
    %47 = vector.load %arg4[%c0_24, %c384_25] : memref<128x512xbf16, #tpu.memory_space<vmem>>, vector<128x128xbf16>
    %cst_26 = arith.constant dense<0.000000e+00> : vector<8x128xf32>
    %48 = tpu.matmul %18, %47, %cst_26 {dimension_numbers = #tpu.dot_dimension_numbers<[1], [0], [0], [1], [0, 0, 1, 1], [], []>} : vector<8x128xbf16>, vector<128x128xbf16>, vector<8x128xf32> -> vector<8x128xf32>
    %49 = arith.addf %46, %48 : vector<8x128xf32>
    %50 = arith.negf %49 : vector<8x128xf32>
    %51 = math.exp %50 : vector<8x128xf32>
    %cst_27 = arith.constant 1.000000e+00 : f32
    %52 = vector.broadcast %cst_27 : f32 to vector<8x128xf32>
    %53 = arith.addf %52, %51 : vector<8x128xf32>
    %54 = arith.divf %52, %53 : vector<8x128xf32>
    %c0_28 = arith.constant 0 : index
    %c0_29 = arith.constant 0 : index
    %55 = vector.load %arg11[%c0_28, %c0_29] : memref<8x128xf32, #tpu.memory_space<vmem>>, vector<8x128xf32>
    %56 = arith.mulf %38, %55 : vector<8x128xf32>
    %57 = arith.mulf %28, %44 : vector<8x128xf32>
    %58 = arith.addf %56, %57 : vector<8x128xf32>
    %c0_30 = arith.constant 0 : index
    %c0_31 = arith.constant 0 : index
    %59 = vector.load %arg11[%c0_30, %c0_31] : memref<8x128xf32, #tpu.memory_space<vmem>>, vector<8x128xf32>
    tpu.vector_store %arg11[%c0_30, %c0_31], %58 {strides = array<i32>} : memref<8x128xf32, #tpu.memory_space<vmem>>, vector<8x128xf32>,
    %60 = math.tanh %58 : vector<8x128xf32>
    %61 = arith.mulf %54, %60 : vector<8x128xf32>
    %62 = arith.index_cast %15 : i32 to index
    %c0_32 = arith.constant 0 : index
    %63 = vector.load %arg10[%62, %c0_32] : memref<72x128xf32, #tpu.memory_space<vmem>>, vector<8x128xf32>
    tpu.vector_store %arg10[%62, %c0_32], %61 {strides = array<i32>} : memref<72x128xf32, #tpu.memory_space<vmem>>, vector<8x128xf32>,
    %c1_i32_33 = arith.constant 1 : i32
    %c8_i32_34 = arith.constant 8 : i32
    %64 = arith.muli %c1_i32_33, %c8_i32_34 : i32
    %65 = tpu.assume_multiple %64, 8 : i32
    %c1_i32_35 = arith.constant 1 : i32
    %66 = arith.addi %c1_i32_33, %c1_i32_35 : i32
    %c8_i32_36 = arith.constant 8 : i32
    %67 = arith.muli %66, %c8_i32_36 : i32
    %68 = tpu.assume_multiple %67, 8 : i32
    %69 = arith.index_cast %65 : i32 to index
    %c0_37 = arith.constant 0 : index
    %70 = vector.load %arg10[%69, %c0_37] : memref<72x128xf32, #tpu.memory_space<vmem>>, vector<8x128xf32>
    %71 = arith.truncf %70 : vector<8x128xf32> to vector<8x128xbf16>
    %72 = arith.index_cast %65 : i32 to index
    %c0_38 = arith.constant 0 : index
    %73 = vector.load %arg9[%72, %c0_38] : memref<64x512xf32, #tpu.memory_space<vmem>>, vector<8x128xf32>
    %c0_39 = arith.constant 0 : index
    %c0_40 = arith.constant 0 : index
    %74 = vector.load %arg4[%c0_39, %c0_40] : memref<128x512xbf16, #tpu.memory_space<vmem>>, vector<128x128xbf16>
    %cst_41 = arith.constant dense<0.000000e+00> : vector<8x128xf32>
    %75 = tpu.matmul %71, %74, %cst_41 {dimension_numbers = #tpu.dot_dimension_numbers<[1], [0], [0], [1], [0, 0, 1, 1], [], []>} : vector<8x128xbf16>, vector<128x128xbf16>, vector<8x128xf32> -> vector<8x128xf32>
    %76 = arith.addf %73, %75 : vector<8x128xf32>
    %77 = arith.negf %76 : vector<8x128xf32>
    %78 = math.exp %77 : vector<8x128xf32>
    %cst_42 = arith.constant 1.000000e+00 : f32
    %79 = vector.broadcast %cst_42 : f32 to vector<8x128xf32>
    %80 = arith.addf %79, %78 : vector<8x128xf32>
    %81 = arith.divf %79, %80 : vector<8x128xf32>
    %82 = arith.index_cast %65 : i32 to index
    %c128_43 = arith.constant 128 : index
    %83 = vector.load %arg9[%82, %c128_43] : memref<64x512xf32, #tpu.memory_space<vmem>>, vector<8x128xf32>
    %c0_44 = arith.constant 0 : index
    %c128_45 = arith.constant 128 : index
    %84 = vector.load %arg4[%c0_44, %c128_45] : memref<128x512xbf16, #tpu.memory_space<vmem>>, vector<128x128xbf16>
    %cst_46 = arith.constant dense<0.000000e+00> : vector<8x128xf32>
    %85 = tpu.matmul %71, %84, %cst_46 {dimension_numbers = #tpu.dot_dimension_numbers<[1], [0], [0], [1], [0, 0, 1, 1], [], []>} : vector<8x128xbf16>, vector<128x128xbf16>, vector<8x128xf32> -> vector<8x128xf32>
    %86 = arith.addf %83, %85 : vector<8x128xf32>
    %87 = arith.negf %86 : vector<8x128xf32>
    %88 = math.exp %87 : vector<8x128xf32>
    %cst_47 = arith.constant 1.000000e+00 : f32
    %89 = vector.broadcast %cst_47 : f32 to vector<8x128xf32>
    %90 = arith.addf %89, %88 : vector<8x128xf32>
    %91 = arith.divf %89, %90 : vector<8x128xf32>
    %92 = arith.index_cast %65 : i32 to index
    %c256_48 = arith.constant 256 : index
    %93 = vector.load %arg9[%92, %c256_48] : memref<64x512xf32, #tpu.memory_space<vmem>>, vector<8x128xf32>
    %c0_49 = arith.constant 0 : index
    %c256_50 = arith.constant 256 : index
    %94 = vector.load %arg4[%c0_49, %c256_50] : memref<128x512xbf16, #tpu.memory_space<vmem>>, vector<128x128xbf16>
    %cst_51 = arith.constant dense<0.000000e+00> : vector<8x128xf32>
    %95 = tpu.matmul %71, %94, %cst_51 {dimension_numbers = #tpu.dot_dimension_numbers<[1], [0], [0], [1], [0, 0, 1, 1], [], []>} : vector<8x128xbf16>, vector<128x128xbf16>, vector<8x128xf32> -> vector<8x128xf32>
    %96 = arith.addf %93, %95 : vector<8x128xf32>
    %97 = math.tanh %96 : vector<8x128xf32>
    %98 = arith.index_cast %65 : i32 to index
    %c384_52 = arith.constant 384 : index
    %99 = vector.load %arg9[%98, %c384_52] : memref<64x512xf32, #tpu.memory_space<vmem>>, vector<8x128xf32>
    %c0_53 = arith.constant 0 : index
    %c384_54 = arith.constant 384 : index
    %100 = vector.load %arg4[%c0_53, %c384_54] : memref<128x512xbf16, #tpu.memory_space<vmem>>, vector<128x128xbf16>
    %cst_55 = arith.constant dense<0.000000e+00> : vector<8x128xf32>
    %101 = tpu.matmul %71, %100, %cst_55 {dimension_numbers = #tpu.dot_dimension_numbers<[1], [0], [0], [1], [0, 0, 1, 1], [], []>} : vector<8x128xbf16>, vector<128x128xbf16>, vector<8x128xf32> -> vector<8x128xf32>
    %102 = arith.addf %99, %101 : vector<8x128xf32>
    %103 = arith.negf %102 : vector<8x128xf32>
    %104 = math.exp %103 : vector<8x128xf32>
    %cst_56 = arith.constant 1.000000e+00 : f32
    %105 = vector.broadcast %cst_56 : f32 to vector<8x128xf32>
    %106 = arith.addf %105, %104 : vector<8x128xf32>
    %107 = arith.divf %105, %106 : vector<8x128xf32>
    %c0_57 = arith.constant 0 : index
    %c0_58 = arith.constant 0 : index
    %108 = vector.load %arg11[%c0_57, %c0_58] : memref<8x128xf32, #tpu.memory_space<vmem>>, vector<8x128xf32>
    %109 = arith.mulf %91, %108 : vector<8x128xf32>
    %110 = arith.mulf %81, %97 : vector<8x128xf32>
    %111 = arith.addf %109, %110 : vector<8x128xf32>
    %c0_59 = arith.constant 0 : index
    %c0_60 = arith.constant 0 : index
    %112 = vector.load %arg11[%c0_59, %c0_60] : memref<8x128xf32, #tpu.memory_space<vmem>>, vector<8x128xf32>
    tpu.vector_store %arg11[%c0_59, %c0_60], %111 {strides = array<i32>} : memref<8x128xf32, #tpu.memory_space<vmem>>, vector<8x128xf32>,
    %113 = math.tanh %111 : vector<8x128xf32>
    %114 = arith.mulf %107, %113 : vector<8x128xf32>
    %115 = arith.index_cast %68 : i32 to index
    %c0_61 = arith.constant 0 : index
    %116 = vector.load %arg10[%115, %c0_61] : memref<72x128xf32, #tpu.memory_space<vmem>>, vector<8x128xf32>
    tpu.vector_store %arg10[%115, %c0_61], %114 {strides = array<i32>} : memref<72x128xf32, #tpu.memory_space<vmem>>, vector<8x128xf32>,
    %c2_i32 = arith.constant 2 : i32
    %c8_i32_62 = arith.constant 8 : i32
    %117 = arith.muli %c2_i32, %c8_i32_62 : i32
    %118 = tpu.assume_multiple %117, 8 : i32
    %c1_i32_63 = arith.constant 1 : i32
    %119 = arith.addi %c2_i32, %c1_i32_63 : i32
    %c8_i32_64 = arith.constant 8 : i32
    %120 = arith.muli %119, %c8_i32_64 : i32
    %121 = tpu.assume_multiple %120, 8 : i32
    %122 = arith.index_cast %118 : i32 to index
    %c0_65 = arith.constant 0 : index
    %123 = vector.load %arg10[%122, %c0_65] : memref<72x128xf32, #tpu.memory_space<vmem>>, vector<8x128xf32>
    %124 = arith.truncf %123 : vector<8x128xf32> to vector<8x128xbf16>
    %125 = arith.index_cast %118 : i32 to index
    %c0_66 = arith.constant 0 : index
    %126 = vector.load %arg9[%125, %c0_66] : memref<64x512xf32, #tpu.memory_space<vmem>>, vector<8x128xf32>
    %c0_67 = arith.constant 0 : index
    %c0_68 = arith.constant 0 : index
    %127 = vector.load %arg4[%c0_67, %c0_68] : memref<128x512xbf16, #tpu.memory_space<vmem>>, vector<128x128xbf16>
    %cst_69 = arith.constant dense<0.000000e+00> : vector<8x128xf32>
    %128 = tpu.matmul %124, %127, %cst_69 {dimension_numbers = #tpu.dot_dimension_numbers<[1], [0], [0], [1], [0, 0, 1, 1], [], []>} : vector<8x128xbf16>, vector<128x128xbf16>, vector<8x128xf32> -> vector<8x128xf32>
    %129 = arith.addf %126, %128 : vector<8x128xf32>
    %130 = arith.negf %129 : vector<8x128xf32>
    %131 = math.exp %130 : vector<8x128xf32>
    %cst_70 = arith.constant 1.000000e+00 : f32
    %132 = vector.broadcast %cst_70 : f32 to vector<8x128xf32>
    %133 = arith.addf %132, %131 : vector<8x128xf32>
    %134 = arith.divf %132, %133 : vector<8x128xf32>
    %135 = arith.index_cast %118 : i32 to index
    %c128_71 = arith.constant 128 : index
    %136 = vector.load %arg9[%135, %c128_71] : memref<64x512xf32, #tpu.memory_space<vmem>>, vector<8x128xf32>
    %c0_72 = arith.constant 0 : index
    %c128_73 = arith.constant 128 : index
    %137 = vector.load %arg4[%c0_72, %c128_73] : memref<128x512xbf16, #tpu.memory_space<vmem>>, vector<128x128xbf16>
    %cst_74 = arith.constant dense<0.000000e+00> : vector<8x128xf32>
    %138 = tpu.matmul %124, %137, %cst_74 {dimension_numbers = #tpu.dot_dimension_numbers<[1], [0], [0], [1], [0, 0, 1, 1], [], []>} : vector<8x128xbf16>, vector<128x128xbf16>, vector<8x128xf32> -> vector<8x128xf32>
    %139 = arith.addf %136, %138 : vector<8x128xf32>
    %140 = arith.negf %139 : vector<8x128xf32>
    %141 = math.exp %140 : vector<8x128xf32>
    %cst_75 = arith.constant 1.000000e+00 : f32
    %142 = vector.broadcast %cst_75 : f32 to vector<8x128xf32>
    %143 = arith.addf %142, %141 : vector<8x128xf32>
    %144 = arith.divf %142, %143 : vector<8x128xf32>
    %145 = arith.index_cast %118 : i32 to index
    %c256_76 = arith.constant 256 : index
    %146 = vector.load %arg9[%145, %c256_76] : memref<64x512xf32, #tpu.memory_space<vmem>>, vector<8x128xf32>
    %c0_77 = arith.constant 0 : index
    %c256_78 = arith.constant 256 : index
    %147 = vector.load %arg4[%c0_77, %c256_78] : memref<128x512xbf16, #tpu.memory_space<vmem>>, vector<128x128xbf16>
    %cst_79 = arith.constant dense<0.000000e+00> : vector<8x128xf32>
    %148 = tpu.matmul %124, %147, %cst_79 {dimension_numbers = #tpu.dot_dimension_numbers<[1], [0], [0], [1], [0, 0, 1, 1], [], []>} : vector<8x128xbf16>, vector<128x128xbf16>, vector<8x128xf32> -> vector<8x128xf32>
    %149 = arith.addf %146, %148 : vector<8x128xf32>
    %150 = math.tanh %149 : vector<8x128xf32>
    %151 = arith.index_cast %118 : i32 to index
    %c384_80 = arith.constant 384 : index
    %152 = vector.load %arg9[%151, %c384_80] : memref<64x512xf32, #tpu.memory_space<vmem>>, vector<8x128xf32>
    %c0_81 = arith.constant 0 : index
    %c384_82 = arith.constant 384 : index
    %153 = vector.load %arg4[%c0_81, %c384_82] : memref<128x512xbf16, #tpu.memory_space<vmem>>, vector<128x128xbf16>
    %cst_83 = arith.constant dense<0.000000e+00> : vector<8x128xf32>
    %154 = tpu.matmul %124, %153, %cst_83 {dimension_numbers = #tpu.dot_dimension_numbers<[1], [0], [0], [1], [0, 0, 1, 1], [], []>} : vector<8x128xbf16>, vector<128x128xbf16>, vector<8x128xf32> -> vector<8x128xf32>
    %155 = arith.addf %152, %154 : vector<8x128xf32>
    %156 = arith.negf %155 : vector<8x128xf32>
    %157 = math.exp %156 : vector<8x128xf32>
    %cst_84 = arith.constant 1.000000e+00 : f32
    %158 = vector.broadcast %cst_84 : f32 to vector<8x128xf32>
    %159 = arith.addf %158, %157 : vector<8x128xf32>
    %160 = arith.divf %158, %159 : vector<8x128xf32>
    %c0_85 = arith.constant 0 : index
    %c0_86 = arith.constant 0 : index
    %161 = vector.load %arg11[%c0_85, %c0_86] : memref<8x128xf32, #tpu.memory_space<vmem>>, vector<8x128xf32>
    %162 = arith.mulf %144, %161 : vector<8x128xf32>
    %163 = arith.mulf %134, %150 : vector<8x128xf32>
    %164 = arith.addf %162, %163 : vector<8x128xf32>
    %c0_87 = arith.constant 0 : index
    %c0_88 = arith.constant 0 : index
    %165 = vector.load %arg11[%c0_87, %c0_88] : memref<8x128xf32, #tpu.memory_space<vmem>>, vector<8x128xf32>
    tpu.vector_store %arg11[%c0_87, %c0_88], %164 {strides = array<i32>} : memref<8x128xf32, #tpu.memory_space<vmem>>, vector<8x128xf32>,
    %166 = math.tanh %164 : vector<8x128xf32>
    %167 = arith.mulf %160, %166 : vector<8x128xf32>
    %168 = arith.index_cast %121 : i32 to index
    %c0_89 = arith.constant 0 : index
    %169 = vector.load %arg10[%168, %c0_89] : memref<72x128xf32, #tpu.memory_space<vmem>>, vector<8x128xf32>
    tpu.vector_store %arg10[%168, %c0_89], %167 {strides = array<i32>} : memref<72x128xf32, #tpu.memory_space<vmem>>, vector<8x128xf32>,
    %c3_i32 = arith.constant 3 : i32
    %c8_i32_90 = arith.constant 8 : i32
    %170 = arith.muli %c3_i32, %c8_i32_90 : i32
    %171 = tpu.assume_multiple %170, 8 : i32
    %c1_i32_91 = arith.constant 1 : i32
    %172 = arith.addi %c3_i32, %c1_i32_91 : i32
    %c8_i32_92 = arith.constant 8 : i32
    %173 = arith.muli %172, %c8_i32_92 : i32
    %174 = tpu.assume_multiple %173, 8 : i32
    %175 = arith.index_cast %171 : i32 to index
    %c0_93 = arith.constant 0 : index
    %176 = vector.load %arg10[%175, %c0_93] : memref<72x128xf32, #tpu.memory_space<vmem>>, vector<8x128xf32>
    %177 = arith.truncf %176 : vector<8x128xf32> to vector<8x128xbf16>
    %178 = arith.index_cast %171 : i32 to index
    %c0_94 = arith.constant 0 : index
    %179 = vector.load %arg9[%178, %c0_94] : memref<64x512xf32, #tpu.memory_space<vmem>>, vector<8x128xf32>
    %c0_95 = arith.constant 0 : index
    %c0_96 = arith.constant 0 : index
    %180 = vector.load %arg4[%c0_95, %c0_96] : memref<128x512xbf16, #tpu.memory_space<vmem>>, vector<128x128xbf16>
    %cst_97 = arith.constant dense<0.000000e+00> : vector<8x128xf32>
    %181 = tpu.matmul %177, %180, %cst_97 {dimension_numbers = #tpu.dot_dimension_numbers<[1], [0], [0], [1], [0, 0, 1, 1], [], []>} : vector<8x128xbf16>, vector<128x128xbf16>, vector<8x128xf32> -> vector<8x128xf32>
    %182 = arith.addf %179, %181 : vector<8x128xf32>
    %183 = arith.negf %182 : vector<8x128xf32>
    %184 = math.exp %183 : vector<8x128xf32>
    %cst_98 = arith.constant 1.000000e+00 : f32
    %185 = vector.broadcast %cst_98 : f32 to vector<8x128xf32>
    %186 = arith.addf %185, %184 : vector<8x128xf32>
    %187 = arith.divf %185, %186 : vector<8x128xf32>
    %188 = arith.index_cast %171 : i32 to index
    %c128_99 = arith.constant 128 : index
    %189 = vector.load %arg9[%188, %c128_99] : memref<64x512xf32, #tpu.memory_space<vmem>>, vector<8x128xf32>
    %c0_100 = arith.constant 0 : index
    %c128_101 = arith.constant 128 : index
    %190 = vector.load %arg4[%c0_100, %c128_101] : memref<128x512xbf16, #tpu.memory_space<vmem>>, vector<128x128xbf16>
    %cst_102 = arith.constant dense<0.000000e+00> : vector<8x128xf32>
    %191 = tpu.matmul %177, %190, %cst_102 {dimension_numbers = #tpu.dot_dimension_numbers<[1], [0], [0], [1], [0, 0, 1, 1], [], []>} : vector<8x128xbf16>, vector<128x128xbf16>, vector<8x128xf32> -> vector<8x128xf32>
    %192 = arith.addf %189, %191 : vector<8x128xf32>
    %193 = arith.negf %192 : vector<8x128xf32>
    %194 = math.exp %193 : vector<8x128xf32>
    %cst_103 = arith.constant 1.000000e+00 : f32
    %195 = vector.broadcast %cst_103 : f32 to vector<8x128xf32>
    %196 = arith.addf %195, %194 : vector<8x128xf32>
    %197 = arith.divf %195, %196 : vector<8x128xf32>
    %198 = arith.index_cast %171 : i32 to index
    %c256_104 = arith.constant 256 : index
    %199 = vector.load %arg9[%198, %c256_104] : memref<64x512xf32, #tpu.memory_space<vmem>>, vector<8x128xf32>
    %c0_105 = arith.constant 0 : index
    %c256_106 = arith.constant 256 : index
    %200 = vector.load %arg4[%c0_105, %c256_106] : memref<128x512xbf16, #tpu.memory_space<vmem>>, vector<128x128xbf16>
    %cst_107 = arith.constant dense<0.000000e+00> : vector<8x128xf32>
    %201 = tpu.matmul %177, %200, %cst_107 {dimension_numbers = #tpu.dot_dimension_numbers<[1], [0], [0], [1], [0, 0, 1, 1], [], []>} : vector<8x128xbf16>, vector<128x128xbf16>, vector<8x128xf32> -> vector<8x128xf32>
    %202 = arith.addf %199, %201 : vector<8x128xf32>
    %203 = math.tanh %202 : vector<8x128xf32>
    %204 = arith.index_cast %171 : i32 to index
    %c384_108 = arith.constant 384 : index
    %205 = vector.load %arg9[%204, %c384_108] : memref<64x512xf32, #tpu.memory_space<vmem>>, vector<8x128xf32>
    %c0_109 = arith.constant 0 : index
    %c384_110 = arith.constant 384 : index
    %206 = vector.load %arg4[%c0_109, %c384_110] : memref<128x512xbf16, #tpu.memory_space<vmem>>, vector<128x128xbf16>
    %cst_111 = arith.constant dense<0.000000e+00> : vector<8x128xf32>
    %207 = tpu.matmul %177, %206, %cst_111 {dimension_numbers = #tpu.dot_dimension_numbers<[1], [0], [0], [1], [0, 0, 1, 1], [], []>} : vector<8x128xbf16>, vector<128x128xbf16>, vector<8x128xf32> -> vector<8x128xf32>
    %208 = arith.addf %205, %207 : vector<8x128xf32>
    %209 = arith.negf %208 : vector<8x128xf32>
    %210 = math.exp %209 : vector<8x128xf32>
    %cst_112 = arith.constant 1.000000e+00 : f32
    %211 = vector.broadcast %cst_112 : f32 to vector<8x128xf32>
    %212 = arith.addf %211, %210 : vector<8x128xf32>
    %213 = arith.divf %211, %212 : vector<8x128xf32>
    %c0_113 = arith.constant 0 : index
    %c0_114 = arith.constant 0 : index
    %214 = vector.load %arg11[%c0_113, %c0_114] : memref<8x128xf32, #tpu.memory_space<vmem>>, vector<8x128xf32>
    %215 = arith.mulf %197, %214 : vector<8x128xf32>
    %216 = arith.mulf %187, %203 : vector<8x128xf32>
    %217 = arith.addf %215, %216 : vector<8x128xf32>
    %c0_115 = arith.constant 0 : index
    %c0_116 = arith.constant 0 : index
    %218 = vector.load %arg11[%c0_115, %c0_116] : memref<8x128xf32, #tpu.memory_space<vmem>>, vector<8x128xf32>
    tpu.vector_store %arg11[%c0_115, %c0_116], %217 {strides = array<i32>} : memref<8x128xf32, #tpu.memory_space<vmem>>, vector<8x128xf32>,
    %219 = math.tanh %217 : vector<8x128xf32>
    %220 = arith.mulf %213, %219 : vector<8x128xf32>
    %221 = arith.index_cast %174 : i32 to index
    %c0_117 = arith.constant 0 : index
    %222 = vector.load %arg10[%221, %c0_117] : memref<72x128xf32, #tpu.memory_space<vmem>>, vector<8x128xf32>
    tpu.vector_store %arg10[%221, %c0_117], %220 {strides = array<i32>} : memref<72x128xf32, #tpu.memory_space<vmem>>, vector<8x128xf32>,
    %c4_i32 = arith.constant 4 : i32
    %c8_i32_118 = arith.constant 8 : i32
    %223 = arith.muli %c4_i32, %c8_i32_118 : i32
    %224 = tpu.assume_multiple %223, 8 : i32
    %c1_i32_119 = arith.constant 1 : i32
    %225 = arith.addi %c4_i32, %c1_i32_119 : i32
    %c8_i32_120 = arith.constant 8 : i32
    %226 = arith.muli %225, %c8_i32_120 : i32
    %227 = tpu.assume_multiple %226, 8 : i32
    %228 = arith.index_cast %224 : i32 to index
    %c0_121 = arith.constant 0 : index
    %229 = vector.load %arg10[%228, %c0_121] : memref<72x128xf32, #tpu.memory_space<vmem>>, vector<8x128xf32>
    %230 = arith.truncf %229 : vector<8x128xf32> to vector<8x128xbf16>
    %231 = arith.index_cast %224 : i32 to index
    %c0_122 = arith.constant 0 : index
    %232 = vector.load %arg9[%231, %c0_122] : memref<64x512xf32, #tpu.memory_space<vmem>>, vector<8x128xf32>
    %c0_123 = arith.constant 0 : index
    %c0_124 = arith.constant 0 : index
    %233 = vector.load %arg4[%c0_123, %c0_124] : memref<128x512xbf16, #tpu.memory_space<vmem>>, vector<128x128xbf16>
    %cst_125 = arith.constant dense<0.000000e+00> : vector<8x128xf32>
    %234 = tpu.matmul %230, %233, %cst_125 {dimension_numbers = #tpu.dot_dimension_numbers<[1], [0], [0], [1], [0, 0, 1, 1], [], []>} : vector<8x128xbf16>, vector<128x128xbf16>, vector<8x128xf32> -> vector<8x128xf32>
    %235 = arith.addf %232, %234 : vector<8x128xf32>
    %236 = arith.negf %235 : vector<8x128xf32>
    %237 = math.exp %236 : vector<8x128xf32>
    %cst_126 = arith.constant 1.000000e+00 : f32
    %238 = vector.broadcast %cst_126 : f32 to vector<8x128xf32>
    %239 = arith.addf %238, %237 : vector<8x128xf32>
    %240 = arith.divf %238, %239 : vector<8x128xf32>
    %241 = arith.index_cast %224 : i32 to index
    %c128_127 = arith.constant 128 : index
    %242 = vector.load %arg9[%241, %c128_127] : memref<64x512xf32, #tpu.memory_space<vmem>>, vector<8x128xf32>
    %c0_128 = arith.constant 0 : index
    %c128_129 = arith.constant 128 : index
    %243 = vector.load %arg4[%c0_128, %c128_129] : memref<128x512xbf16, #tpu.memory_space<vmem>>, vector<128x128xbf16>
    %cst_130 = arith.constant dense<0.000000e+00> : vector<8x128xf32>
    %244 = tpu.matmul %230, %243, %cst_130 {dimension_numbers = #tpu.dot_dimension_numbers<[1], [0], [0], [1], [0, 0, 1, 1], [], []>} : vector<8x128xbf16>, vector<128x128xbf16>, vector<8x128xf32> -> vector<8x128xf32>
    %245 = arith.addf %242, %244 : vector<8x128xf32>
    %246 = arith.negf %245 : vector<8x128xf32>
    %247 = math.exp %246 : vector<8x128xf32>
    %cst_131 = arith.constant 1.000000e+00 : f32
    %248 = vector.broadcast %cst_131 : f32 to vector<8x128xf32>
    %249 = arith.addf %248, %247 : vector<8x128xf32>
    %250 = arith.divf %248, %249 : vector<8x128xf32>
    %251 = arith.index_cast %224 : i32 to index
    %c256_132 = arith.constant 256 : index
    %252 = vector.load %arg9[%251, %c256_132] : memref<64x512xf32, #tpu.memory_space<vmem>>, vector<8x128xf32>
    %c0_133 = arith.constant 0 : index
    %c256_134 = arith.constant 256 : index
    %253 = vector.load %arg4[%c0_133, %c256_134] : memref<128x512xbf16, #tpu.memory_space<vmem>>, vector<128x128xbf16>
    %cst_135 = arith.constant dense<0.000000e+00> : vector<8x128xf32>
    %254 = tpu.matmul %230, %253, %cst_135 {dimension_numbers = #tpu.dot_dimension_numbers<[1], [0], [0], [1], [0, 0, 1, 1], [], []>} : vector<8x128xbf16>, vector<128x128xbf16>, vector<8x128xf32> -> vector<8x128xf32>
    %255 = arith.addf %252, %254 : vector<8x128xf32>
    %256 = math.tanh %255 : vector<8x128xf32>
    %257 = arith.index_cast %224 : i32 to index
    %c384_136 = arith.constant 384 : index
    %258 = vector.load %arg9[%257, %c384_136] : memref<64x512xf32, #tpu.memory_space<vmem>>, vector<8x128xf32>
    %c0_137 = arith.constant 0 : index
    %c384_138 = arith.constant 384 : index
    %259 = vector.load %arg4[%c0_137, %c384_138] : memref<128x512xbf16, #tpu.memory_space<vmem>>, vector<128x128xbf16>
    %cst_139 = arith.constant dense<0.000000e+00> : vector<8x128xf32>
    %260 = tpu.matmul %230, %259, %cst_139 {dimension_numbers = #tpu.dot_dimension_numbers<[1], [0], [0], [1], [0, 0, 1, 1], [], []>} : vector<8x128xbf16>, vector<128x128xbf16>, vector<8x128xf32> -> vector<8x128xf32>
    %261 = arith.addf %258, %260 : vector<8x128xf32>
    %262 = arith.negf %261 : vector<8x128xf32>
    %263 = math.exp %262 : vector<8x128xf32>
    %cst_140 = arith.constant 1.000000e+00 : f32
    %264 = vector.broadcast %cst_140 : f32 to vector<8x128xf32>
    %265 = arith.addf %264, %263 : vector<8x128xf32>
    %266 = arith.divf %264, %265 : vector<8x128xf32>
    %c0_141 = arith.constant 0 : index
    %c0_142 = arith.constant 0 : index
    %267 = vector.load %arg11[%c0_141, %c0_142] : memref<8x128xf32, #tpu.memory_space<vmem>>, vector<8x128xf32>
    %268 = arith.mulf %250, %267 : vector<8x128xf32>
    %269 = arith.mulf %240, %256 : vector<8x128xf32>
    %270 = arith.addf %268, %269 : vector<8x128xf32>
    %c0_143 = arith.constant 0 : index
    %c0_144 = arith.constant 0 : index
    %271 = vector.load %arg11[%c0_143, %c0_144] : memref<8x128xf32, #tpu.memory_space<vmem>>, vector<8x128xf32>
    tpu.vector_store %arg11[%c0_143, %c0_144], %270 {strides = array<i32>} : memref<8x128xf32, #tpu.memory_space<vmem>>, vector<8x128xf32>,
    %272 = math.tanh %270 : vector<8x128xf32>
    %273 = arith.mulf %266, %272 : vector<8x128xf32>
    %274 = arith.index_cast %227 : i32 to index
    %c0_145 = arith.constant 0 : index
    %275 = vector.load %arg10[%274, %c0_145] : memref<72x128xf32, #tpu.memory_space<vmem>>, vector<8x128xf32>
    tpu.vector_store %arg10[%274, %c0_145], %273 {strides = array<i32>} : memref<72x128xf32, #tpu.memory_space<vmem>>, vector<8x128xf32>,
    %c5_i32 = arith.constant 5 : i32
    %c8_i32_146 = arith.constant 8 : i32
    %276 = arith.muli %c5_i32, %c8_i32_146 : i32
    %277 = tpu.assume_multiple %276, 8 : i32
    %c1_i32_147 = arith.constant 1 : i32
    %278 = arith.addi %c5_i32, %c1_i32_147 : i32
    %c8_i32_148 = arith.constant 8 : i32
    %279 = arith.muli %278, %c8_i32_148 : i32
    %280 = tpu.assume_multiple %279, 8 : i32
    %281 = arith.index_cast %277 : i32 to index
    %c0_149 = arith.constant 0 : index
    %282 = vector.load %arg10[%281, %c0_149] : memref<72x128xf32, #tpu.memory_space<vmem>>, vector<8x128xf32>
    %283 = arith.truncf %282 : vector<8x128xf32> to vector<8x128xbf16>
    %284 = arith.index_cast %277 : i32 to index
    %c0_150 = arith.constant 0 : index
    %285 = vector.load %arg9[%284, %c0_150] : memref<64x512xf32, #tpu.memory_space<vmem>>, vector<8x128xf32>
    %c0_151 = arith.constant 0 : index
    %c0_152 = arith.constant 0 : index
    %286 = vector.load %arg4[%c0_151, %c0_152] : memref<128x512xbf16, #tpu.memory_space<vmem>>, vector<128x128xbf16>
    %cst_153 = arith.constant dense<0.000000e+00> : vector<8x128xf32>
    %287 = tpu.matmul %283, %286, %cst_153 {dimension_numbers = #tpu.dot_dimension_numbers<[1], [0], [0], [1], [0, 0, 1, 1], [], []>} : vector<8x128xbf16>, vector<128x128xbf16>, vector<8x128xf32> -> vector<8x128xf32>
    %288 = arith.addf %285, %287 : vector<8x128xf32>
    %289 = arith.negf %288 : vector<8x128xf32>
    %290 = math.exp %289 : vector<8x128xf32>
    %cst_154 = arith.constant 1.000000e+00 : f32
    %291 = vector.broadcast %cst_154 : f32 to vector<8x128xf32>
    %292 = arith.addf %291, %290 : vector<8x128xf32>
    %293 = arith.divf %291, %292 : vector<8x128xf32>
    %294 = arith.index_cast %277 : i32 to index
    %c128_155 = arith.constant 128 : index
    %295 = vector.load %arg9[%294, %c128_155] : memref<64x512xf32, #tpu.memory_space<vmem>>, vector<8x128xf32>
    %c0_156 = arith.constant 0 : index
    %c128_157 = arith.constant 128 : index
    %296 = vector.load %arg4[%c0_156, %c128_157] : memref<128x512xbf16, #tpu.memory_space<vmem>>, vector<128x128xbf16>
    %cst_158 = arith.constant dense<0.000000e+00> : vector<8x128xf32>
    %297 = tpu.matmul %283, %296, %cst_158 {dimension_numbers = #tpu.dot_dimension_numbers<[1], [0], [0], [1], [0, 0, 1, 1], [], []>} : vector<8x128xbf16>, vector<128x128xbf16>, vector<8x128xf32> -> vector<8x128xf32>
    %298 = arith.addf %295, %297 : vector<8x128xf32>
    %299 = arith.negf %298 : vector<8x128xf32>
    %300 = math.exp %299 : vector<8x128xf32>
    %cst_159 = arith.constant 1.000000e+00 : f32
    %301 = vector.broadcast %cst_159 : f32 to vector<8x128xf32>
    %302 = arith.addf %301, %300 : vector<8x128xf32>
    %303 = arith.divf %301, %302 : vector<8x128xf32>
    %304 = arith.index_cast %277 : i32 to index
    %c256_160 = arith.constant 256 : index
    %305 = vector.load %arg9[%304, %c256_160] : memref<64x512xf32, #tpu.memory_space<vmem>>, vector<8x128xf32>
    %c0_161 = arith.constant 0 : index
    %c256_162 = arith.constant 256 : index
    %306 = vector.load %arg4[%c0_161, %c256_162] : memref<128x512xbf16, #tpu.memory_space<vmem>>, vector<128x128xbf16>
    %cst_163 = arith.constant dense<0.000000e+00> : vector<8x128xf32>
    %307 = tpu.matmul %283, %306, %cst_163 {dimension_numbers = #tpu.dot_dimension_numbers<[1], [0], [0], [1], [0, 0, 1, 1], [], []>} : vector<8x128xbf16>, vector<128x128xbf16>, vector<8x128xf32> -> vector<8x128xf32>
    %308 = arith.addf %305, %307 : vector<8x128xf32>
    %309 = math.tanh %308 : vector<8x128xf32>
    %310 = arith.index_cast %277 : i32 to index
    %c384_164 = arith.constant 384 : index
    %311 = vector.load %arg9[%310, %c384_164] : memref<64x512xf32, #tpu.memory_space<vmem>>, vector<8x128xf32>
    %c0_165 = arith.constant 0 : index
    %c384_166 = arith.constant 384 : index
    %312 = vector.load %arg4[%c0_165, %c384_166] : memref<128x512xbf16, #tpu.memory_space<vmem>>, vector<128x128xbf16>
    %cst_167 = arith.constant dense<0.000000e+00> : vector<8x128xf32>
    %313 = tpu.matmul %283, %312, %cst_167 {dimension_numbers = #tpu.dot_dimension_numbers<[1], [0], [0], [1], [0, 0, 1, 1], [], []>} : vector<8x128xbf16>, vector<128x128xbf16>, vector<8x128xf32> -> vector<8x128xf32>
    %314 = arith.addf %311, %313 : vector<8x128xf32>
    %315 = arith.negf %314 : vector<8x128xf32>
    %316 = math.exp %315 : vector<8x128xf32>
    %cst_168 = arith.constant 1.000000e+00 : f32
    %317 = vector.broadcast %cst_168 : f32 to vector<8x128xf32>
    %318 = arith.addf %317, %316 : vector<8x128xf32>
    %319 = arith.divf %317, %318 : vector<8x128xf32>
    %c0_169 = arith.constant 0 : index
    %c0_170 = arith.constant 0 : index
    %320 = vector.load %arg11[%c0_169, %c0_170] : memref<8x128xf32, #tpu.memory_space<vmem>>, vector<8x128xf32>
    %321 = arith.mulf %303, %320 : vector<8x128xf32>
    %322 = arith.mulf %293, %309 : vector<8x128xf32>
    %323 = arith.addf %321, %322 : vector<8x128xf32>
    %c0_171 = arith.constant 0 : index
    %c0_172 = arith.constant 0 : index
    %324 = vector.load %arg11[%c0_171, %c0_172] : memref<8x128xf32, #tpu.memory_space<vmem>>, vector<8x128xf32>
    tpu.vector_store %arg11[%c0_171, %c0_172], %323 {strides = array<i32>} : memref<8x128xf32, #tpu.memory_space<vmem>>, vector<8x128xf32>,
    %325 = math.tanh %323 : vector<8x128xf32>
    %326 = arith.mulf %319, %325 : vector<8x128xf32>
    %327 = arith.index_cast %280 : i32 to index
    %c0_173 = arith.constant 0 : index
    %328 = vector.load %arg10[%327, %c0_173] : memref<72x128xf32, #tpu.memory_space<vmem>>, vector<8x128xf32>
    tpu.vector_store %arg10[%327, %c0_173], %326 {strides = array<i32>} : memref<72x128xf32, #tpu.memory_space<vmem>>, vector<8x128xf32>,
    %c6_i32 = arith.constant 6 : i32
    %c8_i32_174 = arith.constant 8 : i32
    %329 = arith.muli %c6_i32, %c8_i32_174 : i32
    %330 = tpu.assume_multiple %329, 8 : i32
    %c1_i32_175 = arith.constant 1 : i32
    %331 = arith.addi %c6_i32, %c1_i32_175 : i32
    %c8_i32_176 = arith.constant 8 : i32
    %332 = arith.muli %331, %c8_i32_176 : i32
    %333 = tpu.assume_multiple %332, 8 : i32
    %334 = arith.index_cast %330 : i32 to index
    %c0_177 = arith.constant 0 : index
    %335 = vector.load %arg10[%334, %c0_177] : memref<72x128xf32, #tpu.memory_space<vmem>>, vector<8x128xf32>
    %336 = arith.truncf %335 : vector<8x128xf32> to vector<8x128xbf16>
    %337 = arith.index_cast %330 : i32 to index
    %c0_178 = arith.constant 0 : index
    %338 = vector.load %arg9[%337, %c0_178] : memref<64x512xf32, #tpu.memory_space<vmem>>, vector<8x128xf32>
    %c0_179 = arith.constant 0 : index
    %c0_180 = arith.constant 0 : index
    %339 = vector.load %arg4[%c0_179, %c0_180] : memref<128x512xbf16, #tpu.memory_space<vmem>>, vector<128x128xbf16>
    %cst_181 = arith.constant dense<0.000000e+00> : vector<8x128xf32>
    %340 = tpu.matmul %336, %339, %cst_181 {dimension_numbers = #tpu.dot_dimension_numbers<[1], [0], [0], [1], [0, 0, 1, 1], [], []>} : vector<8x128xbf16>, vector<128x128xbf16>, vector<8x128xf32> -> vector<8x128xf32>
    %341 = arith.addf %338, %340 : vector<8x128xf32>
    %342 = arith.negf %341 : vector<8x128xf32>
    %343 = math.exp %342 : vector<8x128xf32>
    %cst_182 = arith.constant 1.000000e+00 : f32
    %344 = vector.broadcast %cst_182 : f32 to vector<8x128xf32>
    %345 = arith.addf %344, %343 : vector<8x128xf32>
    %346 = arith.divf %344, %345 : vector<8x128xf32>
    %347 = arith.index_cast %330 : i32 to index
    %c128_183 = arith.constant 128 : index
    %348 = vector.load %arg9[%347, %c128_183] : memref<64x512xf32, #tpu.memory_space<vmem>>, vector<8x128xf32>
    %c0_184 = arith.constant 0 : index
    %c128_185 = arith.constant 128 : index
    %349 = vector.load %arg4[%c0_184, %c128_185] : memref<128x512xbf16, #tpu.memory_space<vmem>>, vector<128x128xbf16>
    %cst_186 = arith.constant dense<0.000000e+00> : vector<8x128xf32>
    %350 = tpu.matmul %336, %349, %cst_186 {dimension_numbers = #tpu.dot_dimension_numbers<[1], [0], [0], [1], [0, 0, 1, 1], [], []>} : vector<8x128xbf16>, vector<128x128xbf16>, vector<8x128xf32> -> vector<8x128xf32>
    %351 = arith.addf %348, %350 : vector<8x128xf32>
    %352 = arith.negf %351 : vector<8x128xf32>
    %353 = math.exp %352 : vector<8x128xf32>
    %cst_187 = arith.constant 1.000000e+00 : f32
    %354 = vector.broadcast %cst_187 : f32 to vector<8x128xf32>
    %355 = arith.addf %354, %353 : vector<8x128xf32>
    %356 = arith.divf %354, %355 : vector<8x128xf32>
    %357 = arith.index_cast %330 : i32 to index
    %c256_188 = arith.constant 256 : index
    %358 = vector.load %arg9[%357, %c256_188] : memref<64x512xf32, #tpu.memory_space<vmem>>, vector<8x128xf32>
    %c0_189 = arith.constant 0 : index
    %c256_190 = arith.constant 256 : index
    %359 = vector.load %arg4[%c0_189, %c256_190] : memref<128x512xbf16, #tpu.memory_space<vmem>>, vector<128x128xbf16>
    %cst_191 = arith.constant dense<0.000000e+00> : vector<8x128xf32>
    %360 = tpu.matmul %336, %359, %cst_191 {dimension_numbers = #tpu.dot_dimension_numbers<[1], [0], [0], [1], [0, 0, 1, 1], [], []>} : vector<8x128xbf16>, vector<128x128xbf16>, vector<8x128xf32> -> vector<8x128xf32>
    %361 = arith.addf %358, %360 : vector<8x128xf32>
    %362 = math.tanh %361 : vector<8x128xf32>
    %363 = arith.index_cast %330 : i32 to index
    %c384_192 = arith.constant 384 : index
    %364 = vector.load %arg9[%363, %c384_192] : memref<64x512xf32, #tpu.memory_space<vmem>>, vector<8x128xf32>
    %c0_193 = arith.constant 0 : index
    %c384_194 = arith.constant 384 : index
    %365 = vector.load %arg4[%c0_193, %c384_194] : memref<128x512xbf16, #tpu.memory_space<vmem>>, vector<128x128xbf16>
    %cst_195 = arith.constant dense<0.000000e+00> : vector<8x128xf32>
    %366 = tpu.matmul %336, %365, %cst_195 {dimension_numbers = #tpu.dot_dimension_numbers<[1], [0], [0], [1], [0, 0, 1, 1], [], []>} : vector<8x128xbf16>, vector<128x128xbf16>, vector<8x128xf32> -> vector<8x128xf32>
    %367 = arith.addf %364, %366 : vector<8x128xf32>
    %368 = arith.negf %367 : vector<8x128xf32>
    %369 = math.exp %368 : vector<8x128xf32>
    %cst_196 = arith.constant 1.000000e+00 : f32
    %370 = vector.broadcast %cst_196 : f32 to vector<8x128xf32>
    %371 = arith.addf %370, %369 : vector<8x128xf32>
    %372 = arith.divf %370, %371 : vector<8x128xf32>
    %c0_197 = arith.constant 0 : index
    %c0_198 = arith.constant 0 : index
    %373 = vector.load %arg11[%c0_197, %c0_198] : memref<8x128xf32, #tpu.memory_space<vmem>>, vector<8x128xf32>
    %374 = arith.mulf %356, %373 : vector<8x128xf32>
    %375 = arith.mulf %346, %362 : vector<8x128xf32>
    %376 = arith.addf %374, %375 : vector<8x128xf32>
    %c0_199 = arith.constant 0 : index
    %c0_200 = arith.constant 0 : index
    %377 = vector.load %arg11[%c0_199, %c0_200] : memref<8x128xf32, #tpu.memory_space<vmem>>, vector<8x128xf32>
    tpu.vector_store %arg11[%c0_199, %c0_200], %376 {strides = array<i32>} : memref<8x128xf32, #tpu.memory_space<vmem>>, vector<8x128xf32>,
    %378 = math.tanh %376 : vector<8x128xf32>
    %379 = arith.mulf %372, %378 : vector<8x128xf32>
    %380 = arith.index_cast %333 : i32 to index
    %c0_201 = arith.constant 0 : index
    %381 = vector.load %arg10[%380, %c0_201] : memref<72x128xf32, #tpu.memory_space<vmem>>, vector<8x128xf32>
    tpu.vector_store %arg10[%380, %c0_201], %379 {strides = array<i32>} : memref<72x128xf32, #tpu.memory_space<vmem>>, vector<8x128xf32>,
    %c7_i32 = arith.constant 7 : i32
    %c8_i32_202 = arith.constant 8 : i32
    %382 = arith.muli %c7_i32, %c8_i32_202 : i32
    %383 = tpu.assume_multiple %382, 8 : i32
    %c1_i32_203 = arith.constant 1 : i32
    %384 = arith.addi %c7_i32, %c1_i32_203 : i32
    %c8_i32_204 = arith.constant 8 : i32
    %385 = arith.muli %384, %c8_i32_204 : i32
    %386 = tpu.assume_multiple %385, 8 : i32
    %387 = arith.index_cast %383 : i32 to index
    %c0_205 = arith.constant 0 : index
    %388 = vector.load %arg10[%387, %c0_205] : memref<72x128xf32, #tpu.memory_space<vmem>>, vector<8x128xf32>
    %389 = arith.truncf %388 : vector<8x128xf32> to vector<8x128xbf16>
    %390 = arith.index_cast %383 : i32 to index
    %c0_206 = arith.constant 0 : index
    %391 = vector.load %arg9[%390, %c0_206] : memref<64x512xf32, #tpu.memory_space<vmem>>, vector<8x128xf32>
    %c0_207 = arith.constant 0 : index
    %c0_208 = arith.constant 0 : index
    %392 = vector.load %arg4[%c0_207, %c0_208] : memref<128x512xbf16, #tpu.memory_space<vmem>>, vector<128x128xbf16>
    %cst_209 = arith.constant dense<0.000000e+00> : vector<8x128xf32>
    %393 = tpu.matmul %389, %392, %cst_209 {dimension_numbers = #tpu.dot_dimension_numbers<[1], [0], [0], [1], [0, 0, 1, 1], [], []>} : vector<8x128xbf16>, vector<128x128xbf16>, vector<8x128xf32> -> vector<8x128xf32>
    %394 = arith.addf %391, %393 : vector<8x128xf32>
    %395 = arith.negf %394 : vector<8x128xf32>
    %396 = math.exp %395 : vector<8x128xf32>
    %cst_210 = arith.constant 1.000000e+00 : f32
    %397 = vector.broadcast %cst_210 : f32 to vector<8x128xf32>
    %398 = arith.addf %397, %396 : vector<8x128xf32>
    %399 = arith.divf %397, %398 : vector<8x128xf32>
    %400 = arith.index_cast %383 : i32 to index
    %c128_211 = arith.constant 128 : index
    %401 = vector.load %arg9[%400, %c128_211] : memref<64x512xf32, #tpu.memory_space<vmem>>, vector<8x128xf32>
    %c0_212 = arith.constant 0 : index
    %c128_213 = arith.constant 128 : index
    %402 = vector.load %arg4[%c0_212, %c128_213] : memref<128x512xbf16, #tpu.memory_space<vmem>>, vector<128x128xbf16>
    %cst_214 = arith.constant dense<0.000000e+00> : vector<8x128xf32>
    %403 = tpu.matmul %389, %402, %cst_214 {dimension_numbers = #tpu.dot_dimension_numbers<[1], [0], [0], [1], [0, 0, 1, 1], [], []>} : vector<8x128xbf16>, vector<128x128xbf16>, vector<8x128xf32> -> vector<8x128xf32>
    %404 = arith.addf %401, %403 : vector<8x128xf32>
    %405 = arith.negf %404 : vector<8x128xf32>
    %406 = math.exp %405 : vector<8x128xf32>
    %cst_215 = arith.constant 1.000000e+00 : f32
    %407 = vector.broadcast %cst_215 : f32 to vector<8x128xf32>
    %408 = arith.addf %407, %406 : vector<8x128xf32>
    %409 = arith.divf %407, %408 : vector<8x128xf32>
    %410 = arith.index_cast %383 : i32 to index
    %c256_216 = arith.constant 256 : index
    %411 = vector.load %arg9[%410, %c256_216] : memref<64x512xf32, #tpu.memory_space<vmem>>, vector<8x128xf32>
    %c0_217 = arith.constant 0 : index
    %c256_218 = arith.constant 256 : index
    %412 = vector.load %arg4[%c0_217, %c256_218] : memref<128x512xbf16, #tpu.memory_space<vmem>>, vector<128x128xbf16>
    %cst_219 = arith.constant dense<0.000000e+00> : vector<8x128xf32>
    %413 = tpu.matmul %389, %412, %cst_219 {dimension_numbers = #tpu.dot_dimension_numbers<[1], [0], [0], [1], [0, 0, 1, 1], [], []>} : vector<8x128xbf16>, vector<128x128xbf16>, vector<8x128xf32> -> vector<8x128xf32>
    %414 = arith.addf %411, %413 : vector<8x128xf32>
    %415 = math.tanh %414 : vector<8x128xf32>
    %416 = arith.index_cast %383 : i32 to index
    %c384_220 = arith.constant 384 : index
    %417 = vector.load %arg9[%416, %c384_220] : memref<64x512xf32, #tpu.memory_space<vmem>>, vector<8x128xf32>
    %c0_221 = arith.constant 0 : index
    %c384_222 = arith.constant 384 : index
    %418 = vector.load %arg4[%c0_221, %c384_222] : memref<128x512xbf16, #tpu.memory_space<vmem>>, vector<128x128xbf16>
    %cst_223 = arith.constant dense<0.000000e+00> : vector<8x128xf32>
    %419 = tpu.matmul %389, %418, %cst_223 {dimension_numbers = #tpu.dot_dimension_numbers<[1], [0], [0], [1], [0, 0, 1, 1], [], []>} : vector<8x128xbf16>, vector<128x128xbf16>, vector<8x128xf32> -> vector<8x128xf32>
    %420 = arith.addf %417, %419 : vector<8x128xf32>
    %421 = arith.negf %420 : vector<8x128xf32>
    %422 = math.exp %421 : vector<8x128xf32>
    %cst_224 = arith.constant 1.000000e+00 : f32
    %423 = vector.broadcast %cst_224 : f32 to vector<8x128xf32>
    %424 = arith.addf %423, %422 : vector<8x128xf32>
    %425 = arith.divf %423, %424 : vector<8x128xf32>
    %c0_225 = arith.constant 0 : index
    %c0_226 = arith.constant 0 : index
    %426 = vector.load %arg11[%c0_225, %c0_226] : memref<8x128xf32, #tpu.memory_space<vmem>>, vector<8x128xf32>
    %427 = arith.mulf %409, %426 : vector<8x128xf32>
    %428 = arith.mulf %399, %415 : vector<8x128xf32>
    %429 = arith.addf %427, %428 : vector<8x128xf32>
    %c0_227 = arith.constant 0 : index
    %c0_228 = arith.constant 0 : index
    %430 = vector.load %arg11[%c0_227, %c0_228] : memref<8x128xf32, #tpu.memory_space<vmem>>, vector<8x128xf32>
    tpu.vector_store %arg11[%c0_227, %c0_228], %429 {strides = array<i32>} : memref<8x128xf32, #tpu.memory_space<vmem>>, vector<8x128xf32>,
    %431 = math.tanh %429 : vector<8x128xf32>
    %432 = arith.mulf %425, %431 : vector<8x128xf32>
    %433 = arith.index_cast %386 : i32 to index
    %c0_229 = arith.constant 0 : index
    %434 = vector.load %arg10[%433, %c0_229] : memref<72x128xf32, #tpu.memory_space<vmem>>, vector<8x128xf32>
    tpu.vector_store %arg10[%433, %c0_229], %432 {strides = array<i32>} : memref<72x128xf32, #tpu.memory_space<vmem>>, vector<8x128xf32>,
    %c8_i32_230 = arith.constant 8 : i32
    %c64 = arith.constant 64 : index
    %c0_231 = arith.constant 0 : index
    %435 = vector.load %arg10[%c64, %c0_231] : memref<72x128xf32, #tpu.memory_space<vmem>>, vector<8x128xf32>
    %c0_232 = arith.constant 0 : index
    %c0_233 = arith.constant 0 : index
    %436 = vector.load %arg10[%c0_232, %c0_233] : memref<72x128xf32, #tpu.memory_space<vmem>>, vector<8x128xf32>
    tpu.vector_store %arg10[%c0_232, %c0_233], %435 {strides = array<i32>} : memref<72x128xf32, #tpu.memory_space<vmem>>, vector<8x128xf32>,
    %c8 = arith.constant 8 : index
    %c0_234 = arith.constant 0 : index
    %437 = vector.load %arg10[%c8, %c0_234] : memref<72x128xf32, #tpu.memory_space<vmem>>, vector<64x128xf32>
    %438 = arith.truncf %437 : vector<64x128xf32> to vector<64x128xbf16>
    %c0_235 = arith.constant 0 : index
    %c0_236 = arith.constant 0 : index
    %439 = vector.load %arg6[%c0_235, %c0_236] : memref<128x128xbf16, #tpu.memory_space<vmem>>, vector<128x128xbf16>
    %cst_237 = arith.constant dense<0.000000e+00> : vector<64x128xf32>
    %440 = tpu.matmul %438, %439, %cst_237 {dimension_numbers = #tpu.dot_dimension_numbers<[1], [0], [0], [1], [0, 0, 1, 1], [], []>} : vector<64x128xbf16>, vector<128x128xbf16>, vector<64x128xf32> -> vector<64x128xf32>
    %c0_238 = arith.constant 0 : index
    %c0_239 = arith.constant 0 : index
    %441 = vector.load %arg7[%c0_238, %c0_239] : memref<1x128xf32, #tpu.memory_space<vmem>>, vector<1x128xf32>
    %442 = vector.broadcast %441 : vector<1x128xf32> to vector<64x128xf32>
    %443 = arith.addf %440, %442 : vector<64x128xf32>
    %c0_240 = arith.constant 0 : index
    %c0_241 = arith.constant 0 : index
    %c0_242 = arith.constant 0 : index
    %444 = vector.load %arg8[%c0_240, %c0_241, %c0_242] : memref<1x64x128xf32, #tpu.memory_space<vmem>>, vector<1x64x128xf32>
    %445 = vector.shape_cast %444 : vector<1x64x128xf32> to vector<64x128xf32>
    %446 = vector.shape_cast %443 : vector<64x128xf32> to vector<1x64x128xf32>
    tpu.vector_store %arg8[%c0_240, %c0_241, %c0_242], %446 {strides = array<i32>} : memref<1x64x128xf32, #tpu.memory_space<vmem>>, vector<1x64x128xf32>,
    return
  }
  func.func @transform_0(%arg0: i32, %arg1: i32) -> (i32, i32, i32) {
    %c0_i32 = arith.constant 0 : i32
    %c0_i32_0 = arith.constant 0 : i32
    return %arg0, %arg1, %c0_i32 : i32, i32, i32
  }
  func.func @transform_1(%arg0: i32, %arg1: i32) -> (i32, i32) {
    %c0_i32 = arith.constant 0 : i32
    %c0_i32_0 = arith.constant 0 : i32
    %c0_i32_1 = arith.constant 0 : i32
    return %c0_i32, %c0_i32_0 : i32, i32
  }
  func.func @transform_2(%arg0: i32, %arg1: i32) -> (i32, i32) {
    %c0_i32 = arith.constant 0 : i32
    %c0_i32_0 = arith.constant 0 : i32
    %c0_i32_1 = arith.constant 0 : i32
    return %c0_i32, %c0_i32_0 : i32, i32
  }
  func.func @transform_3(%arg0: i32, %arg1: i32) -> (i32, i32) {
    %c0_i32 = arith.constant 0 : i32
    %c0_i32_0 = arith.constant 0 : i32
    %c0_i32_1 = arith.constant 0 : i32
    return %c0_i32, %c0_i32_0 : i32, i32
  }
  func.func @transform_4(%arg0: i32, %arg1: i32) -> (i32, i32) {
    %c0_i32 = arith.constant 0 : i32
    %c0_i32_0 = arith.constant 0 : i32
    %c0_i32_1 = arith.constant 0 : i32
    return %c0_i32, %c0_i32_0 : i32, i32
  }
  func.func @transform_5(%arg0: i32, %arg1: i32) -> (i32, i32) {
    %c0_i32 = arith.constant 0 : i32
    %c0_i32_0 = arith.constant 0 : i32
    %c0_i32_1 = arith.constant 0 : i32
    return %c0_i32, %c0_i32_0 : i32, i32
  }
  func.func @transform_6(%arg0: i32, %arg1: i32) -> (i32, i32, i32) {
    %c0_i32 = arith.constant 0 : i32
    %c0_i32_0 = arith.constant 0 : i32
    return %arg0, %arg1, %c0_i32 : i32, i32, i32
  }
}

</mosaic_0001>

<llo_original>
// kernel: tpu_custom_call.1
$region0: #{tpu_custom_call.1}
  #allocation0 [shape = 'u32[]', space=smem, size = 0x4, offset = 0x4, fixed_abs, tag = 'smem constant byte address 0x4 - core index']
  #allocation1 [shape = 'u32[144,128]{1,0:T(1,128)}', space=vmem, size = 0x12000, scoped, tag = 'internal scratch']
  #allocation2 [shape = 'f32[64,512]{1,0:T(8,128)}', space=vmem, size = 0x20000, scoped, tag = 'scratch operand']
  #allocation3 [shape = 'f32[72,128]{1,0:T(8,128)}', space=vmem, size = 0x9000, scoped, tag = 'scratch operand']
  #allocation4 [shape = 'f32[8,128]{1,0:T(8,128)}', space=vmem, size = 0x1000, scoped, tag = 'scratch operand']
  %s0 = inlined_call_operand.hbm [shape: bf16[1,64,128], index: 0, kind: input, shape index: {}]
  %s1 = inlined_call_operand.hbm [shape: bf16[128,512], index: 1, kind: input, shape index: {}]
  %s2 = inlined_call_operand.hbm [shape: bf16[128,512], index: 2, kind: input, shape index: {}]
  %s3 = inlined_call_operand.vmem [shape: f32[1,512], index: 3, kind: input, shape index: {}]
  %s4 = inlined_call_operand.hbm [shape: bf16[128,128], index: 4, kind: input, shape index: {}]
  %s5 = inlined_call_operand.vmem [shape: f32[1,128], index: 5, kind: input, shape index: {}]
  %s6 = inlined_call_operand.hbm [shape: f32[1,64,128], index: 6, kind: output, shape index: {}]
  %s7 = sld [smem:[#allocation0]]
  $region54: #{tpu_custom_call.1} parent=0
    _
  %s9 = ssub.s32 1, %s7
  %s10 = scalar_select 0, %s9, %s7
  $region1: #{tpu_custom_call.1} parent=0
    #allocation5 [shape = 'u8[16384]{0}', space=vmem, size = 0x4000, scoped, tag = 'input window, operand 0, single buffered']
    #allocation6 [shape = 's32[1]{0}', space=sflag, size = 0x4, scoped, tag = 'scoped memory for tpu_custom_call.1']
    #allocation7 [shape = 's32[1]{0}', space=sflag, size = 0x4, scoped, tag = 'scoped memory for tpu_custom_call.1']
    #allocation8 [shape = 'u8[131072]{0}', space=vmem, size = 0x20000, scoped, tag = 'input window, operand 1, single buffered']
    #allocation9 [shape = 's32[1]{0}', space=sflag, size = 0x4, scoped, tag = 'scoped memory for tpu_custom_call.1']
    #allocation10 [shape = 'u8[131072]{0}', space=vmem, size = 0x20000, scoped, tag = 'input window, operand 2, single buffered']
    #allocation11 [shape = 'u8[32768]{0}', space=vmem, size = 0x8000, scoped, tag = 'input window, operand 4, single buffered']
    #allocation12 [shape = 's32[1]{0}', space=sflag, size = 0x4, scoped, tag = 'scoped memory for tpu_custom_call.1']
    #allocation13 [shape = 'u8[32768]{0}', space=vmem, size = 0x8000, scoped, tag = 'output window, operand 0, single buffered']
    %11 = vsyncpa [#allocation6], 0
    %12 = vsyncpa [#allocation9], 0
    %13 = vsyncpa [#allocation12], 0
    %14 = vsyncpa [#allocation7], 0
    // Predicated region
    $region2: #{tpu_custom_call.1} parent=1 // pred_check
      _
    $region3: #{tpu_custom_call.1} parent=1 // pred_check_branch
      %16 = sbr.rel (0) target = $region5
    $region4: #{tpu_custom_call.1} parent=1 // pred_region
      %s18 = ssub.s32 512, 512
      %19 = vsyncadd [#allocation6], %s18
      %s20 = sshll.u32 [#allocation5], 4
      %s21 = int_to_ptr.vmem [resolvable:$true] %s20
      %26 = dma.hbm_to_vmem [thread:$0]  %s0, 512, %s21, [#allocation6], 64, 64, 4
    $region5: #{tpu_custom_call.1} parent=1 // pred_fallthru
      _
    // Predicated region
    $region6: #{tpu_custom_call.1} parent=1 // pred_check
      _
    $region7: #{tpu_custom_call.1} parent=1 // pred_check_branch
      %28 = sbr.rel (0) target = $region9
    $region8: #{tpu_custom_call.1} parent=1 // pred_region
      %s30 = ssub.s32 4096, 4096
      %31 = vsyncadd [#allocation9], %s30
      %s32 = sshll.u32 [#allocation8], 4
      %s33 = int_to_ptr.vmem [resolvable:$true] %s32
      %38 = dma.hbm_to_vmem [thread:$0]  %s1, 4096, %s33, [#allocation9], 256, 256, 16
    $region9: #{tpu_custom_call.1} parent=1 // pred_fallthru
      _
    // Predicated region
    $region10: #{tpu_custom_call.1} parent=1 // pred_check
      _
    $region11: #{tpu_custom_call.1} parent=1 // pred_check_branch
      %40 = sbr.rel (0) target = $region13
    $region12: #{tpu_custom_call.1} parent=1 // pred_region
      %s42 = ssub.s32 4096, 4096
      %43 = vsyncadd [#allocation9], %s42
      %s44 = sshll.u32 [#allocation10], 4
      %s45 = int_to_ptr.vmem [resolvable:$true] %s44
      %50 = dma.hbm_to_vmem [thread:$0]  %s2, 4096, %s45, [#allocation9], 256, 256, 16
    $region13: #{tpu_custom_call.1} parent=1 // pred_fallthru
      _
    // Predicated region
    $region14: #{tpu_custom_call.1} parent=1 // pred_check
      _
    $region15: #{tpu_custom_call.1} parent=1 // pred_check_branch
      %52 = sbr.rel (0) target = $region17
    $region16: #{tpu_custom_call.1} parent=1 // pred_region
      _
    $region17: #{tpu_custom_call.1} parent=1 // pred_fallthru
      _
    // Predicated region
    $region18: #{tpu_custom_call.1} parent=1 // pred_check
      _
    $region19: #{tpu_custom_call.1} parent=1 // pred_check_branch
      %54 = sbr.rel (0) target = $region21
    $region20: #{tpu_custom_call.1} parent=1 // pred_region
      %s56 = ssub.s32 1024, 1024
      %57 = vsyncadd [#allocation12], %s56
      %s58 = sshll.u32 [#allocation11], 4
      %s59 = int_to_ptr.vmem [resolvable:$true] %s58
      %64 = dma.hbm_to_vmem [thread:$0]  %s4, 1024, %s59, [#allocation12], 64, 64, 4
    $region21: #{tpu_custom_call.1} parent=1 // pred_fallthru
      _
    // Predicated region
    $region22: #{tpu_custom_call.1} parent=1 // pred_check
      _
    $region23: #{tpu_custom_call.1} parent=1 // pred_check_branch
      %66 = sbr.rel (0) target = $region25
    $region24: #{tpu_custom_call.1} parent=1 // pred_region
      _
    $region25: #{tpu_custom_call.1} parent=1 // pred_fallthru
      _
    // Predicated region
    $region26: #{tpu_custom_call.1} parent=1 // pred_check
      _
    $region27: #{tpu_custom_call.1} parent=1 // pred_check_branch
      %68 = sbr.rel (0) target = $region29
    $region28: #{tpu_custom_call.1} parent=1 // pred_region
      %69 = dma.done [#allocation6], 512
    $region29: #{tpu_custom_call.1} parent=1 // pred_fallthru
      _
    // Predicated region
    $region30: #{tpu_custom_call.1} parent=1 // pred_check
      _
    $region31: #{tpu_custom_call.1} parent=1 // pred_check_branch
      %71 = sbr.rel (0) target = $region33
    $region32: #{tpu_custom_call.1} parent=1 // pred_region
      %72 = dma.done [#allocation9], 4096
    $region33: #{tpu_custom_call.1} parent=1 // pred_fallthru
      _
    // Predicated region
    $region34: #{tpu_custom_call.1} parent=1 // pred_check
      _
    $region35: #{tpu_custom_call.1} parent=1 // pred_check_branch
      %74 = sbr.rel (0) target = $region37
    $region36: #{tpu_custom_call.1} parent=1 // pred_region
      %75 = dma.done [#allocation9], 4096
    $region37: #{tpu_custom_call.1} parent=1 // pred_fallthru
      _
    // Predicated region
    $region38: #{tpu_custom_call.1} parent=1 // pred_check
      _
    $region39: #{tpu_custom_call.1} parent=1 // pred_check_branch
      %77 = sbr.rel (0) target = $region41
    $region40: #{tpu_custom_call.1} parent=1 // pred_region
      %78 = dma.done [#allocation12], 1024
    $region41: #{tpu_custom_call.1} parent=1 // pred_fallthru
      _
    %p80 = scmp.eq.s32.totalorder 0, 0
    // Predicated region
    $region42: #{tpu_custom_call.1} parent=1 // pred_check
      %p81 = pneg %p80
    $region43: #{tpu_custom_call.1} parent=1 // pred_check_branch
      %83 = sbr.rel (%p81) target = $region45
    $region44: #{tpu_custom_call.1} parent=1 // pred_region
      %84 = vst [vmem:[#allocation3] sm:$0xff] 0.0
      %85 = vst [vmem:[#allocation4] sm:$0xff] 0.0
    $region45: #{tpu_custom_call.1} parent=1 // pred_fallthru
      _
    %v86 = vld [vmem:[#allocation5] sm:$0xf]
    %v87 = vld [vmem:[#allocation5 + $0x4] sm:$0xf]
    %v88 = vld [vmem:[#allocation5 + $0x8] sm:$0xf]
    %v89 = vld [vmem:[#allocation5 + $0xc] sm:$0xf]
    %v90 = vld [vmem:[#allocation5 + $0x10] sm:$0xf]
    %v91 = vld [vmem:[#allocation5 + $0x14] sm:$0xf]
    %v92 = vld [vmem:[#allocation5 + $0x18] sm:$0xf]
    %v93 = vld [vmem:[#allocation5 + $0x1c] sm:$0xf]
    %v94 = vld [vmem:[#allocation8] sm:$0xff]
    %v95 = vld [vmem:[#allocation8 + $0x8] sm:$0xff]
    %v96 = vld [vmem:[#allocation8 + $0x10] sm:$0xff]
    %v97 = vld [vmem:[#allocation8 + $0x18] sm:$0xff]
    %v98 = vld [vmem:[#allocation8 + $0x20] sm:$0xff]
    %v99 = vld [vmem:[#allocation8 + $0x28] sm:$0xff]
    %v100 = vld [vmem:[#allocation8 + $0x30] sm:$0xff]
    %v101 = vld [vmem:[#allocation8 + $0x38] sm:$0xff]
    %v102 = vld [vmem:[#allocation8 + $0x40] sm:$0xff]
    %v103 = vld [vmem:[#allocation8 + $0x48] sm:$0xff]
    %v104 = vld [vmem:[#allocation8 + $0x50] sm:$0xff]
    %v105 = vld [vmem:[#allocation8 + $0x58] sm:$0xff]
    %v106 = vld [vmem:[#allocation8 + $0x60] sm:$0xff]
    %v107 = vld [vmem:[#allocation8 + $0x68] sm:$0xff]
    %v108 = vld [vmem:[#allocation8 + $0x70] sm:$0xff]
    %v109 = vld [vmem:[#allocation8 + $0x78] sm:$0xff]
    %v110 = vld [vmem:[#allocation8 + $0x80] sm:$0xff]
    %v111 = vld [vmem:[#allocation8 + $0x88] sm:$0xff]
    %v112 = vld [vmem:[#allocation8 + $0x90] sm:$0xff]
    %v113 = vld [vmem:[#allocation8 + $0x98] sm:$0xff]
    %v114 = vld [vmem:[#allocation8 + $0xa0] sm:$0xff]
    %v115 = vld [vmem:[#allocation8 + $0xa8] sm:$0xff]
    %v116 = vld [vmem:[#allocation8 + $0xb0] sm:$0xff]
    %v117 = vld [vmem:[#allocation8 + $0xb8] sm:$0xff]
    %v118 = vld [vmem:[#allocation8 + $0xc0] sm:$0xff]
    %v119 = vld [vmem:[#allocation8 + $0xc8] sm:$0xff]
    %v120 = vld [vmem:[#allocation8 + $0xd0] sm:$0xff]
    %v121 = vld [vmem:[#allocation8 + $0xd8] sm:$0xff]
    %v122 = vld [vmem:[#allocation8 + $0xe0] sm:$0xff]
    %v123 = vld [vmem:[#allocation8 + $0xe8] sm:$0xff]
    %v124 = vld [vmem:[#allocation8 + $0xf0] sm:$0xff]
    %v125 = vld [vmem:[#allocation8 + $0xf8] sm:$0xff]
    %v126 = vld [vmem:[%s3] sm:$0xf]
    %v128 = vlaneseq
    %v129 = vshrl.u32 %v128, 7
    %v130 = vsub.s32 0, %v129
    %v131 = vrot.slane %v126, %v130
    %v132 = vlaneseq
    %v133 = vshrl.u32 %v132, 7
    %v134 = vsub.s32 1, %v133
    %v135 = vrot.slane %v126, %v134
    %v136 = vlaneseq
    %v137 = vshrl.u32 %v136, 7
    %v138 = vsub.s32 2, %v137
    %v139 = vrot.slane %v126, %v138
    %v140 = vlaneseq
    %v141 = vshrl.u32 %v140, 7
    %v142 = vsub.s32 3, %v141
    %v143 = vrot.slane %v126, %v142
    %v156 = vunpack.c.l.b16 %v86
    %v157 = vunpack.c.l.b16 %v87
    %v158 = vunpack.c.l.b16 %v88
    %v159 = vunpack.c.l.b16 %v89
    %v160 = vunpack.c.l.b16 %v90
    %v161 = vunpack.c.l.b16 %v91
    %v162 = vunpack.c.l.b16 %v92
    %v163 = vunpack.c.l.b16 %v93
    %v164 = vpack.c.b16 %v157, %v156
    %v165 = vpack.c.b16 %v159, %v158
    %v166 = vpack.c.b16 %v161, %v160
    %v167 = vpack.c.b16 %v163, %v162
    %v204 = vunpack.c.l.b16 %v94
    %v205 = vunpack.c.h.b16 %v94
    %v206 = vunpack.c.l.b16 %v95
    %v207 = vunpack.c.h.b16 %v95
    %v208 = vunpack.c.l.b16 %v96
    %v209 = vunpack.c.h.b16 %v96
    %v210 = vunpack.c.l.b16 %v97
    %v211 = vunpack.c.h.b16 %v97
    %v212 = vunpack.c.l.b16 %v98
    %v213 = vunpack.c.h.b16 %v98
    %v214 = vunpack.c.l.b16 %v99
    %v215 = vunpack.c.h.b16 %v99
    %v216 = vunpack.c.l.b16 %v100
    %v217 = vunpack.c.h.b16 %v100
    %v218 = vunpack.c.l.b16 %v101
    %v219 = vunpack.c.h.b16 %v101
    %v220 = vunpack.c.l.b16 %v102
    %v221 = vunpack.c.h.b16 %v102
    %v222 = vunpack.c.l.b16 %v103
    %v223 = vunpack.c.h.b16 %v103
    %v224 = vunpack.c.l.b16 %v104
    %v225 = vunpack.c.h.b16 %v104
    %v226 = vunpack.c.l.b16 %v105
    %v227 = vunpack.c.h.b16 %v105
    %v228 = vunpack.c.l.b16 %v106
    %v229 = vunpack.c.h.b16 %v106
    %v230 = vunpack.c.l.b16 %v107
    %v231 = vunpack.c.h.b16 %v107
    %v232 = vunpack.c.l.b16 %v108
    %v233 = vunpack.c.h.b16 %v108
    %v234 = vunpack.c.l.b16 %v109
    %v235 = vunpack.c.h.b16 %v109
    %v236 = vunpack.c.l.b16 %v110
    %v237 = vunpack.c.h.b16 %v110
    %v238 = vunpack.c.l.b16 %v111
    %v239 = vunpack.c.h.b16 %v111
    %v240 = vunpack.c.l.b16 %v112
    %v241 = vunpack.c.h.b16 %v112
    %v242 = vunpack.c.l.b16 %v113
    %v243 = vunpack.c.h.b16 %v113
    %v244 = vunpack.c.l.b16 %v114
    %v245 = vunpack.c.h.b16 %v114
    %v246 = vunpack.c.l.b16 %v115
    %v247 = vunpack.c.h.b16 %v115
    %v248 = vunpack.c.l.b16 %v116
    %v249 = vunpack.c.h.b16 %v116
    %v250 = vunpack.c.l.b16 %v117
    %v251 = vunpack.c.h.b16 %v117
    %v252 = vunpack.c.l.b16 %v118
    %v253 = vunpack.c.h.b16 %v118
    %v254 = vunpack.c.l.b16 %v119
    %v255 = vunpack.c.h.b16 %v119
    %v256 = vunpack.c.l.b16 %v120
    %v257 = vunpack.c.h.b16 %v120
    %v258 = vunpack.c.l.b16 %v121
    %v259 = vunpack.c.h.b16 %v121
    %v260 = vunpack.c.l.b16 %v122
    %v261 = vunpack.c.h.b16 %v122
    %v262 = vunpack.c.l.b16 %v123
    %v263 = vunpack.c.h.b16 %v123
    %v264 = vunpack.c.l.b16 %v124
    %v265 = vunpack.c.h.b16 %v124
    %v266 = vunpack.c.l.b16 %v125
    %v267 = vunpack.c.h.b16 %v125
    %v268 = vpack.c.b16 %v208, %v204
    %v269 = vpack.c.b16 %v209, %v205
    %v270 = vpack.c.b16 %v210, %v206
    %v271 = vpack.c.b16 %v211, %v207
    %v272 = vpack.c.b16 %v216, %v212
    %v273 = vpack.c.b16 %v217, %v213
    %v274 = vpack.c.b16 %v218, %v214
    %v275 = vpack.c.b16 %v219, %v215
    %v276 = vpack.c.b16 %v224, %v220
    %v277 = vpack.c.b16 %v225, %v221
    %v278 = vpack.c.b16 %v226, %v222
    %v279 = vpack.c.b16 %v227, %v223
    %v280 = vpack.c.b16 %v232, %v228
    %v281 = vpack.c.b16 %v233, %v229
    %v282 = vpack.c.b16 %v234, %v230
    %v283 = vpack.c.b16 %v235, %v231
    %v284 = vpack.c.b16 %v240, %v236
    %v285 = vpack.c.b16 %v241, %v237
    %v286 = vpack.c.b16 %v242, %v238
    %v287 = vpack.c.b16 %v243, %v239
    %v288 = vpack.c.b16 %v248, %v244
    %v289 = vpack.c.b16 %v249, %v245
    %v290 = vpack.c.b16 %v250, %v246
    %v291 = vpack.c.b16 %v251, %v247
    %v292 = vpack.c.b16 %v256, %v252
    %v293 = vpack.c.b16 %v257, %v253
    %v294 = vpack.c.b16 %v258, %v254
    %v295 = vpack.c.b16 %v259, %v255
    %v296 = vpack.c.b16 %v264, %v260
    %v297 = vpack.c.b16 %v265, %v261
    %v298 = vpack.c.b16 %v266, %v262
    %v299 = vpack.c.b16 %v267, %v263
    %332 = vmatprep.subr.bf16.mxu0 %v269
    %333 = vmatpush1.bf16.msra.mxu0 %v268
    %334 = vmatprep.subr.bf16.mxu0 %v273
    %335 = vmatpush1.bf16.msra.mxu0 %v272
    %336 = vmatprep.subr.bf16.mxu0 %v277
    %337 = vmatpush1.bf16.msra.mxu0 %v276
    %338 = vmatprep.subr.bf16.mxu0 %v281
    %339 = vmatpush1.bf16.msra.mxu0 %v280
    %340 = vmatprep.subr.bf16.mxu0 %v285
    %341 = vmatpush1.bf16.msra.mxu0 %v284
    %342 = vmatprep.subr.bf16.mxu0 %v289
    %343 = vmatpush1.bf16.msra.mxu0 %v288
    %344 = vmatprep.subr.bf16.mxu0 %v293
    %345 = vmatpush1.bf16.msra.mxu0 %v292
    %346 = vmatprep.subr.bf16.mxu0 %v297
    %347 = vmatpush1.bf16.msra.mxu0 %v296
    %348 = vmatprep.subr.bf16.mxu0 0
    %349 = vmatpush1.bf16.msra.mxu0 0
    %350 = vmatprep.subr.bf16.mxu0 0
    %351 = vmatpush1.bf16.msra.mxu0 0
    %352 = vmatprep.subr.bf16.mxu0 0
    %353 = vmatpush1.bf16.msra.mxu0 0
    %354 = vmatprep.subr.bf16.mxu0 0
    %355 = vmatpush1.bf16.msra.mxu0 0
    %356 = vmatprep.subr.bf16.mxu0 0
    %357 = vmatpush1.bf16.msra.mxu0 0
    %358 = vmatprep.subr.bf16.mxu0 0
    %359 = vmatpush1.bf16.msra.mxu0 0
    %360 = vmatprep.subr.bf16.mxu0 0
    %361 = vmatpush1.bf16.msra.mxu0 0
    %362 = vmatprep.subr.bf16.mxu0 0
    %363 = vmatpush1.bf16.msra.mxu0 0
    %364 = vmatprep.mubr.bf16.mxu0 0
    %365 = vmatmul.mubr.bf16.gmra.mrb[0].mxu0 %v164
    %v366 = vpop.f32.mrb[0].mxu0
    %v367 = vadd.f32 %v131, %v366
    %v368 = vpop.f32.mrb[0].mxu0
    %v369 = vadd.f32 %v135, %v368
    %v370 = vpop.f32.mrb[0].mxu0
    %v371 = vadd.f32 %v131, %v370
    %v372 = vpop.f32.mrb[0].mxu0
    %v373 = vadd.f32 %v135, %v372
    %374 = vmatprep.mubr.bf16.mxu0 0
    %375 = vmatmul.mubr.bf16.gmra.mrb[0].mxu0 %v165
    %v376 = vpop.f32.mrb[0].mxu0
    %v377 = vadd.f32 %v131, %v376
    %v378 = vpop.f32.mrb[0].mxu0
    %v379 = vadd.f32 %v135, %v378
    %v380 = vpop.f32.mrb[0].mxu0
    %v381 = vadd.f32 %v131, %v380
    %v382 = vpop.f32.mrb[0].mxu0
    %v383 = vadd.f32 %v135, %v382
    %384 = vmatprep.mubr.bf16.mxu0 0
    %385 = vmatmul.mubr.bf16.gmra.mrb[0].mxu0 %v166
    %v386 = vpop.f32.mrb[0].mxu0
    %v387 = vadd.f32 %v131, %v386
    %v388 = vpop.f32.mrb[0].mxu0
    %v389 = vadd.f32 %v135, %v388
    %v390 = vpop.f32.mrb[0].mxu0
    %v391 = vadd.f32 %v131, %v390
    %v392 = vpop.f32.mrb[0].mxu0
    %v393 = vadd.f32 %v135, %v392
    %394 = vmatprep.mubr.bf16.mxu0 0
    %395 = vmatmul.mubr.bf16.gmra.mrb[0].mxu0 %v167
    %v396 = vpop.f32.mrb[0].mxu0
    %v397 = vadd.f32 %v131, %v396
    %v398 = vpop.f32.mrb[0].mxu0
    %v399 = vadd.f32 %v135, %v398
    %v400 = vpop.f32.mrb[0].mxu0
    %v401 = vadd.f32 %v131, %v400
    %v402 = vpop.f32.mrb[0].mxu0
    %v403 = vadd.f32 %v135, %v402
    %404 = vdwg.mxu0
    %405 = vmatprep.subr.bf16.mxu0 %v271
    %406 = vmatpush1.bf16.msra.mxu0 %v270
    %407 = vmatprep.subr.bf16.mxu0 %v275
    %408 = vmatpush1.bf16.msra.mxu0 %v274
    %409 = vmatprep.subr.bf16.mxu0 %v279
    %410 = vmatpush1.bf16.msra.mxu0 %v278
    %411 = vmatprep.subr.bf16.mxu0 %v283
    %412 = vmatpush1.bf16.msra.mxu0 %v282
    %413 = vmatprep.subr.bf16.mxu0 %v287
    %414 = vmatpush1.bf16.msra.mxu0 %v286
    %415 = vmatprep.subr.bf16.mxu0 %v291
    %416 = vmatpush1.bf16.msra.mxu0 %v290
    %417 = vmatprep.subr.bf16.mxu0 %v295
    %418 = vmatpush1.bf16.msra.mxu0 %v294
    %419 = vmatprep.subr.bf16.mxu0 %v299
    %420 = vmatpush1.bf16.msra.mxu0 %v298
    %421 = vmatprep.subr.bf16.mxu0 0
    %422 = vmatpush1.bf16.msra.mxu0 0
    %423 = vmatprep.subr.bf16.mxu0 0
    %424 = vmatpush1.bf16.msra.mxu0 0
    %425 = vmatprep.subr.bf16.mxu0 0
    %426 = vmatpush1.bf16.msra.mxu0 0
    %427 = vmatprep.subr.bf16.mxu0 0
    %428 = vmatpush1.bf16.msra.mxu0 0
    %429 = vmatprep.subr.bf16.mxu0 0
    %430 = vmatpush1.bf16.msra.mxu0 0
    %431 = vmatprep.subr.bf16.mxu0 0
    %432 = vmatpush1.bf16.msra.mxu0 0
    %433 = vmatprep.subr.bf16.mxu0 0
    %434 = vmatpush1.bf16.msra.mxu0 0
    %435 = vmatprep.subr.bf16.mxu0 0
    %436 = vmatpush1.bf16.msra.mxu0 0
    %437 = vmatprep.mubr.bf16.mxu0 0
    %438 = vmatmul.mubr.bf16.gmra.mrb[0].mxu0 %v164
    %v439 = vpop.f32.mrb[0].mxu0
    %v440 = vadd.f32 %v139, %v439
    %v441 = vpop.f32.mrb[0].mxu0
    %v442 = vadd.f32 %v143, %v441
    %v443 = vpop.f32.mrb[0].mxu0
    %v444 = vadd.f32 %v139, %v443
    %v445 = vpop.f32.mrb[0].mxu0
    %v446 = vadd.f32 %v143, %v445
    %447 = vmatprep.mubr.bf16.mxu0 0
    %448 = vmatmul.mubr.bf16.gmra.mrb[0].mxu0 %v165
    %v449 = vpop.f32.mrb[0].mxu0
    %v450 = vadd.f32 %v139, %v449
    %v451 = vpop.f32.mrb[0].mxu0
    %v452 = vadd.f32 %v143, %v451
    %v453 = vpop.f32.mrb[0].mxu0
    %v454 = vadd.f32 %v139, %v453
    %v455 = vpop.f32.mrb[0].mxu0
    %v456 = vadd.f32 %v143, %v455
    %457 = vmatprep.mubr.bf16.mxu0 0
    %458 = vmatmul.mubr.bf16.gmra.mrb[0].mxu0 %v166
    %v459 = vpop.f32.mrb[0].mxu0
    %v460 = vadd.f32 %v139, %v459
    %v461 = vpop.f32.mrb[0].mxu0
    %v462 = vadd.f32 %v143, %v461
    %v463 = vpop.f32.mrb[0].mxu0
    %v464 = vadd.f32 %v139, %v463
    %v465 = vpop.f32.mrb[0].mxu0
    %v466 = vadd.f32 %v143, %v465
    %467 = vmatprep.mubr.bf16.mxu0 0
    %468 = vmatmul.mubr.bf16.gmra.mrb[0].mxu0 %v167
    %v469 = vpop.f32.mrb[0].mxu0
    %v470 = vadd.f32 %v139, %v469
    %v471 = vpop.f32.mrb[0].mxu0
    %v472 = vadd.f32 %v143, %v471
    %v473 = vpop.f32.mrb[0].mxu0
    %v474 = vadd.f32 %v139, %v473
    %v475 = vpop.f32.mrb[0].mxu0
    %v476 = vadd.f32 %v143, %v475
    %477 = vdwg.mxu0
    %478 = vst [vmem:[#allocation2] sm:$0xff] %v367
    %479 = vst [vmem:[#allocation2 + $0x8] sm:$0xff] %v369
    %480 = vst [vmem:[#allocation2 + $0x10] sm:$0xff] %v440
    %481 = vst [vmem:[#allocation2 + $0x18] sm:$0xff] %v442
    %482 = vst [vmem:[#allocation2 + $0x20] sm:$0xff] %v371
    %483 = vst [vmem:[#allocation2 + $0x28] sm:$0xff] %v373
    %484 = vst [vmem:[#allocation2 + $0x30] sm:$0xff] %v444
    %485 = vst [vmem:[#allocation2 + $0x38] sm:$0xff] %v446
    %486 = vst [vmem:[#allocation2 + $0x40] sm:$0xff] %v377
    %487 = vst [vmem:[#allocation2 + $0x48] sm:$0xff] %v379
    %488 = vst [vmem:[#allocation2 + $0x50] sm:$0xff] %v450
    %489 = vst [vmem:[#allocation2 + $0x58] sm:$0xff] %v452
    %490 = vst [vmem:[#allocation2 + $0x60] sm:$0xff] %v381
    %491 = vst [vmem:[#allocation2 + $0x68] sm:$0xff] %v383
    %492 = vst [vmem:[#allocation2 + $0x70] sm:$0xff] %v454
    %493 = vst [vmem:[#allocation2 + $0x78] sm:$0xff] %v456
    %494 = vst [vmem:[#allocation2 + $0x80] sm:$0xff] %v387
    %495 = vst [vmem:[#allocation2 + $0x88] sm:$0xff] %v389
    %496 = vst [vmem:[#allocation2 + $0x90] sm:$0xff] %v460
    %497 = vst [vmem:[#allocation2 + $0x98] sm:$0xff] %v462
    %498 = vst [vmem:[#allocation2 + $0xa0] sm:$0xff] %v391
    %499 = vst [vmem:[#allocation2 + $0xa8] sm:$0xff] %v393
    %500 = vst [vmem:[#allocation2 + $0xb0] sm:$0xff] %v464
    %501 = vst [vmem:[#allocation2 + $0xb8] sm:$0xff] %v466
    %502 = vst [vmem:[#allocation2 + $0xc0] sm:$0xff] %v397
    %503 = vst [vmem:[#allocation2 + $0xc8] sm:$0xff] %v399
    %504 = vst [vmem:[#allocation2 + $0xd0] sm:$0xff] %v470
    %505 = vst [vmem:[#allocation2 + $0xd8] sm:$0xff] %v472
    %506 = vst [vmem:[#allocation2 + $0xe0] sm:$0xff] %v401
    %507 = vst [vmem:[#allocation2 + $0xe8] sm:$0xff] %v403
    %508 = vst [vmem:[#allocation2 + $0xf0] sm:$0xff] %v474
    %509 = vst [vmem:[#allocation2 + $0xf8] sm:$0xff] %v476
    %v510 = vld [vmem:[#allocation3] sm:$0xff]
    %v511 = vpack.c.bf16 %v510, %v510
    %s512 = smul.u32 0, 4
    %s513 = smul.addr %s512, 8
    %s514 = scalar_lea.vmem [#allocation2], %s513
    %v515 = vld [vmem:[%s514] sm:$0xff]
    %v516 = vld [vmem:[#allocation10] sm:$0xf]
    %v517 = vld [vmem:[#allocation10 + $0x10] sm:$0xf]
    %v518 = vld [vmem:[#allocation10 + $0x20] sm:$0xf]
    %v519 = vld [vmem:[#allocation10 + $0x30] sm:$0xf]
    %v520 = vld [vmem:[#allocation10 + $0x40] sm:$0xf]
    %v521 = vld [vmem:[#allocation10 + $0x50] sm:$0xf]
    %v522 = vld [vmem:[#allocation10 + $0x60] sm:$0xf]
    %v523 = vld [vmem:[#allocation10 + $0x70] sm:$0xf]
    %v524 = vld [vmem:[#allocation10 + $0x80] sm:$0xf]
    %v525 = vld [vmem:[#allocation10 + $0x90] sm:$0xf]
    %v526 = vld [vmem:[#allocation10 + $0xa0] sm:$0xf]
    %v527 = vld [vmem:[#allocation10 + $0xb0] sm:$0xf]
    %v528 = vld [vmem:[#allocation10 + $0xc0] sm:$0xf]
    %v529 = vld [vmem:[#allocation10 + $0xd0] sm:$0xf]
    %v530 = vld [vmem:[#allocation10 + $0xe0] sm:$0xf]
    %v531 = vld [vmem:[#allocation10 + $0xf0] sm:$0xf]
    %v548 = vunpack.c.l.b16 %v516
    %v549 = vunpack.c.l.b16 %v517
    %v550 = vunpack.c.l.b16 %v518
    %v551 = vunpack.c.l.b16 %v519
    %v552 = vunpack.c.l.b16 %v520
    %v553 = vunpack.c.l.b16 %v521
    %v554 = vunpack.c.l.b16 %v522
    %v555 = vunpack.c.l.b16 %v523
    %v556 = vunpack.c.l.b16 %v524
    %v557 = vunpack.c.l.b16 %v525
    %v558 = vunpack.c.l.b16 %v526
    %v559 = vunpack.c.l.b16 %v527
    %v560 = vunpack.c.l.b16 %v528
    %v561 = vunpack.c.l.b16 %v529
    %v562 = vunpack.c.l.b16 %v530
    %v563 = vunpack.c.l.b16 %v531
    %v564 = vpack.c.b16 %v549, %v548
    %v565 = vpack.c.b16 %v551, %v550
    %v566 = vpack.c.b16 %v553, %v552
    %v567 = vpack.c.b16 %v555, %v554
    %v568 = vpack.c.b16 %v557, %v556
    %v569 = vpack.c.b16 %v559, %v558
    %v570 = vpack.c.b16 %v561, %v560
    %v571 = vpack.c.b16 %v563, %v562
    %580 = vmatprep.subr.bf16.mxu0 0
    %581 = vmatpush1.bf16.msra.mxu0 %v564
    %582 = vmatprep.subr.bf16.mxu0 0
    %583 = vmatpush1.bf16.msra.mxu0 %v565
    %584 = vmatprep.subr.bf16.mxu0 0
    %585 = vmatpush1.bf16.msra.mxu0 %v566
    %586 = vmatprep.subr.bf16.mxu0 0
    %587 = vmatpush1.bf16.msra.mxu0 %v567
    %588 = vmatprep.subr.bf16.mxu0 0
    %589 = vmatpush1.bf16.msra.mxu0 %v568
    %590 = vmatprep.subr.bf16.mxu0 0
    %591 = vmatpush1.bf16.msra.mxu0 %v569
    %592 = vmatprep.subr.bf16.mxu0 0
    %593 = vmatpush1.bf16.msra.mxu0 %v570
    %594 = vmatprep.subr.bf16.mxu0 0
    %595 = vmatpush1.bf16.msra.mxu0 %v571
    %596 = vmatprep.subr.bf16.mxu0 0
    %597 = vmatpush1.bf16.msra.mxu0 0
    %598 = vmatprep.subr.bf16.mxu0 0
    %599 = vmatpush1.bf16.msra.mxu0 0
    %600 = vmatprep.subr.bf16.mxu0 0
    %601 = vmatpush1.bf16.msra.mxu0 0
    %602 = vmatprep.subr.bf16.mxu0 0
    %603 = vmatpush1.bf16.msra.mxu0 0
    %604 = vmatprep.subr.bf16.mxu0 0
    %605 = vmatpush1.bf16.msra.mxu0 0
    %606 = vmatprep.subr.bf16.mxu0 0
    %607 = vmatpush1.bf16.msra.mxu0 0
    %608 = vmatprep.subr.bf16.mxu0 0
    %609 = vmatpush1.bf16.msra.mxu0 0
    %610 = vmatprep.subr.bf16.mxu0 0
    %611 = vmatpush1.bf16.msra.mxu0 0
    %612 = vmatprep.mubr.bf16.mxu0 0
    %613 = vmatmul.mubr.bf16.gmra.mrb[0].mxu0 %v511
    %v614 = vpop.f32.mrb[0].mxu0
    %v615 = vadd.f32 0.0, %v614
    %v616 = vpop.f32.mrb[0].mxu0
    %v617 = vpop.f32.mrb[0].mxu0
    %v618 = vpop.f32.mrb[0].mxu0
    %619 = vdwg.mxu0
    %v620 = vadd.f32 %v515, %v615
    %v621 = vxor.u32 %v620, 2147483648
    %v622 = vmul.f32 %v621, 1.442695
    %v623 = vpow.pop %v622
    %v624 = vadd.f32 %v623, 1.0
    %v625 = vrcp.pop %v624
    %v626 = vmul.f32 1.0, %v625
    %v627 = vld [vmem:[%s514 + $0x8] sm:$0xff]
    %v628 = vld [vmem:[#allocation10 + $0x4] sm:$0xf]
    %v629 = vld [vmem:[#allocation10 + $0x14] sm:$0xf]
    %v630 = vld [vmem:[#allocation10 + $0x24] sm:$0xf]
    %v631 = vld [vmem:[#allocation10 + $0x34] sm:$0xf]
    %v632 = vld [vmem:[#allocation10 + $0x44] sm:$0xf]
    %v633 = vld [vmem:[#allocation10 + $0x54] sm:$0xf]
    %v634 = vld [vmem:[#allocation10 + $0x64] sm:$0xf]
    %v635 = vld [vmem:[#allocation10 + $0x74] sm:$0xf]
    %v636 = vld [vmem:[#allocation10 + $0x84] sm:$0xf]
    %v637 = vld [vmem:[#allocation10 + $0x94] sm:$0xf]
    %v638 = vld [vmem:[#allocation10 + $0xa4] sm:$0xf]
    %v639 = vld [vmem:[#allocation10 + $0xb4] sm:$0xf]
    %v640 = vld [vmem:[#allocation10 + $0xc4] sm:$0xf]
    %v641 = vld [vmem:[#allocation10 + $0xd4] sm:$0xf]
    %v642 = vld [vmem:[#allocation10 + $0xe4] sm:$0xf]
    %v643 = vld [vmem:[#allocation10 + $0xf4] sm:$0xf]
    %v660 = vunpack.c.l.b16 %v628
    %v661 = vunpack.c.l.b16 %v629
    %v662 = vunpack.c.l.b16 %v630
    %v663 = vunpack.c.l.b16 %v631
    %v664 = vunpack.c.l.b16 %v632
    %v665 = vunpack.c.l.b16 %v633
    %v666 = vunpack.c.l.b16 %v634
    %v667 = vunpack.c.l.b16 %v635
    %v668 = vunpack.c.l.b16 %v636
    %v669 = vunpack.c.l.b16 %v637
    %v670 = vunpack.c.l.b16 %v638
    %v671 = vunpack.c.l.b16 %v639
    %v672 = vunpack.c.l.b16 %v640
    %v673 = vunpack.c.l.b16 %v641
    %v674 = vunpack.c.l.b16 %v642
    %v675 = vunpack.c.l.b16 %v643
    %v676 = vpack.c.b16 %v661, %v660
    %v677 = vpack.c.b16 %v663, %v662
    %v678 = vpack.c.b16 %v665, %v664
    %v679 = vpack.c.b16 %v667, %v666
    %v680 = vpack.c.b16 %v669, %v668
    %v681 = vpack.c.b16 %v671, %v670
    %v682 = vpack.c.b16 %v673, %v672
    %v683 = vpack.c.b16 %v675, %v674
    %692 = vmatprep.subr.bf16.mxu0 0
    %693 = vmatpush1.bf16.msra.mxu0 %v676
    %694 = vmatprep.subr.bf16.mxu0 0
    %695 = vmatpush1.bf16.msra.mxu0 %v677
    %696 = vmatprep.subr.bf16.mxu0 0
    %697 = vmatpush1.bf16.msra.mxu0 %v678
    %698 = vmatprep.subr.bf16.mxu0 0
    %699 = vmatpush1.bf16.msra.mxu0 %v679
    %700 = vmatprep.subr.bf16.mxu0 0
    %701 = vmatpush1.bf16.msra.mxu0 %v680
    %702 = vmatprep.subr.bf16.mxu0 0
    %703 = vmatpush1.bf16.msra.mxu0 %v681
    %704 = vmatprep.subr.bf16.mxu0 0
    %705 = vmatpush1.bf16.msra.mxu0 %v682
    %706 = vmatprep.subr.bf16.mxu0 0
    %707 = vmatpush1.bf16.msra.mxu0 %v683
    %708 = vmatprep.subr.bf16.mxu0 0
    %709 = vmatpush1.bf16.msra.mxu0 0
    %710 = vmatprep.subr.bf16.mxu0 0
    %711 = vmatpush1.bf16.msra.mxu0 0
    %712 = vmatprep.subr.bf16.mxu0 0
    %713 = vmatpush1.bf16.msra.mxu0 0
    %714 = vmatprep.subr.bf16.mxu0 0
    %715 = vmatpush1.bf16.msra.mxu0 0
    %716 = vmatprep.subr.bf16.mxu0 0
    %717 = vmatpush1.bf16.msra.mxu0 0
    %718 = vmatprep.subr.bf16.mxu0 0
    %719 = vmatpush1.bf16.msra.mxu0 0
    %720 = vmatprep.subr.bf16.mxu0 0
    %721 = vmatpush1.bf16.msra.mxu0 0
    %722 = vmatprep.subr.bf16.mxu0 0
    %723 = vmatpush1.bf16.msra.mxu0 0
    %724 = vmatprep.mubr.bf16.mxu0 0
    %725 = vmatmul.mubr.bf16.gmra.mrb[0].mxu0 %v511
    %v726 = vpop.f32.mrb[0].mxu0
    %v727 = vadd.f32 0.0, %v726
    %v728 = vpop.f32.mrb[0].mxu0
    %v729 = vpop.f32.mrb[0].mxu0
    %v730 = vpop.f32.mrb[0].mxu0
    %731 = vdwg.mxu0
    %v732 = vadd.f32 %v627, %v727
    %v733 = vxor.u32 %v732, 2147483648
    %v734 = vmul.f32 %v733, 1.442695
    %v735 = vpow.pop %v734
    %v736 = vadd.f32 %v735, 1.0
    %v737 = vrcp.pop %v736
    %v738 = vmul.f32 1.0, %v737
    %v739 = vld [vmem:[%s514 + $0x10] sm:$0xff]
    %v740 = vld [vmem:[#allocation10 + $0x8] sm:$0xf]
    %v741 = vld [vmem:[#allocation10 + $0x18] sm:$0xf]
    %v742 = vld [vmem:[#allocation10 + $0x28] sm:$0xf]
    %v743 = vld [vmem:[#allocation10 + $0x38] sm:$0xf]
    %v744 = vld [vmem:[#allocation10 + $0x48] sm:$0xf]
    %v745 = vld [vmem:[#allocation10 + $0x58] sm:$0xf]
    %v746 = vld [vmem:[#allocation10 + $0x68] sm:$0xf]
    %v747 = vld [vmem:[#allocation10 + $0x78] sm:$0xf]
    %v748 = vld [vmem:[#allocation10 + $0x88] sm:$0xf]
    %v749 = vld [vmem:[#allocation10 + $0x98] sm:$0xf]
    %v750 = vld [vmem:[#allocation10 + $0xa8] sm:$0xf]
    %v751 = vld [vmem:[#allocation10 + $0xb8] sm:$0xf]
    %v752 = vld [vmem:[#allocation10 + $0xc8] sm:$0xf]
    %v753 = vld [vmem:[#allocation10 + $0xd8] sm:$0xf]
    %v754 = vld [vmem:[#allocation10 + $0xe8] sm:$0xf]
    %v755 = vld [vmem:[#allocation10 + $0xf8] sm:$0xf]
    %v772 = vunpack.c.l.b16 %v740
    %v773 = vunpack.c.l.b16 %v741
    %v774 = vunpack.c.l.b16 %v742
    %v775 = vunpack.c.l.b16 %v743
    %v776 = vunpack.c.l.b16 %v744
    %v777 = vunpack.c.l.b16 %v745
    %v778 = vunpack.c.l.b16 %v746
    %v779 = vunpack.c.l.b16 %v747
    %v780 = vunpack.c.l.b16 %v748
    %v781 = vunpack.c.l.b16 %v749
    %v782 = vunpack.c.l.b16 %v750
    %v783 = vunpack.c.l.b16 %v751
    %v784 = vunpack.c.l.b16 %v752
    %v785 = vunpack.c.l.b16 %v753
    %v786 = vunpack.c.l.b16 %v754
    %v787 = vunpack.c.l.b16 %v755
    %v788 = vpack.c.b16 %v773, %v772
    %v789 = vpack.c.b16 %v775, %v774
    %v790 = vpack.c.b16 %v777, %v776
    %v791 = vpack.c.b16 %v779, %v778
    %v792 = vpack.c.b16 %v781, %v780
    %v793 = vpack.c.b16 %v783, %v782
    %v794 = vpack.c.b16 %v785, %v784
    %v795 = vpack.c.b16 %v787, %v786
    %804 = vmatprep.subr.bf16.mxu0 0
    %805 = vmatpush1.bf16.msra.mxu0 %v788
    %806 = vmatprep.subr.bf16.mxu0 0
    %807 = vmatpush1.bf16.msra.mxu0 %v789
    %808 = vmatprep.subr.bf16.mxu0 0
    %809 = vmatpush1.bf16.msra.mxu0 %v790
    %810 = vmatprep.subr.bf16.mxu0 0
    %811 = vmatpush1.bf16.msra.mxu0 %v791
    %812 = vmatprep.subr.bf16.mxu0 0
    %813 = vmatpush1.bf16.msra.mxu0 %v792
    %814 = vmatprep.subr.bf16.mxu0 0
    %815 = vmatpush1.bf16.msra.mxu0 %v793
    %816 = vmatprep.subr.bf16.mxu0 0
    %817 = vmatpush1.bf16.msra.mxu0 %v794
    %818 = vmatprep.subr.bf16.mxu0 0
    %819 = vmatpush1.bf16.msra.mxu0 %v795
    %820 = vmatprep.subr.bf16.mxu0 0
    %821 = vmatpush1.bf16.msra.mxu0 0
    %822 = vmatprep.subr.bf16.mxu0 0
    %823 = vmatpush1.bf16.msra.mxu0 0
    %824 = vmatprep.subr.bf16.mxu0 0
    %825 = vmatpush1.bf16.msra.mxu0 0
    %826 = vmatprep.subr.bf16.mxu0 0
    %827 = vmatpush1.bf16.msra.mxu0 0
    %828 = vmatprep.subr.bf16.mxu0 0
    %829 = vmatpush1.bf16.msra.mxu0 0
    %830 = vmatprep.subr.bf16.mxu0 0
    %831 = vmatpush1.bf16.msra.mxu0 0
    %832 = vmatprep.subr.bf16.mxu0 0
    %833 = vmatpush1.bf16.msra.mxu0 0
    %834 = vmatprep.subr.bf16.mxu0 0
    %835 = vmatpush1.bf16.msra.mxu0 0
    %836 = vmatprep.mubr.bf16.mxu0 0
    %837 = vmatmul.mubr.bf16.gmra.mrb[0].mxu0 %v511
    %v838 = vpop.f32.mrb[0].mxu0
    %v839 = vadd.f32 0.0, %v838
    %v840 = vpop.f32.mrb[0].mxu0
    %v841 = vpop.f32.mrb[0].mxu0
    %v842 = vpop.f32.mrb[0].mxu0
    %843 = vdwg.mxu0
    %v844 = vadd.f32 %v739, %v839
    %v845 = vtanh.pop %v844
    %v846 = vld [vmem:[%s514 + $0x18] sm:$0xff]
    %v847 = vld [vmem:[#allocation10 + $0xc] sm:$0xf]
    %v848 = vld [vmem:[#allocation10 + $0x1c] sm:$0xf]
    %v849 = vld [vmem:[#allocation10 + $0x2c] sm:$0xf]
    %v850 = vld [vmem:[#allocation10 + $0x3c] sm:$0xf]
    %v851 = vld [vmem:[#allocation10 + $0x4c] sm:$0xf]
    %v852 = vld [vmem:[#allocation10 + $0x5c] sm:$0xf]
    %v853 = vld [vmem:[#allocation10 + $0x6c] sm:$0xf]
    %v854 = vld [vmem:[#allocation10 + $0x7c] sm:$0xf]
    %v855 = vld [vmem:[#allocation10 + $0x8c] sm:$0xf]
    %v856 = vld [vmem:[#allocation10 + $0x9c] sm:$0xf]
    %v857 = vld [vmem:[#allocation10 + $0xac] sm:$0xf]
    %v858 = vld [vmem:[#allocation10 + $0xbc] sm:$0xf]
    %v859 = vld [vmem:[#allocation10 + $0xcc] sm:$0xf]
    %v860 = vld [vmem:[#allocation10 + $0xdc] sm:$0xf]
    %v861 = vld [vmem:[#allocation10 + $0xec] sm:$0xf]
    %v862 = vld [vmem:[#allocation10 + $0xfc] sm:$0xf]
    %v879 = vunpack.c.l.b16 %v847
    %v880 = vunpack.c.l.b16 %v848
    %v881 = vunpack.c.l.b16 %v849
    %v882 = vunpack.c.l.b16 %v850
    %v883 = vunpack.c.l.b16 %v851
    %v884 = vunpack.c.l.b16 %v852
    %v885 = vunpack.c.l.b16 %v853
    %v886 = vunpack.c.l.b16 %v854
    %v887 = vunpack.c.l.b16 %v855
    %v888 = vunpack.c.l.b16 %v856
    %v889 = vunpack.c.l.b16 %v857
    %v890 = vunpack.c.l.b16 %v858
    %v891 = vunpack.c.l.b16 %v859
    %v892 = vunpack.c.l.b16 %v860
    %v893 = vunpack.c.l.b16 %v861
    %v894 = vunpack.c.l.b16 %v862
    %v895 = vpack.c.b16 %v880, %v879
    %v896 = vpack.c.b16 %v882, %v881
    %v897 = vpack.c.b16 %v884, %v883
    %v898 = vpack.c.b16 %v886, %v885
    %v899 = vpack.c.b16 %v888, %v887
    %v900 = vpack.c.b16 %v890, %v889
    %v901 = vpack.c.b16 %v892, %v891
    %v902 = vpack.c.b16 %v894, %v893
    %911 = vmatprep.subr.bf16.mxu0 0
    %912 = vmatpush1.bf16.msra.mxu0 %v895
    %913 = vmatprep.subr.bf16.mxu0 0
    %914 = vmatpush1.bf16.msra.mxu0 %v896
    %915 = vmatprep.subr.bf16.mxu0 0
    %916 = vmatpush1.bf16.msra.mxu0 %v897
    %917 = vmatprep.subr.bf16.mxu0 0
    %918 = vmatpush1.bf16.msra.mxu0 %v898
    %919 = vmatprep.subr.bf16.mxu0 0
    %920 = vmatpush1.bf16.msra.mxu0 %v899
    %921 = vmatprep.subr.bf16.mxu0 0
    %922 = vmatpush1.bf16.msra.mxu0 %v900
    %923 = vmatprep.subr.bf16.mxu0 0
    %924 = vmatpush1.bf16.msra.mxu0 %v901
    %925 = vmatprep.subr.bf16.mxu0 0
    %926 = vmatpush1.bf16.msra.mxu0 %v902
    %927 = vmatprep.subr.bf16.mxu0 0
    %928 = vmatpush1.bf16.msra.mxu0 0
    %929 = vmatprep.subr.bf16.mxu0 0
    %930 = vmatpush1.bf16.msra.mxu0 0
    %931 = vmatprep.subr.bf16.mxu0 0
    %932 = vmatpush1.bf16.msra.mxu0 0
    %933 = vmatprep.subr.bf16.mxu0 0
    %934 = vmatpush1.bf16.msra.mxu0 0
    %935 = vmatprep.subr.bf16.mxu0 0
    %936 = vmatpush1.bf16.msra.mxu0 0
    %937 = vmatprep.subr.bf16.mxu0 0
    %938 = vmatpush1.bf16.msra.mxu0 0
    %939 = vmatprep.subr.bf16.mxu0 0
    %940 = vmatpush1.bf16.msra.mxu0 0
    %941 = vmatprep.subr.bf16.mxu0 0
    %942 = vmatpush1.bf16.msra.mxu0 0
    %943 = vmatprep.mubr.bf16.mxu0 0
    %944 = vmatmul.mubr.bf16.gmra.mrb[0].mxu0 %v511
    %v945 = vpop.f32.mrb[0].mxu0
    %v946 = vadd.f32 0.0, %v945
    %v947 = vpop.f32.mrb[0].mxu0
    %v948 = vpop.f32.mrb[0].mxu0
    %v949 = vpop.f32.mrb[0].mxu0
    %950 = vdwg.mxu0
    %v951 = vadd.f32 %v846, %v946
    %v952 = vxor.u32 %v951, 2147483648
    %v953 = vmul.f32 %v952, 1.442695
    %v954 = vpow.pop %v953
    %v955 = vadd.f32 %v954, 1.0
    %v956 = vrcp.pop %v955
    %v957 = vmul.f32 1.0, %v956
    %v958 = vld [vmem:[#allocation4] sm:$0xff]
    %v959 = vmul.f32 %v738, %v958
    %v960 = vmul.f32 %v626, %v845
    %v961 = vadd.f32 %v959, %v960
    %962 = vst [vmem:[#allocation4] sm:$0xff] %v961
    %v963 = vtanh.pop %v961
    %v964 = vmul.f32 %v957, %v963
    %s965 = scalar_lea.vmem [#allocation3], 8
    %966 = vst [vmem:[%s965] sm:$0xff] %v964
    %v967 = vld [vmem:[%s965] sm:$0xff]
    %v968 = vpack.c.bf16 %v967, %v967
    %s969 = smul.u32 1, 4
    %s970 = smul.addr %s969, 8
    %s971 = scalar_lea.vmem [#allocation2], %s970
    %v972 = vld [vmem:[%s971] sm:$0xff]
    %v973 = vld [vmem:[#allocation10] sm:$0xf]
    %v974 = vld [vmem:[#allocation10 + $0x10] sm:$0xf]
    %v975 = vld [vmem:[#allocation10 + $0x20] sm:$0xf]
    %v976 = vld [vmem:[#allocation10 + $0x30] sm:$0xf]
    %v977 = vld [vmem:[#allocation10 + $0x40] sm:$0xf]
    %v978 = vld [vmem:[#allocation10 + $0x50] sm:$0xf]
    %v979 = vld [vmem:[#allocation10 + $0x60] sm:$0xf]
    %v980 = vld [vmem:[#allocation10 + $0x70] sm:$0xf]
    %v981 = vld [vmem:[#allocation10 + $0x80] sm:$0xf]
    %v982 = vld [vmem:[#allocation10 + $0x90] sm:$0xf]
    %v983 = vld [vmem:[#allocation10 + $0xa0] sm:$0xf]
    %v984 = vld [vmem:[#allocation10 + $0xb0] sm:$0xf]
    %v985 = vld [vmem:[#allocation10 + $0xc0] sm:$0xf]
    %v986 = vld [vmem:[#allocation10 + $0xd0] sm:$0xf]
    %v987 = vld [vmem:[#allocation10 + $0xe0] sm:$0xf]
    %v988 = vld [vmem:[#allocation10 + $0xf0] sm:$0xf]
    %v1005 = vunpack.c.l.b16 %v973
    %v1006 = vunpack.c.l.b16 %v974
    %v1007 = vunpack.c.l.b16 %v975
    %v1008 = vunpack.c.l.b16 %v976
    %v1009 = vunpack.c.l.b16 %v977
    %v1010 = vunpack.c.l.b16 %v978
    %v1011 = vunpack.c.l.b16 %v979
    %v1012 = vunpack.c.l.b16 %v980
    %v1013 = vunpack.c.l.b16 %v981
    %v1014 = vunpack.c.l.b16 %v982
    %v1015 = vunpack.c.l.b16 %v983
    %v1016 = vunpack.c.l.b16 %v984
    %v1017 = vunpack.c.l.b16 %v985
    %v1018 = vunpack.c.l.b16 %v986
    %v1019 = vunpack.c.l.b16 %v987
    %v1020 = vunpack.c.l.b16 %v988
    %v1021 = vpack.c.b16 %v1006, %v1005
    %v1022 = vpack.c.b16 %v1008, %v1007
    %v1023 = vpack.c.b16 %v1010, %v1009
    %v1024 = vpack.c.b16 %v1012, %v1011
    %v1025 = vpack.c.b16 %v1014, %v1013
    %v1026 = vpack.c.b16 %v1016, %v1015
    %v1027 = vpack.c.b16 %v1018, %v1017
    %v1028 = vpack.c.b16 %v1020, %v1019
    %1037 = vmatprep.subr.bf16.mxu0 0
    %1038 = vmatpush1.bf16.msra.mxu0 %v1021
    %1039 = vmatprep.subr.bf16.mxu0 0
    %1040 = vmatpush1.bf16.msra.mxu0 %v1022
    %1041 = vmatprep.subr.bf16.mxu0 0
    %1042 = vmatpush1.bf16.msra.mxu0 %v1023
    %1043 = vmatprep.subr.bf16.mxu0 0
    %1044 = vmatpush1.bf16.msra.mxu0 %v1024
    %1045 = vmatprep.subr.bf16.mxu0 0
    %1046 = vmatpush1.bf16.msra.mxu0 %v1025
    %1047 = vmatprep.subr.bf16.mxu0 0
    %1048 = vmatpush1.bf16.msra.mxu0 %v1026
    %1049 = vmatprep.subr.bf16.mxu0 0
    %1050 = vmatpush1.bf16.msra.mxu0 %v1027
    %1051 = vmatprep.subr.bf16.mxu0 0
    %1052 = vmatpush1.bf16.msra.mxu0 %v1028
    %1053 = vmatprep.subr.bf16.mxu0 0
    %1054 = vmatpush1.bf16.msra.mxu0 0
    %1055 = vmatprep.subr.bf16.mxu0 0
    %1056 = vmatpush1.bf16.msra.mxu0 0
    %1057 = vmatprep.subr.bf16.mxu0 0
    %1058 = vmatpush1.bf16.msra.mxu0 0
    %1059 = vmatprep.subr.bf16.mxu0 0
    %1060 = vmatpush1.bf16.msra.mxu0 0
    %1061 = vmatprep.subr.bf16.mxu0 0
    %1062 = vmatpush1.bf16.msra.mxu0 0
    %1063 = vmatprep.subr.bf16.mxu0 0
    %1064 = vmatpush1.bf16.msra.mxu0 0
    %1065 = vmatprep.subr.bf16.mxu0 0
    %1066 = vmatpush1.bf16.msra.mxu0 0
    %1067 = vmatprep.subr.bf16.mxu0 0
    %1068 = vmatpush1.bf16.msra.mxu0 0
    %1069 = vmatprep.mubr.bf16.mxu0 0
    %1070 = vmatmul.mubr.bf16.gmra.mrb[0].mxu0 %v968
    %v1071 = vpop.f32.mrb[0].mxu0
    %v1072 = vadd.f32 0.0, %v1071
    %v1073 = vpop.f32.mrb[0].mxu0
    %v1074 = vpop.f32.mrb[0].mxu0
    %v1075 = vpop.f32.mrb[0].mxu0
    %1076 = vdwg.mxu0
    %v1077 = vadd.f32 %v972, %v1072
    %v1078 = vxor.u32 %v1077, 2147483648
    %v1079 = vmul.f32 %v1078, 1.442695
    %v1080 = vpow.pop %v1079
    %v1081 = vadd.f32 %v1080, 1.0
    %v1082 = vrcp.pop %v1081
    %v1083 = vmul.f32 1.0, %v1082
    %v1084 = vld [vmem:[%s971 + $0x8] sm:$0xff]
    %v1085 = vld [vmem:[#allocation10 + $0x4] sm:$0xf]
    %v1086 = vld [vmem:[#allocation10 + $0x14] sm:$0xf]
    %v1087 = vld [vmem:[#allocation10 + $0x24] sm:$0xf]
    %v1088 = vld [vmem:[#allocation10 + $0x34] sm:$0xf]
    %v1089 = vld [vmem:[#allocation10 + $0x44] sm:$0xf]
    %v1090 = vld [vmem:[#allocation10 + $0x54] sm:$0xf]
    %v1091 = vld [vmem:[#allocation10 + $0x64] sm:$0xf]
    %v1092 = vld [vmem:[#allocation10 + $0x74] sm:$0xf]
    %v1093 = vld [vmem:[#allocation10 + $0x84] sm:$0xf]
    %v1094 = vld [vmem:[#allocation10 + $0x94] sm:$0xf]
    %v1095 = vld [vmem:[#allocation10 + $0xa4] sm:$0xf]
    %v1096 = vld [vmem:[#allocation10 + $0xb4] sm:$0xf]
    %v1097 = vld [vmem:[#allocation10 + $0xc4] sm:$0xf]
    %v1098 = vld [vmem:[#allocation10 + $0xd4] sm:$0xf]
    %v1099 = vld [vmem:[#allocation10 + $0xe4] sm:$0xf]
    %v1100 = vld [vmem:[#allocation10 + $0xf4] sm:$0xf]
    %v1117 = vunpack.c.l.b16 %v1085
    %v1118 = vunpack.c.l.b16 %v1086
    %v1119 = vunpack.c.l.b16 %v1087
    %v1120 = vunpack.c.l.b16 %v1088
    %v1121 = vunpack.c.l.b16 %v1089
    %v1122 = vunpack.c.l.b16 %v1090
    %v1123 = vunpack.c.l.b16 %v1091
    %v1124 = vunpack.c.l.b16 %v1092
    %v1125 = vunpack.c.l.b16 %v1093
    %v1126 = vunpack.c.l.b16 %v1094
    %v1127 = vunpack.c.l.b16 %v1095
    %v1128 = vunpack.c.l.b16 %v1096
    %v1129 = vunpack.c.l.b16 %v1097
    %v1130 = vunpack.c.l.b16 %v1098
    %v1131 = vunpack.c.l.b16 %v1099
    %v1132 = vunpack.c.l.b16 %v1100
    %v1133 = vpack.c.b16 %v1118, %v1117
    %v1134 = vpack.c.b16 %v1120, %v1119
    %v1135 = vpack.c.b16 %v1122, %v1121
    %v1136 = vpack.c.b16 %v1124, %v1123
    %v1137 = vpack.c.b16 %v1126, %v1125
    %v1138 = vpack.c.b16 %v1128, %v1127
    %v1139 = vpack.c.b16 %v1130, %v1129
    %v1140 = vpack.c.b16 %v1132, %v1131
    %1149 = vmatprep.subr.bf16.mxu0 0
    %1150 = vmatpush1.bf16.msra.mxu0 %v1133
    %1151 = vmatprep.subr.bf16.mxu0 0
    %1152 = vmatpush1.bf16.msra.mxu0 %v1134
    %1153 = vmatprep.subr.bf16.mxu0 0
    %1154 = vmatpush1.bf16.msra.mxu0 %v1135
    %1155 = vmatprep.subr.bf16.mxu0 0
    %1156 = vmatpush1.bf16.msra.mxu0 %v1136
    %1157 = vmatprep.subr.bf16.mxu0 0
    %1158 = vmatpush1.bf16.msra.mxu0 %v1137
    %1159 = vmatprep.subr.bf16.mxu0 0
    %1160 = vmatpush1.bf16.msra.mxu0 %v1138
    %1161 = vmatprep.subr.bf16.mxu0 0
    %1162 = vmatpush1.bf16.msra.mxu0 %v1139
    %1163 = vmatprep.subr.bf16.mxu0 0
    %1164 = vmatpush1.bf16.msra.mxu0 %v1140
    %1165 = vmatprep.subr.bf16.mxu0 0
    %1166 = vmatpush1.bf16.msra.mxu0 0
    %1167 = vmatprep.subr.bf16.mxu0 0
    %1168 = vmatpush1.bf16.msra.mxu0 0
    %1169 = vmatprep.subr.bf16.mxu0 0
    %1170 = vmatpush1.bf16.msra.mxu0 0
    %1171 = vmatprep.subr.bf16.mxu0 0
    %1172 = vmatpush1.bf16.msra.mxu0 0
    %1173 = vmatprep.subr.bf16.mxu0 0
    %1174 = vmatpush1.bf16.msra.mxu0 0
    %1175 = vmatprep.subr.bf16.mxu0 0
    %1176 = vmatpush1.bf16.msra.mxu0 0
    %1177 = vmatprep.subr.bf16.mxu0 0
    %1178 = vmatpush1.bf16.msra.mxu0 0
    %1179 = vmatprep.subr.bf16.mxu0 0
    %1180 = vmatpush1.bf16.msra.mxu0 0
    %1181 = vmatprep.mubr.bf16.mxu0 0
    %1182 = vmatmul.mubr.bf16.gmra.mrb[0].mxu0 %v968
    %v1183 = vpop.f32.mrb[0].mxu0
    %v1184 = vadd.f32 0.0, %v1183
    %v1185 = vpop.f32.mrb[0].mxu0
    %v1186 = vpop.f32.mrb[0].mxu0
    %v1187 = vpop.f32.mrb[0].mxu0
    %1188 = vdwg.mxu0
    %v1189 = vadd.f32 %v1084, %v1184
    %v1190 = vxor.u32 %v1189, 2147483648
    %v1191 = vmul.f32 %v1190, 1.442695
    %v1192 = vpow.pop %v1191
    %v1193 = vadd.f32 %v1192, 1.0
    %v1194 = vrcp.pop %v1193
    %v1195 = vmul.f32 1.0, %v1194
    %v1196 = vld [vmem:[%s971 + $0x10] sm:$0xff]
    %v1197 = vld [vmem:[#allocation10 + $0x8] sm:$0xf]
    %v1198 = vld [vmem:[#allocation10 + $0x18] sm:$0xf]
    %v1199 = vld [vmem:[#allocation10 + $0x28] sm:$0xf]
    %v1200 = vld [vmem:[#allocation10 + $0x38] sm:$0xf]
    %v1201 = vld [vmem:[#allocation10 + $0x48] sm:$0xf]
    %v1202 = vld [vmem:[#allocation10 + $0x58] sm:$0xf]
    %v1203 = vld [vmem:[#allocation10 + $0x68] sm:$0xf]
    %v1204 = vld [vmem:[#allocation10 + $0x78] sm:$0xf]
    %v1205 = vld [vmem:[#allocation10 + $0x88] sm:$0xf]
    %v1206 = vld [vmem:[#allocation10 + $0x98] sm:$0xf]
    %v1207 = vld [vmem:[#allocation10 + $0xa8] sm:$0xf]
    %v1208 = vld [vmem:[#allocation10 + $0xb8] sm:$0xf]
    %v1209 = vld [vmem:[#allocation10 + $0xc8] sm:$0xf]
    %v1210 = vld [vmem:[#allocation10 + $0xd8] sm:$0xf]
    %v1211 = vld [vmem:[#allocation10 + $0xe8] sm:$0xf]
    %v1212 = vld [vmem:[#allocation10 + $0xf8] sm:$0xf]
    %v1229 = vunpack.c.l.b16 %v1197
    %v1230 = vunpack.c.l.b16 %v1198
    %v1231 = vunpack.c.l.b16 %v1199
    %v1232 = vunpack.c.l.b16 %v1200
    %v1233 = vunpack.c.l.b16 %v1201
    %v1234 = vunpack.c.l.b16 %v1202
    %v1235 = vunpack.c.l.b16 %v1203
    %v1236 = vunpack.c.l.b16 %v1204
    %v1237 = vunpack.c.l.b16 %v1205
    %v1238 = vunpack.c.l.b16 %v1206
    %v1239 = vunpack.c.l.b16 %v1207
    %v1240 = vunpack.c.l.b16 %v1208
    %v1241 = vunpack.c.l.b16 %v1209
    %v1242 = vunpack.c.l.b16 %v1210
    %v1243 = vunpack.c.l.b16 %v1211
    %v1244 = vunpack.c.l.b16 %v1212
    %v1245 = vpack.c.b16 %v1230, %v1229
    %v1246 = vpack.c.b16 %v1232, %v1231
    %v1247 = vpack.c.b16 %v1234, %v1233
    %v1248 = vpack.c.b16 %v1236, %v1235
    %v1249 = vpack.c.b16 %v1238, %v1237
    %v1250 = vpack.c.b16 %v1240, %v1239
    %v1251 = vpack.c.b16 %v1242, %v1241
    %v1252 = vpack.c.b16 %v1244, %v1243
    %1261 = vmatprep.subr.bf16.mxu0 0
    %1262 = vmatpush1.bf16.msra.mxu0 %v1245
    %1263 = vmatprep.subr.bf16.mxu0 0
    %1264 = vmatpush1.bf16.msra.mxu0 %v1246
    %1265 = vmatprep.subr.bf16.mxu0 0
    %1266 = vmatpush1.bf16.msra.mxu0 %v1247
    %1267 = vmatprep.subr.bf16.mxu0 0
    %1268 = vmatpush1.bf16.msra.mxu0 %v1248
    %1269 = vmatprep.subr.bf16.mxu0 0
    %1270 = vmatpush1.bf16.msra.mxu0 %v1249
    %1271 = vmatprep.subr.bf16.mxu0 0
    %1272 = vmatpush1.bf16.msra.mxu0 %v1250
    %1273 = vmatprep.subr.bf16.mxu0 0
    %1274 = vmatpush1.bf16.msra.mxu0 %v1251
    %1275 = vmatprep.subr.bf16.mxu0 0
    %1276 = vmatpush1.bf16.msra.mxu0 %v1252
    %1277 = vmatprep.subr.bf16.mxu0 0
    %1278 = vmatpush1.bf16.msra.mxu0 0
    %1279 = vmatprep.subr.bf16.mxu0 0
    %1280 = vmatpush1.bf16.msra.mxu0 0
    %1281 = vmatprep.subr.bf16.mxu0 0
    %1282 = vmatpush1.bf16.msra.mxu0 0
    %1283 = vmatprep.subr.bf16.mxu0 0
    %1284 = vmatpush1.bf16.msra.mxu0 0
    %1285 = vmatprep.subr.bf16.mxu0 0
    %1286 = vmatpush1.bf16.msra.mxu0 0
    %1287 = vmatprep.subr.bf16.mxu0 0
    %1288 = vmatpush1.bf16.msra.mxu0 0
    %1289 = vmatprep.subr.bf16.mxu0 0
    %1290 = vmatpush1.bf16.msra.mxu0 0
    %1291 = vmatprep.subr.bf16.mxu0 0
    %1292 = vmatpush1.bf16.msra.mxu0 0
    %1293 = vmatprep.mubr.bf16.mxu0 0
    %1294 = vmatmul.mubr.bf16.gmra.mrb[0].mxu0 %v968
    %v1295 = vpop.f32.mrb[0].mxu0
    %v1296 = vadd.f32 0.0, %v1295
    %v1297 = vpop.f32.mrb[0].mxu0
    %v1298 = vpop.f32.mrb[0].mxu0
    %v1299 = vpop.f32.mrb[0].mxu0
    %1300 = vdwg.mxu0
    %v1301 = vadd.f32 %v1196, %v1296
    %v1302 = vtanh.pop %v1301
    %v1303 = vld [vmem:[%s971 + $0x18] sm:$0xff]
    %v1304 = vld [vmem:[#allocation10 + $0xc] sm:$0xf]
    %v1305 = vld [vmem:[#allocation10 + $0x1c] sm:$0xf]
    %v1306 = vld [vmem:[#allocation10 + $0x2c] sm:$0xf]
    %v1307 = vld [vmem:[#allocation10 + $0x3c] sm:$0xf]
    %v1308 = vld [vmem:[#allocation10 + $0x4c] sm:$0xf]
    %v1309 = vld [vmem:[#allocation10 + $0x5c] sm:$0xf]
    %v1310 = vld [vmem:[#allocation10 + $0x6c] sm:$0xf]
    %v1311 = vld [vmem:[#allocation10 + $0x7c] sm:$0xf]
    %v1312 = vld [vmem:[#allocation10 + $0x8c] sm:$0xf]
    %v1313 = vld [vmem:[#allocation10 + $0x9c] sm:$0xf]
    %v1314 = vld [vmem:[#allocation10 + $0xac] sm:$0xf]
    %v1315 = vld [vmem:[#allocation10 + $0xbc] sm:$0xf]
    %v1316 = vld [vmem:[#allocation10 + $0xcc] sm:$0xf]
    %v1317 = vld [vmem:[#allocation10 + $0xdc] sm:$0xf]
    %v1318 = vld [vmem:[#allocation10 + $0xec] sm:$0xf]
    %v1319 = vld [vmem:[#allocation10 + $0xfc] sm:$0xf]
    %v1336 = vunpack.c.l.b16 %v1304
    %v1337 = vunpack.c.l.b16 %v1305
    %v1338 = vunpack.c.l.b16 %v1306
    %v1339 = vunpack.c.l.b16 %v1307
    %v1340 = vunpack.c.l.b16 %v1308
    %v1341 = vunpack.c.l.b16 %v1309
    %v1342 = vunpack.c.l.b16 %v1310
    %v1343 = vunpack.c.l.b16 %v1311
    %v1344 = vunpack.c.l.b16 %v1312
    %v1345 = vunpack.c.l.b16 %v1313
    %v1346 = vunpack.c.l.b16 %v1314
    %v1347 = vunpack.c.l.b16 %v1315
    %v1348 = vunpack.c.l.b16 %v1316
    %v1349 = vunpack.c.l.b16 %v1317
    %v1350 = vunpack.c.l.b16 %v1318
    %v1351 = vunpack.c.l.b16 %v1319
    %v1352 = vpack.c.b16 %v1337, %v1336
    %v1353 = vpack.c.b16 %v1339, %v1338
    %v1354 = vpack.c.b16 %v1341, %v1340
    %v1355 = vpack.c.b16 %v1343, %v1342
    %v1356 = vpack.c.b16 %v1345, %v1344
    %v1357 = vpack.c.b16 %v1347, %v1346
    %v1358 = vpack.c.b16 %v1349, %v1348
    %v1359 = vpack.c.b16 %v1351, %v1350
    %1368 = vmatprep.subr.bf16.mxu0 0
    %1369 = vmatpush1.bf16.msra.mxu0 %v1352
    %1370 = vmatprep.subr.bf16.mxu0 0
    %1371 = vmatpush1.bf16.msra.mxu0 %v1353
    %1372 = vmatprep.subr.bf16.mxu0 0
    %1373 = vmatpush1.bf16.msra.mxu0 %v1354
    %1374 = vmatprep.subr.bf16.mxu0 0
    %1375 = vmatpush1.bf16.msra.mxu0 %v1355
    %1376 = vmatprep.subr.bf16.mxu0 0
    %1377 = vmatpush1.bf16.msra.mxu0 %v1356
    %1378 = vmatprep.subr.bf16.mxu0 0
    %1379 = vmatpush1.bf16.msra.mxu0 %v1357
    %1380 = vmatprep.subr.bf16.mxu0 0
    %1381 = vmatpush1.bf16.msra.mxu0 %v1358
    %1382 = vmatprep.subr.bf16.mxu0 0
    %1383 = vmatpush1.bf16.msra.mxu0 %v1359
    %1384 = vmatprep.subr.bf16.mxu0 0
    %1385 = vmatpush1.bf16.msra.mxu0 0
    %1386 = vmatprep.subr.bf16.mxu0 0
    %1387 = vmatpush1.bf16.msra.mxu0 0
    %1388 = vmatprep.subr.bf16.mxu0 0
    %1389 = vmatpush1.bf16.msra.mxu0 0
    %1390 = vmatprep.subr.bf16.mxu0 0
    %1391 = vmatpush1.bf16.msra.mxu0 0
    %1392 = vmatprep.subr.bf16.mxu0 0
    %1393 = vmatpush1.bf16.msra.mxu0 0
    %1394 = vmatprep.subr.bf16.mxu0 0
    %1395 = vmatpush1.bf16.msra.mxu0 0
    %1396 = vmatprep.subr.bf16.mxu0 0
    %1397 = vmatpush1.bf16.msra.mxu0 0
    %1398 = vmatprep.subr.bf16.mxu0 0
    %1399 = vmatpush1.bf16.msra.mxu0 0
    %1400 = vmatprep.mubr.bf16.mxu0 0
    %1401 = vmatmul.mubr.bf16.gmra.mrb[0].mxu0 %v968
    %v1402 = vpop.f32.mrb[0].mxu0
    %v1403 = vadd.f32 0.0, %v1402
    %v1404 = vpop.f32.mrb[0].mxu0
    %v1405 = vpop.f32.mrb[0].mxu0
    %v1406 = vpop.f32.mrb[0].mxu0
    %1407 = vdwg.mxu0
    %v1408 = vadd.f32 %v1303, %v1403
    %v1409 = vxor.u32 %v1408, 2147483648
    %v1410 = vmul.f32 %v1409, 1.442695
    %v1411 = vpow.pop %v1410
    %v1412 = vadd.f32 %v1411, 1.0
    %v1413 = vrcp.pop %v1412
    %v1414 = vmul.f32 1.0, %v1413
    %v1415 = vld [vmem:[#allocation4] sm:$0xff]
    %v1416 = vmul.f32 %v1195, %v1415
    %v1417 = vmul.f32 %v1083, %v1302
    %v1418 = vadd.f32 %v1416, %v1417
    %1419 = vst [vmem:[#allocation4] sm:$0xff] %v1418
    %v1420 = vtanh.pop %v1418
    %v1421 = vmul.f32 %v1414, %v1420
    %s1422 = scalar_lea.vmem [#allocation3], 16
    %1423 = vst [vmem:[%s1422] sm:$0xff] %v1421
    %v1424 = vld [vmem:[%s1422] sm:$0xff]
    %v1425 = vpack.c.bf16 %v1424, %v1424
    %s1426 = smul.u32 2, 4
    %s1427 = smul.addr %s1426, 8
    %s1428 = scalar_lea.vmem [#allocation2], %s1427
    %v1429 = vld [vmem:[%s1428] sm:$0xff]
    %v1430 = vld [vmem:[#allocation10] sm:$0xf]
    %v1431 = vld [vmem:[#allocation10 + $0x10] sm:$0xf]
    %v1432 = vld [vmem:[#allocation10 + $0x20] sm:$0xf]
    %v1433 = vld [vmem:[#allocation10 + $0x30] sm:$0xf]
    %v1434 = vld [vmem:[#allocation10 + $0x40] sm:$0xf]
    %v1435 = vld [vmem:[#allocation10 + $0x50] sm:$0xf]
    %v1436 = vld [vmem:[#allocation10 + $0x60] sm:$0xf]
    %v1437 = vld [vmem:[#allocation10 + $0x70] sm:$0xf]
    %v1438 = vld [vmem:[#allocation10 + $0x80] sm:$0xf]
    %v1439 = vld [vmem:[#allocation10 + $0x90] sm:$0xf]
    %v1440 = vld [vmem:[#allocation10 + $0xa0] sm:$0xf]
    %v1441 = vld [vmem:[#allocation10 + $0xb0] sm:$0xf]
    %v1442 = vld [vmem:[#allocation10 + $0xc0] sm:$0xf]
    %v1443 = vld [vmem:[#allocation10 + $0xd0] sm:$0xf]
    %v1444 = vld [vmem:[#allocation10 + $0xe0] sm:$0xf]
    %v1445 = vld [vmem:[#allocation10 + $0xf0] sm:$0xf]
    %v1462 = vunpack.c.l.b16 %v1430
    %v1463 = vunpack.c.l.b16 %v1431
    %v1464 = vunpack.c.l.b16 %v1432
    %v1465 = vunpack.c.l.b16 %v1433
    %v1466 = vunpack.c.l.b16 %v1434
    %v1467 = vunpack.c.l.b16 %v1435
    %v1468 = vunpack.c.l.b16 %v1436
    %v1469 = vunpack.c.l.b16 %v1437
    %v1470 = vunpack.c.l.b16 %v1438
    %v1471 = vunpack.c.l.b16 %v1439
    %v1472 = vunpack.c.l.b16 %v1440
    %v1473 = vunpack.c.l.b16 %v1441
    %v1474 = vunpack.c.l.b16 %v1442
    %v1475 = vunpack.c.l.b16 %v1443
    %v1476 = vunpack.c.l.b16 %v1444
    %v1477 = vunpack.c.l.b16 %v1445
    %v1478 = vpack.c.b16 %v1463, %v1462
    %v1479 = vpack.c.b16 %v1465, %v1464
    %v1480 = vpack.c.b16 %v1467, %v1466
    %v1481 = vpack.c.b16 %v1469, %v1468
    %v1482 = vpack.c.b16 %v1471, %v1470
    %v1483 = vpack.c.b16 %v1473, %v1472
    %v1484 = vpack.c.b16 %v1475, %v1474
    %v1485 = vpack.c.b16 %v1477, %v1476
    %1494 = vmatprep.subr.bf16.mxu0 0
    %1495 = vmatpush1.bf16.msra.mxu0 %v1478
    %1496 = vmatprep.subr.bf16.mxu0 0
    %1497 = vmatpush1.bf16.msra.mxu0 %v1479
    %1498 = vmatprep.subr.bf16.mxu0 0
    %1499 = vmatpush1.bf16.msra.mxu0 %v1480
    %1500 = vmatprep.subr.bf16.mxu0 0
    %1501 = vmatpush1.bf16.msra.mxu0 %v1481
    %1502 = vmatprep.subr.bf16.mxu0 0
    %1503 = vmatpush1.bf16.msra.mxu0 %v1482
    %1504 = vmatprep.subr.bf16.mxu0 0
    %1505 = vmatpush1.bf16.msra.mxu0 %v1483
    %1506 = vmatprep.subr.bf16.mxu0 0
    %1507 = vmatpush1.bf16.msra.mxu0 %v1484
    %1508 = vmatprep.subr.bf16.mxu0 0
    %1509 = vmatpush1.bf16.msra.mxu0 %v1485
    %1510 = vmatprep.subr.bf16.mxu0 0
    %1511 = vmatpush1.bf16.msra.mxu0 0
    %1512 = vmatprep.subr.bf16.mxu0 0
    %1513 = vmatpush1.bf16.msra.mxu0 0
    %1514 = vmatprep.subr.bf16.mxu0 0
    %1515 = vmatpush1.bf16.msra.mxu0 0
    %1516 = vmatprep.subr.bf16.mxu0 0
    %1517 = vmatpush1.bf16.msra.mxu0 0
    %1518 = vmatprep.subr.bf16.mxu0 0
    %1519 = vmatpush1.bf16.msra.mxu0 0
    %1520 = vmatprep.subr.bf16.mxu0 0
    %1521 = vmatpush1.bf16.msra.mxu0 0
    %1522 = vmatprep.subr.bf16.mxu0 0
    %1523 = vmatpush1.bf16.msra.mxu0 0
    %1524 = vmatprep.subr.bf16.mxu0 0
    %1525 = vmatpush1.bf16.msra.mxu0 0
    %1526 = vmatprep.mubr.bf16.mxu0 0
    %1527 = vmatmul.mubr.bf16.gmra.mrb[0].mxu0 %v1425
    %v1528 = vpop.f32.mrb[0].mxu0
    %v1529 = vadd.f32 0.0, %v1528
    %v1530 = vpop.f32.mrb[0].mxu0
    %v1531 = vpop.f32.mrb[0].mxu0
    %v1532 = vpop.f32.mrb[0].mxu0
    %1533 = vdwg.mxu0
    %v1534 = vadd.f32 %v1429, %v1529
    %v1535 = vxor.u32 %v1534, 2147483648
    %v1536 = vmul.f32 %v1535, 1.442695
    %v1537 = vpow.pop %v1536
    %v1538 = vadd.f32 %v1537, 1.0
    %v1539 = vrcp.pop %v1538
    %v1540 = vmul.f32 1.0, %v1539
    %v1541 = vld [vmem:[%s1428 + $0x8] sm:$0xff]
    %v1542 = vld [vmem:[#allocation10 + $0x4] sm:$0xf]
    %v1543 = vld [vmem:[#allocation10 + $0x14] sm:$0xf]
    %v1544 = vld [vmem:[#allocation10 + $0x24] sm:$0xf]
    %v1545 = vld [vmem:[#allocation10 + $0x34] sm:$0xf]
    %v1546 = vld [vmem:[#allocation10 + $0x44] sm:$0xf]
    %v1547 = vld [vmem:[#allocation10 + $0x54] sm:$0xf]
    %v1548 = vld [vmem:[#allocation10 + $0x64] sm:$0xf]
    %v1549 = vld [vmem:[#allocation10 + $0x74] sm:$0xf]
    %v1550 = vld [vmem:[#allocation10 + $0x84] sm:$0xf]
    %v1551 = vld [vmem:[#allocation10 + $0x94] sm:$0xf]
    %v1552 = vld [vmem:[#allocation10 + $0xa4] sm:$0xf]
    %v1553 = vld [vmem:[#allocation10 + $0xb4] sm:$0xf]
    %v1554 = vld [vmem:[#allocation10 + $0xc4] sm:$0xf]
    %v1555 = vld [vmem:[#allocation10 + $0xd4] sm:$0xf]
    %v1556 = vld [vmem:[#allocation10 + $0xe4] sm:$0xf]
    %v1557 = vld [vmem:[#allocation10 + $0xf4] sm:$0xf]
    %v1574 = vunpack.c.l.b16 %v1542
    %v1575 = vunpack.c.l.b16 %v1543
    %v1576 = vunpack.c.l.b16 %v1544
    %v1577 = vunpack.c.l.b16 %v1545
    %v1578 = vunpack.c.l.b16 %v1546
    %v1579 = vunpack.c.l.b16 %v1547
    %v1580 = vunpack.c.l.b16 %v1548
    %v1581 = vunpack.c.l.b16 %v1549
    %v1582 = vunpack.c.l.b16 %v1550
    %v1583 = vunpack.c.l.b16 %v1551
    %v1584 = vunpack.c.l.b16 %v1552
    %v1585 = vunpack.c.l.b16 %v1553
    %v1586 = vunpack.c.l.b16 %v1554
    %v1587 = vunpack.c.l.b16 %v1555
    %v1588 = vunpack.c.l.b16 %v1556
    %v1589 = vunpack.c.l.b16 %v1557
    %v1590 = vpack.c.b16 %v1575, %v1574
    %v1591 = vpack.c.b16 %v1577, %v1576
    %v1592 = vpack.c.b16 %v1579, %v1578
    %v1593 = vpack.c.b16 %v1581, %v1580
    %v1594 = vpack.c.b16 %v1583, %v1582
    %v1595 = vpack.c.b16 %v1585, %v1584
    %v1596 = vpack.c.b16 %v1587, %v1586
    %v1597 = vpack.c.b16 %v1589, %v1588
    %1606 = vmatprep.subr.bf16.mxu0 0
    %1607 = vmatpush1.bf16.msra.mxu0 %v1590
    %1608 = vmatprep.subr.bf16.mxu0 0
    %1609 = vmatpush1.bf16.msra.mxu0 %v1591
    %1610 = vmatprep.subr.bf16.mxu0 0
    %1611 = vmatpush1.bf16.msra.mxu0 %v1592
    %1612 = vmatprep.subr.bf16.mxu0 0
    %1613 = vmatpush1.bf16.msra.mxu0 %v1593
    %1614 = vmatprep.subr.bf16.mxu0 0
    %1615 = vmatpush1.bf16.msra.mxu0 %v1594
    %1616 = vmatprep.subr.bf16.mxu0 0
    %1617 = vmatpush1.bf16.msra.mxu0 %v1595
    %1618 = vmatprep.subr.bf16.mxu0 0
    %1619 = vmatpush1.bf16.msra.mxu0 %v1596
    %1620 = vmatprep.subr.bf16.mxu0 0
    %1621 = vmatpush1.bf16.msra.mxu0 %v1597
    %1622 = vmatprep.subr.bf16.mxu0 0
    %1623 = vmatpush1.bf16.msra.mxu0 0
    %1624 = vmatprep.subr.bf16.mxu0 0
    %1625 = vmatpush1.bf16.msra.mxu0 0
    %1626 = vmatprep.subr.bf16.mxu0 0
    %1627 = vmatpush1.bf16.msra.mxu0 0
    %1628 = vmatprep.subr.bf16.mxu0 0
    %1629 = vmatpush1.bf16.msra.mxu0 0
    %1630 = vmatprep.subr.bf16.mxu0 0
    %1631 = vmatpush1.bf16.msra.mxu0 0
    %1632 = vmatprep.subr.bf16.mxu0 0
    %1633 = vmatpush1.bf16.msra.mxu0 0
    %1634 = vmatprep.subr.bf16.mxu0 0
    %1635 = vmatpush1.bf16.msra.mxu0 0
    %1636 = vmatprep.subr.bf16.mxu0 0
    %1637 = vmatpush1.bf16.msra.mxu0 0
    %1638 = vmatprep.mubr.bf16.mxu0 0
    %1639 = vmatmul.mubr.bf16.gmra.mrb[0].mxu0 %v1425
    %v1640 = vpop.f32.mrb[0].mxu0
    %v1641 = vadd.f32 0.0, %v1640
    %v1642 = vpop.f32.mrb[0].mxu0
    %v1643 = vpop.f32.mrb[0].mxu0
    %v1644 = vpop.f32.mrb[0].mxu0
    %1645 = vdwg.mxu0
    %v1646 = vadd.f32 %v1541, %v1641
    %v1647 = vxor.u32 %v1646, 2147483648
    %v1648 = vmul.f32 %v1647, 1.442695
    %v1649 = vpow.pop %v1648
    %v1650 = vadd.f32 %v1649, 1.0
    %v1651 = vrcp.pop %v1650
    %v1652 = vmul.f32 1.0, %v1651
    %v1653 = vld [vmem:[%s1428 + $0x10] sm:$0xff]
    %v1654 = vld [vmem:[#allocation10 + $0x8] sm:$0xf]
    %v1655 = vld [vmem:[#allocation10 + $0x18] sm:$0xf]
    %v1656 = vld [vmem:[#allocation10 + $0x28] sm:$0xf]
    %v1657 = vld [vmem:[#allocation10 + $0x38] sm:$0xf]
    %v1658 = vld [vmem:[#allocation10 + $0x48] sm:$0xf]
    %v1659 = vld [vmem:[#allocation10 + $0x58] sm:$0xf]
    %v1660 = vld [vmem:[#allocation10 + $0x68] sm:$0xf]
    %v1661 = vld [vmem:[#allocation10 + $0x78] sm:$0xf]
    %v1662 = vld [vmem:[#allocation10 + $0x88] sm:$0xf]
    %v1663 = vld [vmem:[#allocation10 + $0x98] sm:$0xf]
    %v1664 = vld [vmem:[#allocation10 + $0xa8] sm:$0xf]
    %v1665 = vld [vmem:[#allocation10 + $0xb8] sm:$0xf]
    %v1666 = vld [vmem:[#allocation10 + $0xc8] sm:$0xf]
    %v1667 = vld [vmem:[#allocation10 + $0xd8] sm:$0xf]
    %v1668 = vld [vmem:[#allocation10 + $0xe8] sm:$0xf]
    %v1669 = vld [vmem:[#allocation10 + $0xf8] sm:$0xf]
    %v1686 = vunpack.c.l.b16 %v1654
    %v1687 = vunpack.c.l.b16 %v1655
    %v1688 = vunpack.c.l.b16 %v1656
    %v1689 = vunpack.c.l.b16 %v1657
    %v1690 = vunpack.c.l.b16 %v1658
    %v1691 = vunpack.c.l.b16 %v1659
    %v1692 = vunpack.c.l.b16 %v1660
    %v1693 = vunpack.c.l.b16 %v1661
    %v1694 = vunpack.c.l.b16 %v1662
    %v1695 = vunpack.c.l.b16 %v1663
    %v1696 = vunpack.c.l.b16 %v1664
    %v1697 = vunpack.c.l.b16 %v1665
    %v1698 = vunpack.c.l.b16 %v1666
    %v1699 = vunpack.c.l.b16 %v1667
    %v1700 = vunpack.c.l.b16 %v1668
    %v1701 = vunpack.c.l.b16 %v1669
    %v1702 = vpack.c.b16 %v1687, %v1686
    %v1703 = vpack.c.b16 %v1689, %v1688
    %v1704 = vpack.c.b16 %v1691, %v1690
    %v1705 = vpack.c.b16 %v1693, %v1692
    %v1706 = vpack.c.b16 %v1695, %v1694
    %v1707 = vpack.c.b16 %v1697, %v1696
    %v1708 = vpack.c.b16 %v1699, %v1698
    %v1709 = vpack.c.b16 %v1701, %v1700
    %1718 = vmatprep.subr.bf16.mxu0 0
    %1719 = vmatpush1.bf16.msra.mxu0 %v1702
    %1720 = vmatprep.subr.bf16.mxu0 0
    %1721 = vmatpush1.bf16.msra.mxu0 %v1703
    %1722 = vmatprep.subr.bf16.mxu0 0
    %1723 = vmatpush1.bf16.msra.mxu0 %v1704
    %1724 = vmatprep.subr.bf16.mxu0 0
    %1725 = vmatpush1.bf16.msra.mxu0 %v1705
    %1726 = vmatprep.subr.bf16.mxu0 0
    %1727 = vmatpush1.bf16.msra.mxu0 %v1706
    %1728 = vmatprep.subr.bf16.mxu0 0
    %1729 = vmatpush1.bf16.msra.mxu0 %v1707
    %1730 = vmatprep.subr.bf16.mxu0 0
    %1731 = vmatpush1.bf16.msra.mxu0 %v1708
    %1732 = vmatprep.subr.bf16.mxu0 0
    %1733 = vmatpush1.bf16.msra.mxu0 %v1709
    %1734 = vmatprep.subr.bf16.mxu0 0
    %1735 = vmatpush1.bf16.msra.mxu0 0
    %1736 = vmatprep.subr.bf16.mxu0 0
    %1737 = vmatpush1.bf16.msra.mxu0 0
    %1738 = vmatprep.subr.bf16.mxu0 0
    %1739 = vmatpush1.bf16.msra.mxu0 0
    %1740 = vmatprep.subr.bf16.mxu0 0
    %1741 = vmatpush1.bf16.msra.mxu0 0
    %1742 = vmatprep.subr.bf16.mxu0 0
    %1743 = vmatpush1.bf16.msra.mxu0 0
    %1744 = vmatprep.subr.bf16.mxu0 0
    %1745 = vmatpush1.bf16.msra.mxu0 0
    %1746 = vmatprep.subr.bf16.mxu0 0
    %1747 = vmatpush1.bf16.msra.mxu0 0
    %1748 = vmatprep.subr.bf16.mxu0 0
    %1749 = vmatpush1.bf16.msra.mxu0 0
    %1750 = vmatprep.mubr.bf16.mxu0 0
    %1751 = vmatmul.mubr.bf16.gmra.mrb[0].mxu0 %v1425
    %v1752 = vpop.f32.mrb[0].mxu0
    %v1753 = vadd.f32 0.0, %v1752
    %v1754 = vpop.f32.mrb[0].mxu0
    %v1755 = vpop.f32.mrb[0].mxu0
    %v1756 = vpop.f32.mrb[0].mxu0
    %1757 = vdwg.mxu0
    %v1758 = vadd.f32 %v1653, %v1753
    %v1759 = vtanh.pop %v1758
    %v1760 = vld [vmem:[%s1428 + $0x18] sm:$0xff]
    %v1761 = vld [vmem:[#allocation10 + $0xc] sm:$0xf]
    %v1762 = vld [vmem:[#allocation10 + $0x1c] sm:$0xf]
    %v1763 = vld [vmem:[#allocation10 + $0x2c] sm:$0xf]
    %v1764 = vld [vmem:[#allocation10 + $0x3c] sm:$0xf]
    %v1765 = vld [vmem:[#allocation10 + $0x4c] sm:$0xf]
    %v1766 = vld [vmem:[#allocation10 + $0x5c] sm:$0xf]
    %v1767 = vld [vmem:[#allocation10 + $0x6c] sm:$0xf]
    %v1768 = vld [vmem:[#allocation10 + $0x7c] sm:$0xf]
    %v1769 = vld [vmem:[#allocation10 + $0x8c] sm:$0xf]
    %v1770 = vld [vmem:[#allocation10 + $0x9c] sm:$0xf]
    %v1771 = vld [vmem:[#allocation10 + $0xac] sm:$0xf]
    %v1772 = vld [vmem:[#allocation10 + $0xbc] sm:$0xf]
    %v1773 = vld [vmem:[#allocation10 + $0xcc] sm:$0xf]
    %v1774 = vld [vmem:[#allocation10 + $0xdc] sm:$0xf]
    %v1775 = vld [vmem:[#allocation10 + $0xec] sm:$0xf]
    %v1776 = vld [vmem:[#allocation10 + $0xfc] sm:$0xf]
    %v1793 = vunpack.c.l.b16 %v1761
    %v1794 = vunpack.c.l.b16 %v1762
    %v1795 = vunpack.c.l.b16 %v1763
    %v1796 = vunpack.c.l.b16 %v1764
    %v1797 = vunpack.c.l.b16 %v1765
    %v1798 = vunpack.c.l.b16 %v1766
    %v1799 = vunpack.c.l.b16 %v1767
    %v1800 = vunpack.c.l.b16 %v1768
    %v1801 = vunpack.c.l.b16 %v1769
    %v1802 = vunpack.c.l.b16 %v1770
    %v1803 = vunpack.c.l.b16 %v1771
    %v1804 = vunpack.c.l.b16 %v1772
    %v1805 = vunpack.c.l.b16 %v1773
    %v1806 = vunpack.c.l.b16 %v1774
    %v1807 = vunpack.c.l.b16 %v1775
    %v1808 = vunpack.c.l.b16 %v1776
    %v1809 = vpack.c.b16 %v1794, %v1793
    %v1810 = vpack.c.b16 %v1796, %v1795
    %v1811 = vpack.c.b16 %v1798, %v1797
    %v1812 = vpack.c.b16 %v1800, %v1799
    %v1813 = vpack.c.b16 %v1802, %v1801
    %v1814 = vpack.c.b16 %v1804, %v1803
    %v1815 = vpack.c.b16 %v1806, %v1805
    %v1816 = vpack.c.b16 %v1808, %v1807
    %1825 = vmatprep.subr.bf16.mxu0 0
    %1826 = vmatpush1.bf16.msra.mxu0 %v1809
    %1827 = vmatprep.subr.bf16.mxu0 0
    %1828 = vmatpush1.bf16.msra.mxu0 %v1810
    %1829 = vmatprep.subr.bf16.mxu0 0
    %1830 = vmatpush1.bf16.msra.mxu0 %v1811
    %1831 = vmatprep.subr.bf16.mxu0 0
    %1832 = vmatpush1.bf16.msra.mxu0 %v1812
    %1833 = vmatprep.subr.bf16.mxu0 0
    %1834 = vmatpush1.bf16.msra.mxu0 %v1813
    %1835 = vmatprep.subr.bf16.mxu0 0
    %1836 = vmatpush1.bf16.msra.mxu0 %v1814
    %1837 = vmatprep.subr.bf16.mxu0 0
    %1838 = vmatpush1.bf16.msra.mxu0 %v1815
    %1839 = vmatprep.subr.bf16.mxu0 0
    %1840 = vmatpush1.bf16.msra.mxu0 %v1816
    %1841 = vmatprep.subr.bf16.mxu0 0
    %1842 = vmatpush1.bf16.msra.mxu0 0
    %1843 = vmatprep.subr.bf16.mxu0 0
    %1844 = vmatpush1.bf16.msra.mxu0 0
    %1845 = vmatprep.subr.bf16.mxu0 0
    %1846 = vmatpush1.bf16.msra.mxu0 0
    %1847 = vmatprep.subr.bf16.mxu0 0
    %1848 = vmatpush1.bf16.msra.mxu0 0
    %1849 = vmatprep.subr.bf16.mxu0 0
    %1850 = vmatpush1.bf16.msra.mxu0 0
    %1851 = vmatprep.subr.bf16.mxu0 0
    %1852 = vmatpush1.bf16.msra.mxu0 0
    %1853 = vmatprep.subr.bf16.mxu0 0
    %1854 = vmatpush1.bf16.msra.mxu0 0
    %1855 = vmatprep.subr.bf16.mxu0 0
    %1856 = vmatpush1.bf16.msra.mxu0 0
    %1857 = vmatprep.mubr.bf16.mxu0 0
    %1858 = vmatmul.mubr.bf16.gmra.mrb[0].mxu0 %v1425
    %v1859 = vpop.f32.mrb[0].mxu0
    %v1860 = vadd.f32 0.0, %v1859
    %v1861 = vpop.f32.mrb[0].mxu0
    %v1862 = vpop.f32.mrb[0].mxu0
    %v1863 = vpop.f32.mrb[0].mxu0
    %1864 = vdwg.mxu0
    %v1865 = vadd.f32 %v1760, %v1860
    %v1866 = vxor.u32 %v1865, 2147483648
    %v1867 = vmul.f32 %v1866, 1.442695
    %v1868 = vpow.pop %v1867
    %v1869 = vadd.f32 %v1868, 1.0
    %v1870 = vrcp.pop %v1869
    %v1871 = vmul.f32 1.0, %v1870
    %v1872 = vld [vmem:[#allocation4] sm:$0xff]
    %v1873 = vmul.f32 %v1652, %v1872
    %v1874 = vmul.f32 %v1540, %v1759
    %v1875 = vadd.f32 %v1873, %v1874
    %1876 = vst [vmem:[#allocation4] sm:$0xff] %v1875
    %v1877 = vtanh.pop %v1875
    %v1878 = vmul.f32 %v1871, %v1877
    %s1879 = scalar_lea.vmem [#allocation3], 24
    %1880 = vst [vmem:[%s1879] sm:$0xff] %v1878
    %v1881 = vld [vmem:[%s1879] sm:$0xff]
    %v1882 = vpack.c.bf16 %v1881, %v1881
    %s1883 = smul.u32 3, 4
    %s1884 = smul.addr %s1883, 8
    %s1885 = scalar_lea.vmem [#allocation2], %s1884
    %v1886 = vld [vmem:[%s1885] sm:$0xff]
    %v1887 = vld [vmem:[#allocation10] sm:$0xf]
    %v1888 = vld [vmem:[#allocation10 + $0x10] sm:$0xf]
    %v1889 = vld [vmem:[#allocation10 + $0x20] sm:$0xf]
    %v1890 = vld [vmem:[#allocation10 + $0x30] sm:$0xf]
    %v1891 = vld [vmem:[#allocation10 + $0x40] sm:$0xf]
    %v1892 = vld [vmem:[#allocation10 + $0x50] sm:$0xf]
    %v1893 = vld [vmem:[#allocation10 + $0x60] sm:$0xf]
    %v1894 = vld [vmem:[#allocation10 + $0x70] sm:$0xf]
    %v1895 = vld [vmem:[#allocation10 + $0x80] sm:$0xf]
    %v1896 = vld [vmem:[#allocation10 + $0x90] sm:$0xf]
    %v1897 = vld [vmem:[#allocation10 + $0xa0] sm:$0xf]
    %v1898 = vld [vmem:[#allocation10 + $0xb0] sm:$0xf]
    %v1899 = vld [vmem:[#allocation10 + $0xc0] sm:$0xf]
    %v1900 = vld [vmem:[#allocation10 + $0xd0] sm:$0xf]
    %v1901 = vld [vmem:[#allocation10 + $0xe0] sm:$0xf]
    %v1902 = vld [vmem:[#allocation10 + $0xf0] sm:$0xf]
    %v1919 = vunpack.c.l.b16 %v1887
    %v1920 = vunpack.c.l.b16 %v1888
    %v1921 = vunpack.c.l.b16 %v1889
    %v1922 = vunpack.c.l.b16 %v1890
    %v1923 = vunpack.c.l.b16 %v1891
    %v1924 = vunpack.c.l.b16 %v1892
    %v1925 = vunpack.c.l.b16 %v1893
    %v1926 = vunpack.c.l.b16 %v1894
    %v1927 = vunpack.c.l.b16 %v1895
    %v1928 = vunpack.c.l.b16 %v1896
    %v1929 = vunpack.c.l.b16 %v1897
    %v1930 = vunpack.c.l.b16 %v1898
    %v1931 = vunpack.c.l.b16 %v1899
    %v1932 = vunpack.c.l.b16 %v1900
    %v1933 = vunpack.c.l.b16 %v1901
    %v1934 = vunpack.c.l.b16 %v1902
    %v1935 = vpack.c.b16 %v1920, %v1919
    %v1936 = vpack.c.b16 %v1922, %v1921
    %v1937 = vpack.c.b16 %v1924, %v1923
    %v1938 = vpack.c.b16 %v1926, %v1925
    %v1939 = vpack.c.b16 %v1928, %v1927
    %v1940 = vpack.c.b16 %v1930, %v1929
    %v1941 = vpack.c.b16 %v1932, %v1931
    %v1942 = vpack.c.b16 %v1934, %v1933
    %1951 = vmatprep.subr.bf16.mxu0 0
    %1952 = vmatpush1.bf16.msra.mxu0 %v1935
    %1953 = vmatprep.subr.bf16.mxu0 0
    %1954 = vmatpush1.bf16.msra.mxu0 %v1936
    %1955 = vmatprep.subr.bf16.mxu0 0
    %1956 = vmatpush1.bf16.msra.mxu0 %v1937
    %1957 = vmatprep.subr.bf16.mxu0 0
    %1958 = vmatpush1.bf16.msra.mxu0 %v1938
    %1959 = vmatprep.subr.bf16.mxu0 0
    %1960 = vmatpush1.bf16.msra.mxu0 %v1939
    %1961 = vmatprep.subr.bf16.mxu0 0
    %1962 = vmatpush1.bf16.msra.mxu0 %v1940
    %1963 = vmatprep.subr.bf16.mxu0 0
    %1964 = vmatpush1.bf16.msra.mxu0 %v1941
    %1965 = vmatprep.subr.bf16.mxu0 0
    %1966 = vmatpush1.bf16.msra.mxu0 %v1942
    %1967 = vmatprep.subr.bf16.mxu0 0
    %1968 = vmatpush1.bf16.msra.mxu0 0
    %1969 = vmatprep.subr.bf16.mxu0 0
    %1970 = vmatpush1.bf16.msra.mxu0 0
    %1971 = vmatprep.subr.bf16.mxu0 0
    %1972 = vmatpush1.bf16.msra.mxu0 0
    %1973 = vmatprep.subr.bf16.mxu0 0
    %1974 = vmatpush1.bf16.msra.mxu0 0
    %1975 = vmatprep.subr.bf16.mxu0 0
    %1976 = vmatpush1.bf16.msra.mxu0 0
    %1977 = vmatprep.subr.bf16.mxu0 0
    %1978 = vmatpush1.bf16.msra.mxu0 0
    %1979 = vmatprep.subr.bf16.mxu0 0
    %1980 = vmatpush1.bf16.msra.mxu0 0
    %1981 = vmatprep.subr.bf16.mxu0 0
    %1982 = vmatpush1.bf16.msra.mxu0 0
    %1983 = vmatprep.mubr.bf16.mxu0 0
    %1984 = vmatmul.mubr.bf16.gmra.mrb[0].mxu0 %v1882
    %v1985 = vpop.f32.mrb[0].mxu0
    %v1986 = vadd.f32 0.0, %v1985
    %v1987 = vpop.f32.mrb[0].mxu0
    %v1988 = vpop.f32.mrb[0].mxu0
    %v1989 = vpop.f32.mrb[0].mxu0
    %1990 = vdwg.mxu0
    %v1991 = vadd.f32 %v1886, %v1986
    %v1992 = vxor.u32 %v1991, 2147483648
    %v1993 = vmul.f32 %v1992, 1.442695
    %v1994 = vpow.pop %v1993
    %v1995 = vadd.f32 %v1994, 1.0
    %v1996 = vrcp.pop %v1995
    %v1997 = vmul.f32 1.0, %v1996
    %v1998 = vld [vmem:[%s1885 + $0x8] sm:$0xff]
    %v1999 = vld [vmem:[#allocation10 + $0x4] sm:$0xf]
    %v2000 = vld [vmem:[#allocation10 + $0x14] sm:$0xf]
    %v2001 = vld [vmem:[#allocation10 + $0x24] sm:$0xf]
    %v2002 = vld [vmem:[#allocation10 + $0x34] sm:$0xf]
    %v2003 = vld [vmem:[#allocation10 + $0x44] sm:$0xf]
    %v2004 = vld [vmem:[#allocation10 + $0x54] sm:$0xf]
    %v2005 = vld [vmem:[#allocation10 + $0x64] sm:$0xf]
    %v2006 = vld [vmem:[#allocation10 + $0x74] sm:$0xf]
    %v2007 = vld [vmem:[#allocation10 + $0x84] sm:$0xf]
    %v2008 = vld [vmem:[#allocation10 + $0x94] sm:$0xf]
    %v2009 = vld [vmem:[#allocation10 + $0xa4] sm:$0xf]
    %v2010 = vld [vmem:[#allocation10 + $0xb4] sm:$0xf]
    %v2011 = vld [vmem:[#allocation10 + $0xc4] sm:$0xf]
    %v2012 = vld [vmem:[#allocation10 + $0xd4] sm:$0xf]
    %v2013 = vld [vmem:[#allocation10 + $0xe4] sm:$0xf]
    %v2014 = vld [vmem:[#allocation10 + $0xf4] sm:$0xf]
    %v2031 = vunpack.c.l.b16 %v1999
    %v2032 = vunpack.c.l.b16 %v2000
    %v2033 = vunpack.c.l.b16 %v2001
    %v2034 = vunpack.c.l.b16 %v2002
    %v2035 = vunpack.c.l.b16 %v2003
    %v2036 = vunpack.c.l.b16 %v2004
    %v2037 = vunpack.c.l.b16 %v2005
    %v2038 = vunpack.c.l.b16 %v2006
    %v2039 = vunpack.c.l.b16 %v2007
    %v2040 = vunpack.c.l.b16 %v2008
    %v2041 = vunpack.c.l.b16 %v2009
    %v2042 = vunpack.c.l.b16 %v2010
    %v2043 = vunpack.c.l.b16 %v2011
    %v2044 = vunpack.c.l.b16 %v2012
    %v2045 = vunpack.c.l.b16 %v2013
    %v2046 = vunpack.c.l.b16 %v2014
    %v2047 = vpack.c.b16 %v2032, %v2031
    %v2048 = vpack.c.b16 %v2034, %v2033
    %v2049 = vpack.c.b16 %v2036, %v2035
    %v2050 = vpack.c.b16 %v2038, %v2037
    %v2051 = vpack.c.b16 %v2040, %v2039
    %v2052 = vpack.c.b16 %v2042, %v2041
    %v2053 = vpack.c.b16 %v2044, %v2043
    %v2054 = vpack.c.b16 %v2046, %v2045
    %2063 = vmatprep.subr.bf16.mxu0 0
    %2064 = vmatpush1.bf16.msra.mxu0 %v2047
    %2065 = vmatprep.subr.bf16.mxu0 0
    %2066 = vmatpush1.bf16.msra.mxu0 %v2048
    %2067 = vmatprep.subr.bf16.mxu0 0
    %2068 = vmatpush1.bf16.msra.mxu0 %v2049
    %2069 = vmatprep.subr.bf16.mxu0 0
    %2070 = vmatpush1.bf16.msra.mxu0 %v2050
    %2071 = vmatprep.subr.bf16.mxu0 0
    %2072 = vmatpush1.bf16.msra.mxu0 %v2051
    %2073 = vmatprep.subr.bf16.mxu0 0
    %2074 = vmatpush1.bf16.msra.mxu0 %v2052
    %2075 = vmatprep.subr.bf16.mxu0 0
    %2076 = vmatpush1.bf16.msra.mxu0 %v2053
    %2077 = vmatprep.subr.bf16.mxu0 0
    %2078 = vmatpush1.bf16.msra.mxu0 %v2054
    %2079 = vmatprep.subr.bf16.mxu0 0
    %2080 = vmatpush1.bf16.msra.mxu0 0
    %2081 = vmatprep.subr.bf16.mxu0 0
    %2082 = vmatpush1.bf16.msra.mxu0 0
    %2083 = vmatprep.subr.bf16.mxu0 0
    %2084 = vmatpush1.bf16.msra.mxu0 0
    %2085 = vmatprep.subr.bf16.mxu0 0
    %2086 = vmatpush1.bf16.msra.mxu0 0
    %2087 = vmatprep.subr.bf16.mxu0 0
    %2088 = vmatpush1.bf16.msra.mxu0 0
    %2089 = vmatprep.subr.bf16.mxu0 0
    %2090 = vmatpush1.bf16.msra.mxu0 0
    %2091 = vmatprep.subr.bf16.mxu0 0
    %2092 = vmatpush1.bf16.msra.mxu0 0
    %2093 = vmatprep.subr.bf16.mxu0 0
    %2094 = vmatpush1.bf16.msra.mxu0 0
    %2095 = vmatprep.mubr.bf16.mxu0 0
    %2096 = vmatmul.mubr.bf16.gmra.mrb[0].mxu0 %v1882
    %v2097 = vpop.f32.mrb[0].mxu0
    %v2098 = vadd.f32 0.0, %v2097
    %v2099 = vpop.f32.mrb[0].mxu0
    %v2100 = vpop.f32.mrb[0].mxu0
    %v2101 = vpop.f32.mrb[0].mxu0
    %2102 = vdwg.mxu0
    %v2103 = vadd.f32 %v1998, %v2098
    %v2104 = vxor.u32 %v2103, 2147483648
    %v2105 = vmul.f32 %v2104, 1.442695
    %v2106 = vpow.pop %v2105
    %v2107 = vadd.f32 %v2106, 1.0
    %v2108 = vrcp.pop %v2107
    %v2109 = vmul.f32 1.0, %v2108
    %v2110 = vld [vmem:[%s1885 + $0x10] sm:$0xff]
    %v2111 = vld [vmem:[#allocation10 + $0x8] sm:$0xf]
    %v2112 = vld [vmem:[#allocation10 + $0x18] sm:$0xf]
    %v2113 = vld [vmem:[#allocation10 + $0x28] sm:$0xf]
    %v2114 = vld [vmem:[#allocation10 + $0x38] sm:$0xf]
    %v2115 = vld [vmem:[#allocation10 + $0x48] sm:$0xf]
    %v2116 = vld [vmem:[#allocation10 + $0x58] sm:$0xf]
    %v2117 = vld [vmem:[#allocation10 + $0x68] sm:$0xf]
    %v2118 = vld [vmem:[#allocation10 + $0x78] sm:$0xf]
    %v2119 = vld [vmem:[#allocation10 + $0x88] sm:$0xf]
    %v2120 = vld [vmem:[#allocation10 + $0x98] sm:$0xf]
    %v2121 = vld [vmem:[#allocation10 + $0xa8] sm:$0xf]
    %v2122 = vld [vmem:[#allocation10 + $0xb8] sm:$0xf]
    %v2123 = vld [vmem:[#allocation10 + $0xc8] sm:$0xf]
    %v2124 = vld [vmem:[#allocation10 + $0xd8] sm:$0xf]
    %v2125 = vld [vmem:[#allocation10 + $0xe8] sm:$0xf]
    %v2126 = vld [vmem:[#allocation10 + $0xf8] sm:$0xf]
    %v2143 = vunpack.c.l.b16 %v2111
    %v2144 = vunpack.c.l.b16 %v2112
    %v2145 = vunpack.c.l.b16 %v2113
    %v2146 = vunpack.c.l.b16 %v2114
    %v2147 = vunpack.c.l.b16 %v2115
    %v2148 = vunpack.c.l.b16 %v2116
    %v2149 = vunpack.c.l.b16 %v2117
    %v2150 = vunpack.c.l.b16 %v2118
    %v2151 = vunpack.c.l.b16 %v2119
    %v2152 = vunpack.c.l.b16 %v2120
    %v2153 = vunpack.c.l.b16 %v2121
    %v2154 = vunpack.c.l.b16 %v2122
    %v2155 = vunpack.c.l.b16 %v2123
    %v2156 = vunpack.c.l.b16 %v2124
    %v2157 = vunpack.c.l.b16 %v2125
    %v2158 = vunpack.c.l.b16 %v2126
    %v2159 = vpack.c.b16 %v2144, %v2143
    %v2160 = vpack.c.b16 %v2146, %v2145
    %v2161 = vpack.c.b16 %v2148, %v2147
    %v2162 = vpack.c.b16 %v2150, %v2149
    %v2163 = vpack.c.b16 %v2152, %v2151
    %v2164 = vpack.c.b16 %v2154, %v2153
    %v2165 = vpack.c.b16 %v2156, %v2155
    %v2166 = vpack.c.b16 %v2158, %v2157
    %2175 = vmatprep.subr.bf16.mxu0 0
    %2176 = vmatpush1.bf16.msra.mxu0 %v2159
    %2177 = vmatprep.subr.bf16.mxu0 0
    %2178 = vmatpush1.bf16.msra.mxu0 %v2160
    %2179 = vmatprep.subr.bf16.mxu0 0
    %2180 = vmatpush1.bf16.msra.mxu0 %v2161
    %2181 = vmatprep.subr.bf16.mxu0 0
    %2182 = vmatpush1.bf16.msra.mxu0 %v2162
    %2183 = vmatprep.subr.bf16.mxu0 0
    %2184 = vmatpush1.bf16.msra.mxu0 %v2163
    %2185 = vmatprep.subr.bf16.mxu0 0
    %2186 = vmatpush1.bf16.msra.mxu0 %v2164
    %2187 = vmatprep.subr.bf16.mxu0 0
    %2188 = vmatpush1.bf16.msra.mxu0 %v2165
    %2189 = vmatprep.subr.bf16.mxu0 0
    %2190 = vmatpush1.bf16.msra.mxu0 %v2166
    %2191 = vmatprep.subr.bf16.mxu0 0
    %2192 = vmatpush1.bf16.msra.mxu0 0
    %2193 = vmatprep.subr.bf16.mxu0 0
    %2194 = vmatpush1.bf16.msra.mxu0 0
    %2195 = vmatprep.subr.bf16.mxu0 0
    %2196 = vmatpush1.bf16.msra.mxu0 0
    %2197 = vmatprep.subr.bf16.mxu0 0
    %2198 = vmatpush1.bf16.msra.mxu0 0
    %2199 = vmatprep.subr.bf16.mxu0 0
    %2200 = vmatpush1.bf16.msra.mxu0 0
    %2201 = vmatprep.subr.bf16.mxu0 0
    %2202 = vmatpush1.bf16.msra.mxu0 0
    %2203 = vmatprep.subr.bf16.mxu0 0
    %2204 = vmatpush1.bf16.msra.mxu0 0
    %2205 = vmatprep.subr.bf16.mxu0 0
    %2206 = vmatpush1.bf16.msra.mxu0 0
    %2207 = vmatprep.mubr.bf16.mxu0 0
    %2208 = vmatmul.mubr.bf16.gmra.mrb[0].mxu0 %v1882
    %v2209 = vpop.f32.mrb[0].mxu0
    %v2210 = vadd.f32 0.0, %v2209
    %v2211 = vpop.f32.mrb[0].mxu0
    %v2212 = vpop.f32.mrb[0].mxu0
    %v2213 = vpop.f32.mrb[0].mxu0
    %2214 = vdwg.mxu0
    %v2215 = vadd.f32 %v2110, %v2210
    %v2216 = vtanh.pop %v2215
    %v2217 = vld [vmem:[%s1885 + $0x18] sm:$0xff]
    %v2218 = vld [vmem:[#allocation10 + $0xc] sm:$0xf]
    %v2219 = vld [vmem:[#allocation10 + $0x1c] sm:$0xf]
    %v2220 = vld [vmem:[#allocation10 + $0x2c] sm:$0xf]
    %v2221 = vld [vmem:[#allocation10 + $0x3c] sm:$0xf]
    %v2222 = vld [vmem:[#allocation10 + $0x4c] sm:$0xf]
    %v2223 = vld [vmem:[#allocation10 + $0x5c] sm:$0xf]
    %v2224 = vld [vmem:[#allocation10 + $0x6c] sm:$0xf]
    %v2225 = vld [vmem:[#allocation10 + $0x7c] sm:$0xf]
    %v2226 = vld [vmem:[#allocation10 + $0x8c] sm:$0xf]
    %v2227 = vld [vmem:[#allocation10 + $0x9c] sm:$0xf]
    %v2228 = vld [vmem:[#allocation10 + $0xac] sm:$0xf]
    %v2229 = vld [vmem:[#allocation10 + $0xbc] sm:$0xf]
    %v2230 = vld [vmem:[#allocation10 + $0xcc] sm:$0xf]
    %v2231 = vld [vmem:[#allocation10 + $0xdc] sm:$0xf]
    %v2232 = vld [vmem:[#allocation10 + $0xec] sm:$0xf]
    %v2233 = vld [vmem:[#allocation10 + $0xfc] sm:$0xf]
    %v2250 = vunpack.c.l.b16 %v2218
    %v2251 = vunpack.c.l.b16 %v2219
    %v2252 = vunpack.c.l.b16 %v2220
    %v2253 = vunpack.c.l.b16 %v2221
    %v2254 = vunpack.c.l.b16 %v2222
    %v2255 = vunpack.c.l.b16 %v2223
    %v2256 = vunpack.c.l.b16 %v2224
    %v2257 = vunpack.c.l.b16 %v2225
    %v2258 = vunpack.c.l.b16 %v2226
    %v2259 = vunpack.c.l.b16 %v2227
    %v2260 = vunpack.c.l.b16 %v2228
    %v2261 = vunpack.c.l.b16 %v2229
    %v2262 = vunpack.c.l.b16 %v2230
    %v2263 = vunpack.c.l.b16 %v2231
    %v2264 = vunpack.c.l.b16 %v2232
    %v2265 = vunpack.c.l.b16 %v2233
    %v2266 = vpack.c.b16 %v2251, %v2250
    %v2267 = vpack.c.b16 %v2253, %v2252
    %v2268 = vpack.c.b16 %v2255, %v2254
    %v2269 = vpack.c.b16 %v2257, %v2256
    %v2270 = vpack.c.b16 %v2259, %v2258
    %v2271 = vpack.c.b16 %v2261, %v2260
    %v2272 = vpack.c.b16 %v2263, %v2262
    %v2273 = vpack.c.b16 %v2265, %v2264
    %2282 = vmatprep.subr.bf16.mxu0 0
    %2283 = vmatpush1.bf16.msra.mxu0 %v2266
    %2284 = vmatprep.subr.bf16.mxu0 0
    %2285 = vmatpush1.bf16.msra.mxu0 %v2267
    %2286 = vmatprep.subr.bf16.mxu0 0
    %2287 = vmatpush1.bf16.msra.mxu0 %v2268
    %2288 = vmatprep.subr.bf16.mxu0 0
    %2289 = vmatpush1.bf16.msra.mxu0 %v2269
    %2290 = vmatprep.subr.bf16.mxu0 0
    %2291 = vmatpush1.bf16.msra.mxu0 %v2270
    %2292 = vmatprep.subr.bf16.mxu0 0
    %2293 = vmatpush1.bf16.msra.mxu0 %v2271
    %2294 = vmatprep.subr.bf16.mxu0 0
    %2295 = vmatpush1.bf16.msra.mxu0 %v2272
    %2296 = vmatprep.subr.bf16.mxu0 0
    %2297 = vmatpush1.bf16.msra.mxu0 %v2273
    %2298 = vmatprep.subr.bf16.mxu0 0
    %2299 = vmatpush1.bf16.msra.mxu0 0
    %2300 = vmatprep.subr.bf16.mxu0 0
    %2301 = vmatpush1.bf16.msra.mxu0 0
    %2302 = vmatprep.subr.bf16.mxu0 0
    %2303 = vmatpush1.bf16.msra.mxu0 0
    %2304 = vmatprep.subr.bf16.mxu0 0
    %2305 = vmatpush1.bf16.msra.mxu0 0
    %2306 = vmatprep.subr.bf16.mxu0 0
    %2307 = vmatpush1.bf16.msra.mxu0 0
    %2308 = vmatprep.subr.bf16.mxu0 0
    %2309 = vmatpush1.bf16.msra.mxu0 0
    %2310 = vmatprep.subr.bf16.mxu0 0
    %2311 = vmatpush1.bf16.msra.mxu0 0
    %2312 = vmatprep.subr.bf16.mxu0 0
    %2313 = vmatpush1.bf16.msra.mxu0 0
    %2314 = vmatprep.mubr.bf16.mxu0 0
    %2315 = vmatmul.mubr.bf16.gmra.mrb[0].mxu0 %v1882
    %v2316 = vpop.f32.mrb[0].mxu0
    %v2317 = vadd.f32 0.0, %v2316
    %v2318 = vpop.f32.mrb[0].mxu0
    %v2319 = vpop.f32.mrb[0].mxu0
    %v2320 = vpop.f32.mrb[0].mxu0
    %2321 = vdwg.mxu0
    %v2322 = vadd.f32 %v2217, %v2317
    %v2323 = vxor.u32 %v2322, 2147483648
    %v2324 = vmul.f32 %v2323, 1.442695
    %v2325 = vpow.pop %v2324
    %v2326 = vadd.f32 %v2325, 1.0
    %v2327 = vrcp.pop %v2326
    %v2328 = vmul.f32 1.0, %v2327
    %v2329 = vld [vmem:[#allocation4] sm:$0xff]
    %v2330 = vmul.f32 %v2109, %v2329
    %v2331 = vmul.f32 %v1997, %v2216
    %v2332 = vadd.f32 %v2330, %v2331
    %2333 = vst [vmem:[#allocation4] sm:$0xff] %v2332
    %v2334 = vtanh.pop %v2332
    %v2335 = vmul.f32 %v2328, %v2334
    %s2336 = scalar_lea.vmem [#allocation3], 32
    %2337 = vst [vmem:[%s2336] sm:$0xff] %v2335
    %v2338 = vld [vmem:[%s2336] sm:$0xff]
    %v2339 = vpack.c.bf16 %v2338, %v2338
    %s2340 = smul.u32 4, 4
    %s2341 = smul.addr %s2340, 8
    %s2342 = scalar_lea.vmem [#allocation2], %s2341
    %v2343 = vld [vmem:[%s2342] sm:$0xff]
    %v2344 = vld [vmem:[#allocation10] sm:$0xf]
    %v2345 = vld [vmem:[#allocation10 + $0x10] sm:$0xf]
    %v2346 = vld [vmem:[#allocation10 + $0x20] sm:$0xf]
    %v2347 = vld [vmem:[#allocation10 + $0x30] sm:$0xf]
    %v2348 = vld [vmem:[#allocation10 + $0x40] sm:$0xf]
    %v2349 = vld [vmem:[#allocation10 + $0x50] sm:$0xf]
    %v2350 = vld [vmem:[#allocation10 + $0x60] sm:$0xf]
    %v2351 = vld [vmem:[#allocation10 + $0x70] sm:$0xf]
    %v2352 = vld [vmem:[#allocation10 + $0x80] sm:$0xf]
    %v2353 = vld [vmem:[#allocation10 + $0x90] sm:$0xf]
    %v2354 = vld [vmem:[#allocation10 + $0xa0] sm:$0xf]
    %v2355 = vld [vmem:[#allocation10 + $0xb0] sm:$0xf]
    %v2356 = vld [vmem:[#allocation10 + $0xc0] sm:$0xf]
    %v2357 = vld [vmem:[#allocation10 + $0xd0] sm:$0xf]
    %v2358 = vld [vmem:[#allocation10 + $0xe0] sm:$0xf]
    %v2359 = vld [vmem:[#allocation10 + $0xf0] sm:$0xf]
    %v2376 = vunpack.c.l.b16 %v2344
    %v2377 = vunpack.c.l.b16 %v2345
    %v2378 = vunpack.c.l.b16 %v2346
    %v2379 = vunpack.c.l.b16 %v2347
    %v2380 = vunpack.c.l.b16 %v2348
    %v2381 = vunpack.c.l.b16 %v2349
    %v2382 = vunpack.c.l.b16 %v2350
    %v2383 = vunpack.c.l.b16 %v2351
    %v2384 = vunpack.c.l.b16 %v2352
    %v2385 = vunpack.c.l.b16 %v2353
    %v2386 = vunpack.c.l.b16 %v2354
    %v2387 = vunpack.c.l.b16 %v2355
    %v2388 = vunpack.c.l.b16 %v2356
    %v2389 = vunpack.c.l.b16 %v2357
    %v2390 = vunpack.c.l.b16 %v2358
    %v2391 = vunpack.c.l.b16 %v2359
    %v2392 = vpack.c.b16 %v2377, %v2376
    %v2393 = vpack.c.b16 %v2379, %v2378
    %v2394 = vpack.c.b16 %v2381, %v2380
    %v2395 = vpack.c.b16 %v2383, %v2382
    %v2396 = vpack.c.b16 %v2385, %v2384
    %v2397 = vpack.c.b16 %v2387, %v2386
    %v2398 = vpack.c.b16 %v2389, %v2388
    %v2399 = vpack.c.b16 %v2391, %v2390
    %2408 = vmatprep.subr.bf16.mxu0 0
    %2409 = vmatpush1.bf16.msra.mxu0 %v2392
    %2410 = vmatprep.subr.bf16.mxu0 0
    %2411 = vmatpush1.bf16.msra.mxu0 %v2393
    %2412 = vmatprep.subr.bf16.mxu0 0
    %2413 = vmatpush1.bf16.msra.mxu0 %v2394
    %2414 = vmatprep.subr.bf16.mxu0 0
    %2415 = vmatpush1.bf16.msra.mxu0 %v2395
    %2416 = vmatprep.subr.bf16.mxu0 0
    %2417 = vmatpush1.bf16.msra.mxu0 %v2396
    %2418 = vmatprep.subr.bf16.mxu0 0
    %2419 = vmatpush1.bf16.msra.mxu0 %v2397
    %2420 = vmatprep.subr.bf16.mxu0 0
    %2421 = vmatpush1.bf16.msra.mxu0 %v2398
    %2422 = vmatprep.subr.bf16.mxu0 0
    %2423 = vmatpush1.bf16.msra.mxu0 %v2399
    %2424 = vmatprep.subr.bf16.mxu0 0
    %2425 = vmatpush1.bf16.msra.mxu0 0
    %2426 = vmatprep.subr.bf16.mxu0 0
    %2427 = vmatpush1.bf16.msra.mxu0 0
    %2428 = vmatprep.subr.bf16.mxu0 0
    %2429 = vmatpush1.bf16.msra.mxu0 0
    %2430 = vmatprep.subr.bf16.mxu0 0
    %2431 = vmatpush1.bf16.msra.mxu0 0
    %2432 = vmatprep.subr.bf16.mxu0 0
    %2433 = vmatpush1.bf16.msra.mxu0 0
    %2434 = vmatprep.subr.bf16.mxu0 0
    %2435 = vmatpush1.bf16.msra.mxu0 0
    %2436 = vmatprep.subr.bf16.mxu0 0
    %2437 = vmatpush1.bf16.msra.mxu0 0
    %2438 = vmatprep.subr.bf16.mxu0 0
    %2439 = vmatpush1.bf16.msra.mxu0 0
    %2440 = vmatprep.mubr.bf16.mxu0 0
    %2441 = vmatmul.mubr.bf16.gmra.mrb[0].mxu0 %v2339
    %v2442 = vpop.f32.mrb[0].mxu0
    %v2443 = vadd.f32 0.0, %v2442
    %v2444 = vpop.f32.mrb[0].mxu0
    %v2445 = vpop.f32.mrb[0].mxu0
    %v2446 = vpop.f32.mrb[0].mxu0
    %2447 = vdwg.mxu0
    %v2448 = vadd.f32 %v2343, %v2443
    %v2449 = vxor.u32 %v2448, 2147483648
    %v2450 = vmul.f32 %v2449, 1.442695
    %v2451 = vpow.pop %v2450
    %v2452 = vadd.f32 %v2451, 1.0
    %v2453 = vrcp.pop %v2452
    %v2454 = vmul.f32 1.0, %v2453
    %v2455 = vld [vmem:[%s2342 + $0x8] sm:$0xff]
    %v2456 = vld [vmem:[#allocation10 + $0x4] sm:$0xf]
    %v2457 = vld [vmem:[#allocation10 + $0x14] sm:$0xf]
    %v2458 = vld [vmem:[#allocation10 + $0x24] sm:$0xf]
    %v2459 = vld [vmem:[#allocation10 + $0x34] sm:$0xf]
    %v2460 = vld [vmem:[#allocation10 + $0x44] sm:$0xf]
    %v2461 = vld [vmem:[#allocation10 + $0x54] sm:$0xf]
    %v2462 = vld [vmem:[#allocation10 + $0x64] sm:$0xf]
    %v2463 = vld [vmem:[#allocation10 + $0x74] sm:$0xf]
    %v2464 = vld [vmem:[#allocation10 + $0x84] sm:$0xf]
    %v2465 = vld [vmem:[#allocation10 + $0x94] sm:$0xf]
    %v2466 = vld [vmem:[#allocation10 + $0xa4] sm:$0xf]
    %v2467 = vld [vmem:[#allocation10 + $0xb4] sm:$0xf]
    %v2468 = vld [vmem:[#allocation10 + $0xc4] sm:$0xf]
    %v2469 = vld [vmem:[#allocation10 + $0xd4] sm:$0xf]
    %v2470 = vld [vmem:[#allocation10 + $0xe4] sm:$0xf]
    %v2471 = vld [vmem:[#allocation10 + $0xf4] sm:$0xf]
    %v2488 = vunpack.c.l.b16 %v2456
    %v2489 = vunpack.c.l.b16 %v2457
    %v2490 = vunpack.c.l.b16 %v2458
    %v2491 = vunpack.c.l.b16 %v2459
    %v2492 = vunpack.c.l.b16 %v2460
    %v2493 = vunpack.c.l.b16 %v2461
    %v2494 = vunpack.c.l.b16 %v2462
    %v2495 = vunpack.c.l.b16 %v2463
    %v2496 = vunpack.c.l.b16 %v2464
    %v2497 = vunpack.c.l.b16 %v2465
    %v2498 = vunpack.c.l.b16 %v2466
    %v2499 = vunpack.c.l.b16 %v2467
    %v2500 = vunpack.c.l.b16 %v2468
    %v2501 = vunpack.c.l.b16 %v2469
    %v2502 = vunpack.c.l.b16 %v2470
    %v2503 = vunpack.c.l.b16 %v2471
    %v2504 = vpack.c.b16 %v2489, %v2488
    %v2505 = vpack.c.b16 %v2491, %v2490
    %v2506 = vpack.c.b16 %v2493, %v2492
    %v2507 = vpack.c.b16 %v2495, %v2494
    %v2508 = vpack.c.b16 %v2497, %v2496
    %v2509 = vpack.c.b16 %v2499, %v2498
    %v2510 = vpack.c.b16 %v2501, %v2500
    %v2511 = vpack.c.b16 %v2503, %v2502
    %2520 = vmatprep.subr.bf16.mxu0 0
    %2521 = vmatpush1.bf16.msra.mxu0 %v2504
    %2522 = vmatprep.subr.bf16.mxu0 0
    %2523 = vmatpush1.bf16.msra.mxu0 %v2505
    %2524 = vmatprep.subr.bf16.mxu0 0
    %2525 = vmatpush1.bf16.msra.mxu0 %v2506
    %2526 = vmatprep.subr.bf16.mxu0 0
    %2527 = vmatpush1.bf16.msra.mxu0 %v2507
    %2528 = vmatprep.subr.bf16.mxu0 0
    %2529 = vmatpush1.bf16.msra.mxu0 %v2508
    %2530 = vmatprep.subr.bf16.mxu0 0
    %2531 = vmatpush1.bf16.msra.mxu0 %v2509
    %2532 = vmatprep.subr.bf16.mxu0 0
    %2533 = vmatpush1.bf16.msra.mxu0 %v2510
    %2534 = vmatprep.subr.bf16.mxu0 0
    %2535 = vmatpush1.bf16.msra.mxu0 %v2511
    %2536 = vmatprep.subr.bf16.mxu0 0
    %2537 = vmatpush1.bf16.msra.mxu0 0
    %2538 = vmatprep.subr.bf16.mxu0 0
    %2539 = vmatpush1.bf16.msra.mxu0 0
    %2540 = vmatprep.subr.bf16.mxu0 0
    %2541 = vmatpush1.bf16.msra.mxu0 0
    %2542 = vmatprep.subr.bf16.mxu0 0
    %2543 = vmatpush1.bf16.msra.mxu0 0
    %2544 = vmatprep.subr.bf16.mxu0 0
    %2545 = vmatpush1.bf16.msra.mxu0 0
    %2546 = vmatprep.subr.bf16.mxu0 0
    %2547 = vmatpush1.bf16.msra.mxu0 0
    %2548 = vmatprep.subr.bf16.mxu0 0
    %2549 = vmatpush1.bf16.msra.mxu0 0
    %2550 = vmatprep.subr.bf16.mxu0 0
    %2551 = vmatpush1.bf16.msra.mxu0 0
    %2552 = vmatprep.mubr.bf16.mxu0 0
    %2553 = vmatmul.mubr.bf16.gmra.mrb[0].mxu0 %v2339
    %v2554 = vpop.f32.mrb[0].mxu0
    %v2555 = vadd.f32 0.0, %v2554
    %v2556 = vpop.f32.mrb[0].mxu0
    %v2557 = vpop.f32.mrb[0].mxu0
    %v2558 = vpop.f32.mrb[0].mxu0
    %2559 = vdwg.mxu0
    %v2560 = vadd.f32 %v2455, %v2555
    %v2561 = vxor.u32 %v2560, 2147483648
    %v2562 = vmul.f32 %v2561, 1.442695
    %v2563 = vpow.pop %v2562
    %v2564 = vadd.f32 %v2563, 1.0
    %v2565 = vrcp.pop %v2564
    %v2566 = vmul.f32 1.0, %v2565
    %v2567 = vld [vmem:[%s2342 + $0x10] sm:$0xff]
    %v2568 = vld [vmem:[#allocation10 + $0x8] sm:$0xf]
    %v2569 = vld [vmem:[#allocation10 + $0x18] sm:$0xf]
    %v2570 = vld [vmem:[#allocation10 + $0x28] sm:$0xf]
    %v2571 = vld [vmem:[#allocation10 + $0x38] sm:$0xf]
    %v2572 = vld [vmem:[#allocation10 + $0x48] sm:$0xf]
    %v2573 = vld [vmem:[#allocation10 + $0x58] sm:$0xf]
    %v2574 = vld [vmem:[#allocation10 + $0x68] sm:$0xf]
    %v2575 = vld [vmem:[#allocation10 + $0x78] sm:$0xf]
    %v2576 = vld [vmem:[#allocation10 + $0x88] sm:$0xf]
    %v2577 = vld [vmem:[#allocation10 + $0x98] sm:$0xf]
    %v2578 = vld [vmem:[#allocation10 + $0xa8] sm:$0xf]
    %v2579 = vld [vmem:[#allocation10 + $0xb8] sm:$0xf]
    %v2580 = vld [vmem:[#allocation10 + $0xc8] sm:$0xf]
    %v2581 = vld [vmem:[#allocation10 + $0xd8] sm:$0xf]
    %v2582 = vld [vmem:[#allocation10 + $0xe8] sm:$0xf]
    %v2583 = vld [vmem:[#allocation10 + $0xf8] sm:$0xf]
    %v2600 = vunpack.c.l.b16 %v2568
    %v2601 = vunpack.c.l.b16 %v2569
    %v2602 = vunpack.c.l.b16 %v2570
    %v2603 = vunpack.c.l.b16 %v2571
    %v2604 = vunpack.c.l.b16 %v2572
    %v2605 = vunpack.c.l.b16 %v2573
    %v2606 = vunpack.c.l.b16 %v2574
    %v2607 = vunpack.c.l.b16 %v2575
    %v2608 = vunpack.c.l.b16 %v2576
    %v2609 = vunpack.c.l.b16 %v2577
    %v2610 = vunpack.c.l.b16 %v2578
    %v2611 = vunpack.c.l.b16 %v2579
    %v2612 = vunpack.c.l.b16 %v2580
    %v2613 = vunpack.c.l.b16 %v2581
    %v2614 = vunpack.c.l.b16 %v2582
    %v2615 = vunpack.c.l.b16 %v2583
    %v2616 = vpack.c.b16 %v2601, %v2600
    %v2617 = vpack.c.b16 %v2603, %v2602
    %v2618 = vpack.c.b16 %v2605, %v2604
    %v2619 = vpack.c.b16 %v2607, %v2606
    %v2620 = vpack.c.b16 %v2609, %v2608
    %v2621 = vpack.c.b16 %v2611, %v2610
    %v2622 = vpack.c.b16 %v2613, %v2612
    %v2623 = vpack.c.b16 %v2615, %v2614
    %2632 = vmatprep.subr.bf16.mxu0 0
    %2633 = vmatpush1.bf16.msra.mxu0 %v2616
    %2634 = vmatprep.subr.bf16.mxu0 0
    %2635 = vmatpush1.bf16.msra.mxu0 %v2617
    %2636 = vmatprep.subr.bf16.mxu0 0
    %2637 = vmatpush1.bf16.msra.mxu0 %v2618
    %2638 = vmatprep.subr.bf16.mxu0 0
    %2639 = vmatpush1.bf16.msra.mxu0 %v2619
    %2640 = vmatprep.subr.bf16.mxu0 0
    %2641 = vmatpush1.bf16.msra.mxu0 %v2620
    %2642 = vmatprep.subr.bf16.mxu0 0
    %2643 = vmatpush1.bf16.msra.mxu0 %v2621
    %2644 = vmatprep.subr.bf16.mxu0 0
    %2645 = vmatpush1.bf16.msra.mxu0 %v2622
    %2646 = vmatprep.subr.bf16.mxu0 0
    %2647 = vmatpush1.bf16.msra.mxu0 %v2623
    %2648 = vmatprep.subr.bf16.mxu0 0
    %2649 = vmatpush1.bf16.msra.mxu0 0
    %2650 = vmatprep.subr.bf16.mxu0 0
    %2651 = vmatpush1.bf16.msra.mxu0 0
    %2652 = vmatprep.subr.bf16.mxu0 0
    %2653 = vmatpush1.bf16.msra.mxu0 0
    %2654 = vmatprep.subr.bf16.mxu0 0
    %2655 = vmatpush1.bf16.msra.mxu0 0
    %2656 = vmatprep.subr.bf16.mxu0 0
    %2657 = vmatpush1.bf16.msra.mxu0 0
    %2658 = vmatprep.subr.bf16.mxu0 0
    %2659 = vmatpush1.bf16.msra.mxu0 0
    %2660 = vmatprep.subr.bf16.mxu0 0
    %2661 = vmatpush1.bf16.msra.mxu0 0
    %2662 = vmatprep.subr.bf16.mxu0 0
    %2663 = vmatpush1.bf16.msra.mxu0 0
    %2664 = vmatprep.mubr.bf16.mxu0 0
    %2665 = vmatmul.mubr.bf16.gmra.mrb[0].mxu0 %v2339
    %v2666 = vpop.f32.mrb[0].mxu0
    %v2667 = vadd.f32 0.0, %v2666
    %v2668 = vpop.f32.mrb[0].mxu0
    %v2669 = vpop.f32.mrb[0].mxu0
    %v2670 = vpop.f32.mrb[0].mxu0
    %2671 = vdwg.mxu0
    %v2672 = vadd.f32 %v2567, %v2667
    %v2673 = vtanh.pop %v2672
    %v2674 = vld [vmem:[%s2342 + $0x18] sm:$0xff]
    %v2675 = vld [vmem:[#allocation10 + $0xc] sm:$0xf]
    %v2676 = vld [vmem:[#allocation10 + $0x1c] sm:$0xf]
    %v2677 = vld [vmem:[#allocation10 + $0x2c] sm:$0xf]
    %v2678 = vld [vmem:[#allocation10 + $0x3c] sm:$0xf]
    %v2679 = vld [vmem:[#allocation10 + $0x4c] sm:$0xf]
    %v2680 = vld [vmem:[#allocation10 + $0x5c] sm:$0xf]
    %v2681 = vld [vmem:[#allocation10 + $0x6c] sm:$0xf]
    %v2682 = vld [vmem:[#allocation10 + $0x7c] sm:$0xf]
    %v2683 = vld [vmem:[#allocation10 + $0x8c] sm:$0xf]
    %v2684 = vld [vmem:[#allocation10 + $0x9c] sm:$0xf]
    %v2685 = vld [vmem:[#allocation10 + $0xac] sm:$0xf]
    %v2686 = vld [vmem:[#allocation10 + $0xbc] sm:$0xf]
    %v2687 = vld [vmem:[#allocation10 + $0xcc] sm:$0xf]
    %v2688 = vld [vmem:[#allocation10 + $0xdc] sm:$0xf]
    %v2689 = vld [vmem:[#allocation10 + $0xec] sm:$0xf]
    %v2690 = vld [vmem:[#allocation10 + $0xfc] sm:$0xf]
    %v2707 = vunpack.c.l.b16 %v2675
    %v2708 = vunpack.c.l.b16 %v2676
    %v2709 = vunpack.c.l.b16 %v2677
    %v2710 = vunpack.c.l.b16 %v2678
    %v2711 = vunpack.c.l.b16 %v2679
    %v2712 = vunpack.c.l.b16 %v2680
    %v2713 = vunpack.c.l.b16 %v2681
    %v2714 = vunpack.c.l.b16 %v2682
    %v2715 = vunpack.c.l.b16 %v2683
    %v2716 = vunpack.c.l.b16 %v2684
    %v2717 = vunpack.c.l.b16 %v2685
    %v2718 = vunpack.c.l.b16 %v2686
    %v2719 = vunpack.c.l.b16 %v2687
    %v2720 = vunpack.c.l.b16 %v2688
    %v2721 = vunpack.c.l.b16 %v2689
    %v2722 = vunpack.c.l.b16 %v2690
    %v2723 = vpack.c.b16 %v2708, %v2707
    %v2724 = vpack.c.b16 %v2710, %v2709
    %v2725 = vpack.c.b16 %v2712, %v2711
    %v2726 = vpack.c.b16 %v2714, %v2713
    %v2727 = vpack.c.b16 %v2716, %v2715
    %v2728 = vpack.c.b16 %v2718, %v2717
    %v2729 = vpack.c.b16 %v2720, %v2719
    %v2730 = vpack.c.b16 %v2722, %v2721
    %2739 = vmatprep.subr.bf16.mxu0 0
    %2740 = vmatpush1.bf16.msra.mxu0 %v2723
    %2741 = vmatprep.subr.bf16.mxu0 0
    %2742 = vmatpush1.bf16.msra.mxu0 %v2724
    %2743 = vmatprep.subr.bf16.mxu0 0
    %2744 = vmatpush1.bf16.msra.mxu0 %v2725
    %2745 = vmatprep.subr.bf16.mxu0 0
    %2746 = vmatpush1.bf16.msra.mxu0 %v2726
    %2747 = vmatprep.subr.bf16.mxu0 0
    %2748 = vmatpush1.bf16.msra.mxu0 %v2727
    %2749 = vmatprep.subr.bf16.mxu0 0
    %2750 = vmatpush1.bf16.msra.mxu0 %v2728
    %2751 = vmatprep.subr.bf16.mxu0 0
    %2752 = vmatpush1.bf16.msra.mxu0 %v2729
    %2753 = vmatprep.subr.bf16.mxu0 0
    %2754 = vmatpush1.bf16.msra.mxu0 %v2730
    %2755 = vmatprep.subr.bf16.mxu0 0
    %2756 = vmatpush1.bf16.msra.mxu0 0
    %2757 = vmatprep.subr.bf16.mxu0 0
    %2758 = vmatpush1.bf16.msra.mxu0 0
    %2759 = vmatprep.subr.bf16.mxu0 0
    %2760 = vmatpush1.bf16.msra.mxu0 0
    %2761 = vmatprep.subr.bf16.mxu0 0
    %2762 = vmatpush1.bf16.msra.mxu0 0
    %2763 = vmatprep.subr.bf16.mxu0 0
    %2764 = vmatpush1.bf16.msra.mxu0 0
    %2765 = vmatprep.subr.bf16.mxu0 0
    %2766 = vmatpush1.bf16.msra.mxu0 0
    %2767 = vmatprep.subr.bf16.mxu0 0
    %2768 = vmatpush1.bf16.msra.mxu0 0
    %2769 = vmatprep.subr.bf16.mxu0 0
    %2770 = vmatpush1.bf16.msra.mxu0 0
    %2771 = vmatprep.mubr.bf16.mxu0 0
    %2772 = vmatmul.mubr.bf16.gmra.mrb[0].mxu0 %v2339
    %v2773 = vpop.f32.mrb[0].mxu0
    %v2774 = vadd.f32 0.0, %v2773
    %v2775 = vpop.f32.mrb[0].mxu0
    %v2776 = vpop.f32.mrb[0].mxu0
    %v2777 = vpop.f32.mrb[0].mxu0
    %2778 = vdwg.mxu0
    %v2779 = vadd.f32 %v2674, %v2774
    %v2780 = vxor.u32 %v2779, 2147483648
    %v2781 = vmul.f32 %v2780, 1.442695
    %v2782 = vpow.pop %v2781
    %v2783 = vadd.f32 %v2782, 1.0
    %v2784 = vrcp.pop %v2783
    %v2785 = vmul.f32 1.0, %v2784
    %v2786 = vld [vmem:[#allocation4] sm:$0xff]
    %v2787 = vmul.f32 %v2566, %v2786
    %v2788 = vmul.f32 %v2454, %v2673
    %v2789 = vadd.f32 %v2787, %v2788
    %2790 = vst [vmem:[#allocation4] sm:$0xff] %v2789
    %v2791 = vtanh.pop %v2789
    %v2792 = vmul.f32 %v2785, %v2791
    %s2793 = scalar_lea.vmem [#allocation3], 40
    %2794 = vst [vmem:[%s2793] sm:$0xff] %v2792
    %v2795 = vld [vmem:[%s2793] sm:$0xff]
    %v2796 = vpack.c.bf16 %v2795, %v2795
    %s2797 = smul.u32 5, 4
    %s2798 = smul.addr %s2797, 8
    %s2799 = scalar_lea.vmem [#allocation2], %s2798
    %v2800 = vld [vmem:[%s2799] sm:$0xff]
    %v2801 = vld [vmem:[#allocation10] sm:$0xf]
    %v2802 = vld [vmem:[#allocation10 + $0x10] sm:$0xf]
    %v2803 = vld [vmem:[#allocation10 + $0x20] sm:$0xf]
    %v2804 = vld [vmem:[#allocation10 + $0x30] sm:$0xf]
    %v2805 = vld [vmem:[#allocation10 + $0x40] sm:$0xf]
    %v2806 = vld [vmem:[#allocation10 + $0x50] sm:$0xf]
    %v2807 = vld [vmem:[#allocation10 + $0x60] sm:$0xf]
    %v2808 = vld [vmem:[#allocation10 + $0x70] sm:$0xf]
    %v2809 = vld [vmem:[#allocation10 + $0x80] sm:$0xf]
    %v2810 = vld [vmem:[#allocation10 + $0x90] sm:$0xf]
    %v2811 = vld [vmem:[#allocation10 + $0xa0] sm:$0xf]
    %v2812 = vld [vmem:[#allocation10 + $0xb0] sm:$0xf]
    %v2813 = vld [vmem:[#allocation10 + $0xc0] sm:$0xf]
    %v2814 = vld [vmem:[#allocation10 + $0xd0] sm:$0xf]
    %v2815 = vld [vmem:[#allocation10 + $0xe0] sm:$0xf]
    %v2816 = vld [vmem:[#allocation10 + $0xf0] sm:$0xf]
    %v2833 = vunpack.c.l.b16 %v2801
    %v2834 = vunpack.c.l.b16 %v2802
    %v2835 = vunpack.c.l.b16 %v2803
    %v2836 = vunpack.c.l.b16 %v2804
    %v2837 = vunpack.c.l.b16 %v2805
    %v2838 = vunpack.c.l.b16 %v2806
    %v2839 = vunpack.c.l.b16 %v2807
    %v2840 = vunpack.c.l.b16 %v2808
    %v2841 = vunpack.c.l.b16 %v2809
    %v2842 = vunpack.c.l.b16 %v2810
    %v2843 = vunpack.c.l.b16 %v2811
    %v2844 = vunpack.c.l.b16 %v2812
    %v2845 = vunpack.c.l.b16 %v2813
    %v2846 = vunpack.c.l.b16 %v2814
    %v2847 = vunpack.c.l.b16 %v2815
    %v2848 = vunpack.c.l.b16 %v2816
    %v2849 = vpack.c.b16 %v2834, %v2833
    %v2850 = vpack.c.b16 %v2836, %v2835
    %v2851 = vpack.c.b16 %v2838, %v2837
    %v2852 = vpack.c.b16 %v2840, %v2839
    %v2853 = vpack.c.b16 %v2842, %v2841
    %v2854 = vpack.c.b16 %v2844, %v2843
    %v2855 = vpack.c.b16 %v2846, %v2845
    %v2856 = vpack.c.b16 %v2848, %v2847
    %2865 = vmatprep.subr.bf16.mxu0 0
    %2866 = vmatpush1.bf16.msra.mxu0 %v2849
    %2867 = vmatprep.subr.bf16.mxu0 0
    %2868 = vmatpush1.bf16.msra.mxu0 %v2850
    %2869 = vmatprep.subr.bf16.mxu0 0
    %2870 = vmatpush1.bf16.msra.mxu0 %v2851
    %2871 = vmatprep.subr.bf16.mxu0 0
    %2872 = vmatpush1.bf16.msra.mxu0 %v2852
    %2873 = vmatprep.subr.bf16.mxu0 0
    %2874 = vmatpush1.bf16.msra.mxu0 %v2853
    %2875 = vmatprep.subr.bf16.mxu0 0
    %2876 = vmatpush1.bf16.msra.mxu0 %v2854
    %2877 = vmatprep.subr.bf16.mxu0 0
    %2878 = vmatpush1.bf16.msra.mxu0 %v2855
    %2879 = vmatprep.subr.bf16.mxu0 0
    %2880 = vmatpush1.bf16.msra.mxu0 %v2856
    %2881 = vmatprep.subr.bf16.mxu0 0
    %2882 = vmatpush1.bf16.msra.mxu0 0
    %2883 = vmatprep.subr.bf16.mxu0 0
    %2884 = vmatpush1.bf16.msra.mxu0 0
    %2885 = vmatprep.subr.bf16.mxu0 0
    %2886 = vmatpush1.bf16.msra.mxu0 0
    %2887 = vmatprep.subr.bf16.mxu0 0
    %2888 = vmatpush1.bf16.msra.mxu0 0
    %2889 = vmatprep.subr.bf16.mxu0 0
    %2890 = vmatpush1.bf16.msra.mxu0 0
    %2891 = vmatprep.subr.bf16.mxu0 0
    %2892 = vmatpush1.bf16.msra.mxu0 0
    %2893 = vmatprep.subr.bf16.mxu0 0
    %2894 = vmatpush1.bf16.msra.mxu0 0
    %2895 = vmatprep.subr.bf16.mxu0 0
    %2896 = vmatpush1.bf16.msra.mxu0 0
    %2897 = vmatprep.mubr.bf16.mxu0 0
    %2898 = vmatmul.mubr.bf16.gmra.mrb[0].mxu0 %v2796
    %v2899 = vpop.f32.mrb[0].mxu0
    %v2900 = vadd.f32 0.0, %v2899
    %v2901 = vpop.f32.mrb[0].mxu0
    %v2902 = vpop.f32.mrb[0].mxu0
    %v2903 = vpop.f32.mrb[0].mxu0
    %2904 = vdwg.mxu0
    %v2905 = vadd.f32 %v2800, %v2900
    %v2906 = vxor.u32 %v2905, 2147483648
    %v2907 = vmul.f32 %v2906, 1.442695
    %v2908 = vpow.pop %v2907
    %v2909 = vadd.f32 %v2908, 1.0
    %v2910 = vrcp.pop %v2909
    %v2911 = vmul.f32 1.0, %v2910
    %v2912 = vld [vmem:[%s2799 + $0x8] sm:$0xff]
    %v2913 = vld [vmem:[#allocation10 + $0x4] sm:$0xf]
    %v2914 = vld [vmem:[#allocation10 + $0x14] sm:$0xf]
    %v2915 = vld [vmem:[#allocation10 + $0x24] sm:$0xf]
    %v2916 = vld [vmem:[#allocation10 + $0x34] sm:$0xf]
    %v2917 = vld [vmem:[#allocation10 + $0x44] sm:$0xf]
    %v2918 = vld [vmem:[#allocation10 + $0x54] sm:$0xf]
    %v2919 = vld [vmem:[#allocation10 + $0x64] sm:$0xf]
    %v2920 = vld [vmem:[#allocation10 + $0x74] sm:$0xf]
    %v2921 = vld [vmem:[#allocation10 + $0x84] sm:$0xf]
    %v2922 = vld [vmem:[#allocation10 + $0x94] sm:$0xf]
    %v2923 = vld [vmem:[#allocation10 + $0xa4] sm:$0xf]
    %v2924 = vld [vmem:[#allocation10 + $0xb4] sm:$0xf]
    %v2925 = vld [vmem:[#allocation10 + $0xc4] sm:$0xf]
    %v2926 = vld [vmem:[#allocation10 + $0xd4] sm:$0xf]
    %v2927 = vld [vmem:[#allocation10 + $0xe4] sm:$0xf]
    %v2928 = vld [vmem:[#allocation10 + $0xf4] sm:$0xf]
    %v2945 = vunpack.c.l.b16 %v2913
    %v2946 = vunpack.c.l.b16 %v2914
    %v2947 = vunpack.c.l.b16 %v2915
    %v2948 = vunpack.c.l.b16 %v2916
    %v2949 = vunpack.c.l.b16 %v2917
    %v2950 = vunpack.c.l.b16 %v2918
    %v2951 = vunpack.c.l.b16 %v2919
    %v2952 = vunpack.c.l.b16 %v2920
    %v2953 = vunpack.c.l.b16 %v2921
    %v2954 = vunpack.c.l.b16 %v2922
    %v2955 = vunpack.c.l.b16 %v2923
    %v2956 = vunpack.c.l.b16 %v2924
    %v2957 = vunpack.c.l.b16 %v2925
    %v2958 = vunpack.c.l.b16 %v2926
    %v2959 = vunpack.c.l.b16 %v2927
    %v2960 = vunpack.c.l.b16 %v2928
    %v2961 = vpack.c.b16 %v2946, %v2945
    %v2962 = vpack.c.b16 %v2948, %v2947
    %v2963 = vpack.c.b16 %v2950, %v2949
    %v2964 = vpack.c.b16 %v2952, %v2951
    %v2965 = vpack.c.b16 %v2954, %v2953
    %v2966 = vpack.c.b16 %v2956, %v2955
    %v2967 = vpack.c.b16 %v2958, %v2957
    %v2968 = vpack.c.b16 %v2960, %v2959
    %2977 = vmatprep.subr.bf16.mxu0 0
    %2978 = vmatpush1.bf16.msra.mxu0 %v2961
    %2979 = vmatprep.subr.bf16.mxu0 0
    %2980 = vmatpush1.bf16.msra.mxu0 %v2962
    %2981 = vmatprep.subr.bf16.mxu0 0
    %2982 = vmatpush1.bf16.msra.mxu0 %v2963
    %2983 = vmatprep.subr.bf16.mxu0 0
    %2984 = vmatpush1.bf16.msra.mxu0 %v2964
    %2985 = vmatprep.subr.bf16.mxu0 0
    %2986 = vmatpush1.bf16.msra.mxu0 %v2965
    %2987 = vmatprep.subr.bf16.mxu0 0
    %2988 = vmatpush1.bf16.msra.mxu0 %v2966
    %2989 = vmatprep.subr.bf16.mxu0 0
    %2990 = vmatpush1.bf16.msra.mxu0 %v2967
    %2991 = vmatprep.subr.bf16.mxu0 0
    %2992 = vmatpush1.bf16.msra.mxu0 %v2968
    %2993 = vmatprep.subr.bf16.mxu0 0
    %2994 = vmatpush1.bf16.msra.mxu0 0
    %2995 = vmatprep.subr.bf16.mxu0 0
    %2996 = vmatpush1.bf16.msra.mxu0 0
    %2997 = vmatprep.subr.bf16.mxu0 0
    %2998 = vmatpush1.bf16.msra.mxu0 0
    %2999 = vmatprep.subr.bf16.mxu0 0
    %3000 = vmatpush1.bf16.msra.mxu0 0
    %3001 = vmatprep.subr.bf16.mxu0 0
    %3002 = vmatpush1.bf16.msra.mxu0 0
    %3003 = vmatprep.subr.bf16.mxu0 0
    %3004 = vmatpush1.bf16.msra.mxu0 0
    %3005 = vmatprep.subr.bf16.mxu0 0
    %3006 = vmatpush1.bf16.msra.mxu0 0
    %3007 = vmatprep.subr.bf16.mxu0 0
    %3008 = vmatpush1.bf16.msra.mxu0 0
    %3009 = vmatprep.mubr.bf16.mxu0 0
    %3010 = vmatmul.mubr.bf16.gmra.mrb[0].mxu0 %v2796
    %v3011 = vpop.f32.mrb[0].mxu0
    %v3012 = vadd.f32 0.0, %v3011
    %v3013 = vpop.f32.mrb[0].mxu0
    %v3014 = vpop.f32.mrb[0].mxu0
    %v3015 = vpop.f32.mrb[0].mxu0
    %3016 = vdwg.mxu0
    %v3017 = vadd.f32 %v2912, %v3012
    %v3018 = vxor.u32 %v3017, 2147483648
    %v3019 = vmul.f32 %v3018, 1.442695
    %v3020 = vpow.pop %v3019
    %v3021 = vadd.f32 %v3020, 1.0
    %v3022 = vrcp.pop %v3021
    %v3023 = vmul.f32 1.0, %v3022
    %v3024 = vld [vmem:[%s2799 + $0x10] sm:$0xff]
    %v3025 = vld [vmem:[#allocation10 + $0x8] sm:$0xf]
    %v3026 = vld [vmem:[#allocation10 + $0x18] sm:$0xf]
    %v3027 = vld [vmem:[#allocation10 + $0x28] sm:$0xf]
    %v3028 = vld [vmem:[#allocation10 + $0x38] sm:$0xf]
    %v3029 = vld [vmem:[#allocation10 + $0x48] sm:$0xf]
    %v3030 = vld [vmem:[#allocation10 + $0x58] sm:$0xf]
    %v3031 = vld [vmem:[#allocation10 + $0x68] sm:$0xf]
    %v3032 = vld [vmem:[#allocation10 + $0x78] sm:$0xf]
    %v3033 = vld [vmem:[#allocation10 + $0x88] sm:$0xf]
    %v3034 = vld [vmem:[#allocation10 + $0x98] sm:$0xf]
    %v3035 = vld [vmem:[#allocation10 + $0xa8] sm:$0xf]
    %v3036 = vld [vmem:[#allocation10 + $0xb8] sm:$0xf]
    %v3037 = vld [vmem:[#allocation10 + $0xc8] sm:$0xf]
    %v3038 = vld [vmem:[#allocation10 + $0xd8] sm:$0xf]
    %v3039 = vld [vmem:[#allocation10 + $0xe8] sm:$0xf]
    %v3040 = vld [vmem:[#allocation10 + $0xf8] sm:$0xf]
    %v3057 = vunpack.c.l.b16 %v3025
    %v3058 = vunpack.c.l.b16 %v3026
    %v3059 = vunpack.c.l.b16 %v3027
    %v3060 = vunpack.c.l.b16 %v3028
    %v3061 = vunpack.c.l.b16 %v3029
    %v3062 = vunpack.c.l.b16 %v3030
    %v3063 = vunpack.c.l.b16 %v3031
    %v3064 = vunpack.c.l.b16 %v3032
    %v3065 = vunpack.c.l.b16 %v3033
    %v3066 = vunpack.c.l.b16 %v3034
    %v3067 = vunpack.c.l.b16 %v3035
    %v3068 = vunpack.c.l.b16 %v3036
    %v3069 = vunpack.c.l.b16 %v3037
    %v3070 = vunpack.c.l.b16 %v3038
    %v3071 = vunpack.c.l.b16 %v3039
    %v3072 = vunpack.c.l.b16 %v3040
    %v3073 = vpack.c.b16 %v3058, %v3057
    %v3074 = vpack.c.b16 %v3060, %v3059
    %v3075 = vpack.c.b16 %v3062, %v3061
    %v3076 = vpack.c.b16 %v3064, %v3063
    %v3077 = vpack.c.b16 %v3066, %v3065
    %v3078 = vpack.c.b16 %v3068, %v3067
    %v3079 = vpack.c.b16 %v3070, %v3069
    %v3080 = vpack.c.b16 %v3072, %v3071
    %3089 = vmatprep.subr.bf16.mxu0 0
    %3090 = vmatpush1.bf16.msra.mxu0 %v3073
    %3091 = vmatprep.subr.bf16.mxu0 0
    %3092 = vmatpush1.bf16.msra.mxu0 %v3074
    %3093 = vmatprep.subr.bf16.mxu0 0
    %3094 = vmatpush1.bf16.msra.mxu0 %v3075
    %3095 = vmatprep.subr.bf16.mxu0 0
    %3096 = vmatpush1.bf16.msra.mxu0 %v3076
    %3097 = vmatprep.subr.bf16.mxu0 0
    %3098 = vmatpush1.bf16.msra.mxu0 %v3077
    %3099 = vmatprep.subr.bf16.mxu0 0
    %3100 = vmatpush1.bf16.msra.mxu0 %v3078
    %3101 = vmatprep.subr.bf16.mxu0 0
    %3102 = vmatpush1.bf16.msra.mxu0 %v3079
    %3103 = vmatprep.subr.bf16.mxu0 0
    %3104 = vmatpush1.bf16.msra.mxu0 %v3080
    %3105 = vmatprep.subr.bf16.mxu0 0
    %3106 = vmatpush1.bf16.msra.mxu0 0
    %3107 = vmatprep.subr.bf16.mxu0 0
    %3108 = vmatpush1.bf16.msra.mxu0 0
    %3109 = vmatprep.subr.bf16.mxu0 0
    %3110 = vmatpush1.bf16.msra.mxu0 0
    %3111 = vmatprep.subr.bf16.mxu0 0
    %3112 = vmatpush1.bf16.msra.mxu0 0
    %3113 = vmatprep.subr.bf16.mxu0 0
    %3114 = vmatpush1.bf16.msra.mxu0 0
    %3115 = vmatprep.subr.bf16.mxu0 0
    %3116 = vmatpush1.bf16.msra.mxu0 0
    %3117 = vmatprep.subr.bf16.mxu0 0
    %3118 = vmatpush1.bf16.msra.mxu0 0
    %3119 = vmatprep.subr.bf16.mxu0 0
    %3120 = vmatpush1.bf16.msra.mxu0 0
    %3121 = vmatprep.mubr.bf16.mxu0 0
    %3122 = vmatmul.mubr.bf16.gmra.mrb[0].mxu0 %v2796
    %v3123 = vpop.f32.mrb[0].mxu0
    %v3124 = vadd.f32 0.0, %v3123
    %v3125 = vpop.f32.mrb[0].mxu0
    %v3126 = vpop.f32.mrb[0].mxu0
    %v3127 = vpop.f32.mrb[0].mxu0
    %3128 = vdwg.mxu0
    %v3129 = vadd.f32 %v3024, %v3124
    %v3130 = vtanh.pop %v3129
    %v3131 = vld [vmem:[%s2799 + $0x18] sm:$0xff]
    %v3132 = vld [vmem:[#allocation10 + $0xc] sm:$0xf]
    %v3133 = vld [vmem:[#allocation10 + $0x1c] sm:$0xf]
    %v3134 = vld [vmem:[#allocation10 + $0x2c] sm:$0xf]
    %v3135 = vld [vmem:[#allocation10 + $0x3c] sm:$0xf]
    %v3136 = vld [vmem:[#allocation10 + $0x4c] sm:$0xf]
    %v3137 = vld [vmem:[#allocation10 + $0x5c] sm:$0xf]
    %v3138 = vld [vmem:[#allocation10 + $0x6c] sm:$0xf]
    %v3139 = vld [vmem:[#allocation10 + $0x7c] sm:$0xf]
    %v3140 = vld [vmem:[#allocation10 + $0x8c] sm:$0xf]
    %v3141 = vld [vmem:[#allocation10 + $0x9c] sm:$0xf]
    %v3142 = vld [vmem:[#allocation10 + $0xac] sm:$0xf]
    %v3143 = vld [vmem:[#allocation10 + $0xbc] sm:$0xf]
    %v3144 = vld [vmem:[#allocation10 + $0xcc] sm:$0xf]
    %v3145 = vld [vmem:[#allocation10 + $0xdc] sm:$0xf]
    %v3146 = vld [vmem:[#allocation10 + $0xec] sm:$0xf]
    %v3147 = vld [vmem:[#allocation10 + $0xfc] sm:$0xf]
    %v3164 = vunpack.c.l.b16 %v3132
    %v3165 = vunpack.c.l.b16 %v3133
    %v3166 = vunpack.c.l.b16 %v3134
    %v3167 = vunpack.c.l.b16 %v3135
    %v3168 = vunpack.c.l.b16 %v3136
    %v3169 = vunpack.c.l.b16 %v3137
    %v3170 = vunpack.c.l.b16 %v3138
    %v3171 = vunpack.c.l.b16 %v3139
    %v3172 = vunpack.c.l.b16 %v3140
    %v3173 = vunpack.c.l.b16 %v3141
    %v3174 = vunpack.c.l.b16 %v3142
    %v3175 = vunpack.c.l.b16 %v3143
    %v3176 = vunpack.c.l.b16 %v3144
    %v3177 = vunpack.c.l.b16 %v3145
    %v3178 = vunpack.c.l.b16 %v3146
    %v3179 = vunpack.c.l.b16 %v3147
    %v3180 = vpack.c.b16 %v3165, %v3164
    %v3181 = vpack.c.b16 %v3167, %v3166
    %v3182 = vpack.c.b16 %v3169, %v3168
    %v3183 = vpack.c.b16 %v3171, %v3170
    %v3184 = vpack.c.b16 %v3173, %v3172
    %v3185 = vpack.c.b16 %v3175, %v3174
    %v3186 = vpack.c.b16 %v3177, %v3176
    %v3187 = vpack.c.b16 %v3179, %v3178
    %3196 = vmatprep.subr.bf16.mxu0 0
    %3197 = vmatpush1.bf16.msra.mxu0 %v3180
    %3198 = vmatprep.subr.bf16.mxu0 0
    %3199 = vmatpush1.bf16.msra.mxu0 %v3181
    %3200 = vmatprep.subr.bf16.mxu0 0
    %3201 = vmatpush1.bf16.msra.mxu0 %v3182
    %3202 = vmatprep.subr.bf16.mxu0 0
    %3203 = vmatpush1.bf16.msra.mxu0 %v3183
    %3204 = vmatprep.subr.bf16.mxu0 0
    %3205 = vmatpush1.bf16.msra.mxu0 %v3184
    %3206 = vmatprep.subr.bf16.mxu0 0
    %3207 = vmatpush1.bf16.msra.mxu0 %v3185
    %3208 = vmatprep.subr.bf16.mxu0 0
    %3209 = vmatpush1.bf16.msra.mxu0 %v3186
    %3210 = vmatprep.subr.bf16.mxu0 0
    %3211 = vmatpush1.bf16.msra.mxu0 %v3187
    %3212 = vmatprep.subr.bf16.mxu0 0
    %3213 = vmatpush1.bf16.msra.mxu0 0
    %3214 = vmatprep.subr.bf16.mxu0 0
    %3215 = vmatpush1.bf16.msra.mxu0 0
    %3216 = vmatprep.subr.bf16.mxu0 0
    %3217 = vmatpush1.bf16.msra.mxu0 0
    %3218 = vmatprep.subr.bf16.mxu0 0
    %3219 = vmatpush1.bf16.msra.mxu0 0
    %3220 = vmatprep.subr.bf16.mxu0 0
    %3221 = vmatpush1.bf16.msra.mxu0 0
    %3222 = vmatprep.subr.bf16.mxu0 0
    %3223 = vmatpush1.bf16.msra.mxu0 0
    %3224 = vmatprep.subr.bf16.mxu0 0
    %3225 = vmatpush1.bf16.msra.mxu0 0
    %3226 = vmatprep.subr.bf16.mxu0 0
    %3227 = vmatpush1.bf16.msra.mxu0 0
    %3228 = vmatprep.mubr.bf16.mxu0 0
    %3229 = vmatmul.mubr.bf16.gmra.mrb[0].mxu0 %v2796
    %v3230 = vpop.f32.mrb[0].mxu0
    %v3231 = vadd.f32 0.0, %v3230
    %v3232 = vpop.f32.mrb[0].mxu0
    %v3233 = vpop.f32.mrb[0].mxu0
    %v3234 = vpop.f32.mrb[0].mxu0
    %3235 = vdwg.mxu0
    %v3236 = vadd.f32 %v3131, %v3231
    %v3237 = vxor.u32 %v3236, 2147483648
    %v3238 = vmul.f32 %v3237, 1.442695
    %v3239 = vpow.pop %v3238
    %v3240 = vadd.f32 %v3239, 1.0
    %v3241 = vrcp.pop %v3240
    %v3242 = vmul.f32 1.0, %v3241
    %v3243 = vld [vmem:[#allocation4] sm:$0xff]
    %v3244 = vmul.f32 %v3023, %v3243
    %v3245 = vmul.f32 %v2911, %v3130
    %v3246 = vadd.f32 %v3244, %v3245
    %3247 = vst [vmem:[#allocation4] sm:$0xff] %v3246
    %v3248 = vtanh.pop %v3246
    %v3249 = vmul.f32 %v3242, %v3248
    %s3250 = scalar_lea.vmem [#allocation3], 48
    %3251 = vst [vmem:[%s3250] sm:$0xff] %v3249
    %v3252 = vld [vmem:[%s3250] sm:$0xff]
    %v3253 = vpack.c.bf16 %v3252, %v3252
    %s3254 = smul.u32 6, 4
    %s3255 = smul.addr %s3254, 8
    %s3256 = scalar_lea.vmem [#allocation2], %s3255
    %v3257 = vld [vmem:[%s3256] sm:$0xff]
    %v3258 = vld [vmem:[#allocation10] sm:$0xf]
    %v3259 = vld [vmem:[#allocation10 + $0x10] sm:$0xf]
    %v3260 = vld [vmem:[#allocation10 + $0x20] sm:$0xf]
    %v3261 = vld [vmem:[#allocation10 + $0x30] sm:$0xf]
    %v3262 = vld [vmem:[#allocation10 + $0x40] sm:$0xf]
    %v3263 = vld [vmem:[#allocation10 + $0x50] sm:$0xf]
    %v3264 = vld [vmem:[#allocation10 + $0x60] sm:$0xf]
    %v3265 = vld [vmem:[#allocation10 + $0x70] sm:$0xf]
    %v3266 = vld [vmem:[#allocation10 + $0x80] sm:$0xf]
    %v3267 = vld [vmem:[#allocation10 + $0x90] sm:$0xf]
    %v3268 = vld [vmem:[#allocation10 + $0xa0] sm:$0xf]
    %v3269 = vld [vmem:[#allocation10 + $0xb0] sm:$0xf]
    %v3270 = vld [vmem:[#allocation10 + $0xc0] sm:$0xf]
    %v3271 = vld [vmem:[#allocation10 + $0xd0] sm:$0xf]
    %v3272 = vld [vmem:[#allocation10 + $0xe0] sm:$0xf]
    %v3273 = vld [vmem:[#allocation10 + $0xf0] sm:$0xf]
    %v3290 = vunpack.c.l.b16 %v3258
    %v3291 = vunpack.c.l.b16 %v3259
    %v3292 = vunpack.c.l.b16 %v3260
    %v3293 = vunpack.c.l.b16 %v3261
    %v3294 = vunpack.c.l.b16 %v3262
    %v3295 = vunpack.c.l.b16 %v3263
    %v3296 = vunpack.c.l.b16 %v3264
    %v3297 = vunpack.c.l.b16 %v3265
    %v3298 = vunpack.c.l.b16 %v3266
    %v3299 = vunpack.c.l.b16 %v3267
    %v3300 = vunpack.c.l.b16 %v3268
    %v3301 = vunpack.c.l.b16 %v3269
    %v3302 = vunpack.c.l.b16 %v3270
    %v3303 = vunpack.c.l.b16 %v3271
    %v3304 = vunpack.c.l.b16 %v3272
    %v3305 = vunpack.c.l.b16 %v3273
    %v3306 = vpack.c.b16 %v3291, %v3290
    %v3307 = vpack.c.b16 %v3293, %v3292
    %v3308 = vpack.c.b16 %v3295, %v3294
    %v3309 = vpack.c.b16 %v3297, %v3296
    %v3310 = vpack.c.b16 %v3299, %v3298
    %v3311 = vpack.c.b16 %v3301, %v3300
    %v3312 = vpack.c.b16 %v3303, %v3302
    %v3313 = vpack.c.b16 %v3305, %v3304
    %3322 = vmatprep.subr.bf16.mxu0 0
    %3323 = vmatpush1.bf16.msra.mxu0 %v3306
    %3324 = vmatprep.subr.bf16.mxu0 0
    %3325 = vmatpush1.bf16.msra.mxu0 %v3307
    %3326 = vmatprep.subr.bf16.mxu0 0
    %3327 = vmatpush1.bf16.msra.mxu0 %v3308
    %3328 = vmatprep.subr.bf16.mxu0 0
    %3329 = vmatpush1.bf16.msra.mxu0 %v3309
    %3330 = vmatprep.subr.bf16.mxu0 0
    %3331 = vmatpush1.bf16.msra.mxu0 %v3310
    %3332 = vmatprep.subr.bf16.mxu0 0
    %3333 = vmatpush1.bf16.msra.mxu0 %v3311
    %3334 = vmatprep.subr.bf16.mxu0 0
    %3335 = vmatpush1.bf16.msra.mxu0 %v3312
    %3336 = vmatprep.subr.bf16.mxu0 0
    %3337 = vmatpush1.bf16.msra.mxu0 %v3313
    %3338 = vmatprep.subr.bf16.mxu0 0
    %3339 = vmatpush1.bf16.msra.mxu0 0
    %3340 = vmatprep.subr.bf16.mxu0 0
    %3341 = vmatpush1.bf16.msra.mxu0 0
    %3342 = vmatprep.subr.bf16.mxu0 0
    %3343 = vmatpush1.bf16.msra.mxu0 0
    %3344 = vmatprep.subr.bf16.mxu0 0
    %3345 = vmatpush1.bf16.msra.mxu0 0
    %3346 = vmatprep.subr.bf16.mxu0 0
    %3347 = vmatpush1.bf16.msra.mxu0 0
    %3348 = vmatprep.subr.bf16.mxu0 0
    %3349 = vmatpush1.bf16.msra.mxu0 0
    %3350 = vmatprep.subr.bf16.mxu0 0
    %3351 = vmatpush1.bf16.msra.mxu0 0
    %3352 = vmatprep.subr.bf16.mxu0 0
    %3353 = vmatpush1.bf16.msra.mxu0 0
    %3354 = vmatprep.mubr.bf16.mxu0 0
    %3355 = vmatmul.mubr.bf16.gmra.mrb[0].mxu0 %v3253
    %v3356 = vpop.f32.mrb[0].mxu0
    %v3357 = vadd.f32 0.0, %v3356
    %v3358 = vpop.f32.mrb[0].mxu0
    %v3359 = vpop.f32.mrb[0].mxu0
    %v3360 = vpop.f32.mrb[0].mxu0
    %3361 = vdwg.mxu0
    %v3362 = vadd.f32 %v3257, %v3357
    %v3363 = vxor.u32 %v3362, 2147483648
    %v3364 = vmul.f32 %v3363, 1.442695
    %v3365 = vpow.pop %v3364
    %v3366 = vadd.f32 %v3365, 1.0
    %v3367 = vrcp.pop %v3366
    %v3368 = vmul.f32 1.0, %v3367
    %v3369 = vld [vmem:[%s3256 + $0x8] sm:$0xff]
    %v3370 = vld [vmem:[#allocation10 + $0x4] sm:$0xf]
    %v3371 = vld [vmem:[#allocation10 + $0x14] sm:$0xf]
    %v3372 = vld [vmem:[#allocation10 + $0x24] sm:$0xf]
    %v3373 = vld [vmem:[#allocation10 + $0x34] sm:$0xf]
    %v3374 = vld [vmem:[#allocation10 + $0x44] sm:$0xf]
    %v3375 = vld [vmem:[#allocation10 + $0x54] sm:$0xf]
    %v3376 = vld [vmem:[#allocation10 + $0x64] sm:$0xf]
    %v3377 = vld [vmem:[#allocation10 + $0x74] sm:$0xf]
    %v3378 = vld [vmem:[#allocation10 + $0x84] sm:$0xf]
    %v3379 = vld [vmem:[#allocation10 + $0x94] sm:$0xf]
    %v3380 = vld [vmem:[#allocation10 + $0xa4] sm:$0xf]
    %v3381 = vld [vmem:[#allocation10 + $0xb4] sm:$0xf]
    %v3382 = vld [vmem:[#allocation10 + $0xc4] sm:$0xf]
    %v3383 = vld [vmem:[#allocation10 + $0xd4] sm:$0xf]
    %v3384 = vld [vmem:[#allocation10 + $0xe4] sm:$0xf]
    %v3385 = vld [vmem:[#allocation10 + $0xf4] sm:$0xf]
    %v3402 = vunpack.c.l.b16 %v3370
    %v3403 = vunpack.c.l.b16 %v3371
    %v3404 = vunpack.c.l.b16 %v3372
    %v3405 = vunpack.c.l.b16 %v3373
    %v3406 = vunpack.c.l.b16 %v3374
    %v3407 = vunpack.c.l.b16 %v3375
    %v3408 = vunpack.c.l.b16 %v3376
    %v3409 = vunpack.c.l.b16 %v3377
    %v3410 = vunpack.c.l.b16 %v3378
    %v3411 = vunpack.c.l.b16 %v3379
    %v3412 = vunpack.c.l.b16 %v3380
    %v3413 = vunpack.c.l.b16 %v3381
    %v3414 = vunpack.c.l.b16 %v3382
    %v3415 = vunpack.c.l.b16 %v3383
    %v3416 = vunpack.c.l.b16 %v3384
    %v3417 = vunpack.c.l.b16 %v3385
    %v3418 = vpack.c.b16 %v3403, %v3402
    %v3419 = vpack.c.b16 %v3405, %v3404
    %v3420 = vpack.c.b16 %v3407, %v3406
    %v3421 = vpack.c.b16 %v3409, %v3408
    %v3422 = vpack.c.b16 %v3411, %v3410
    %v3423 = vpack.c.b16 %v3413, %v3412
    %v3424 = vpack.c.b16 %v3415, %v3414
    %v3425 = vpack.c.b16 %v3417, %v3416
    %3434 = vmatprep.subr.bf16.mxu0 0
    %3435 = vmatpush1.bf16.msra.mxu0 %v3418
    %3436 = vmatprep.subr.bf16.mxu0 0
    %3437 = vmatpush1.bf16.msra.mxu0 %v3419
    %3438 = vmatprep.subr.bf16.mxu0 0
    %3439 = vmatpush1.bf16.msra.mxu0 %v3420
    %3440 = vmatprep.subr.bf16.mxu0 0
    %3441 = vmatpush1.bf16.msra.mxu0 %v3421
    %3442 = vmatprep.subr.bf16.mxu0 0
    %3443 = vmatpush1.bf16.msra.mxu0 %v3422
    %3444 = vmatprep.subr.bf16.mxu0 0
    %3445 = vmatpush1.bf16.msra.mxu0 %v3423
    %3446 = vmatprep.subr.bf16.mxu0 0
    %3447 = vmatpush1.bf16.msra.mxu0 %v3424
    %3448 = vmatprep.subr.bf16.mxu0 0
    %3449 = vmatpush1.bf16.msra.mxu0 %v3425
    %3450 = vmatprep.subr.bf16.mxu0 0
    %3451 = vmatpush1.bf16.msra.mxu0 0
    %3452 = vmatprep.subr.bf16.mxu0 0
    %3453 = vmatpush1.bf16.msra.mxu0 0
    %3454 = vmatprep.subr.bf16.mxu0 0
    %3455 = vmatpush1.bf16.msra.mxu0 0
    %3456 = vmatprep.subr.bf16.mxu0 0
    %3457 = vmatpush1.bf16.msra.mxu0 0
    %3458 = vmatprep.subr.bf16.mxu0 0
    %3459 = vmatpush1.bf16.msra.mxu0 0
    %3460 = vmatprep.subr.bf16.mxu0 0
    %3461 = vmatpush1.bf16.msra.mxu0 0
    %3462 = vmatprep.subr.bf16.mxu0 0
    %3463 = vmatpush1.bf16.msra.mxu0 0
    %3464 = vmatprep.subr.bf16.mxu0 0
    %3465 = vmatpush1.bf16.msra.mxu0 0
    %3466 = vmatprep.mubr.bf16.mxu0 0
    %3467 = vmatmul.mubr.bf16.gmra.mrb[0].mxu0 %v3253
    %v3468 = vpop.f32.mrb[0].mxu0
    %v3469 = vadd.f32 0.0, %v3468
    %v3470 = vpop.f32.mrb[0].mxu0
    %v3471 = vpop.f32.mrb[0].mxu0
    %v3472 = vpop.f32.mrb[0].mxu0
    %3473 = vdwg.mxu0
    %v3474 = vadd.f32 %v3369, %v3469
    %v3475 = vxor.u32 %v3474, 2147483648
    %v3476 = vmul.f32 %v3475, 1.442695
    %v3477 = vpow.pop %v3476
    %v3478 = vadd.f32 %v3477, 1.0
    %v3479 = vrcp.pop %v3478
    %v3480 = vmul.f32 1.0, %v3479
    %v3481 = vld [vmem:[%s3256 + $0x10] sm:$0xff]
    %v3482 = vld [vmem:[#allocation10 + $0x8] sm:$0xf]
    %v3483 = vld [vmem:[#allocation10 + $0x18] sm:$0xf]
    %v3484 = vld [vmem:[#allocation10 + $0x28] sm:$0xf]
    %v3485 = vld [vmem:[#allocation10 + $0x38] sm:$0xf]
    %v3486 = vld [vmem:[#allocation10 + $0x48] sm:$0xf]
    %v3487 = vld [vmem:[#allocation10 + $0x58] sm:$0xf]
    %v3488 = vld [vmem:[#allocation10 + $0x68] sm:$0xf]
    %v3489 = vld [vmem:[#allocation10 + $0x78] sm:$0xf]
    %v3490 = vld [vmem:[#allocation10 + $0x88] sm:$0xf]
    %v3491 = vld [vmem:[#allocation10 + $0x98] sm:$0xf]
    %v3492 = vld [vmem:[#allocation10 + $0xa8] sm:$0xf]
    %v3493 = vld [vmem:[#allocation10 + $0xb8] sm:$0xf]
    %v3494 = vld [vmem:[#allocation10 + $0xc8] sm:$0xf]
    %v3495 = vld [vmem:[#allocation10 + $0xd8] sm:$0xf]
    %v3496 = vld [vmem:[#allocation10 + $0xe8] sm:$0xf]
    %v3497 = vld [vmem:[#allocation10 + $0xf8] sm:$0xf]
    %v3514 = vunpack.c.l.b16 %v3482
    %v3515 = vunpack.c.l.b16 %v3483
    %v3516 = vunpack.c.l.b16 %v3484
    %v3517 = vunpack.c.l.b16 %v3485
    %v3518 = vunpack.c.l.b16 %v3486
    %v3519 = vunpack.c.l.b16 %v3487
    %v3520 = vunpack.c.l.b16 %v3488
    %v3521 = vunpack.c.l.b16 %v3489
    %v3522 = vunpack.c.l.b16 %v3490
    %v3523 = vunpack.c.l.b16 %v3491
    %v3524 = vunpack.c.l.b16 %v3492
    %v3525 = vunpack.c.l.b16 %v3493
    %v3526 = vunpack.c.l.b16 %v3494
    %v3527 = vunpack.c.l.b16 %v3495
    %v3528 = vunpack.c.l.b16 %v3496
    %v3529 = vunpack.c.l.b16 %v3497
    %v3530 = vpack.c.b16 %v3515, %v3514
    %v3531 = vpack.c.b16 %v3517, %v3516
    %v3532 = vpack.c.b16 %v3519, %v3518
    %v3533 = vpack.c.b16 %v3521, %v3520
    %v3534 = vpack.c.b16 %v3523, %v3522
    %v3535 = vpack.c.b16 %v3525, %v3524
    %v3536 = vpack.c.b16 %v3527, %v3526
    %v3537 = vpack.c.b16 %v3529, %v3528
    %3546 = vmatprep.subr.bf16.mxu0 0
    %3547 = vmatpush1.bf16.msra.mxu0 %v3530
    %3548 = vmatprep.subr.bf16.mxu0 0
    %3549 = vmatpush1.bf16.msra.mxu0 %v3531
    %3550 = vmatprep.subr.bf16.mxu0 0
    %3551 = vmatpush1.bf16.msra.mxu0 %v3532
    %3552 = vmatprep.subr.bf16.mxu0 0
    %3553 = vmatpush1.bf16.msra.mxu0 %v3533
    %3554 = vmatprep.subr.bf16.mxu0 0
    %3555 = vmatpush1.bf16.msra.mxu0 %v3534
    %3556 = vmatprep.subr.bf16.mxu0 0
    %3557 = vmatpush1.bf16.msra.mxu0 %v3535
    %3558 = vmatprep.subr.bf16.mxu0 0
    %3559 = vmatpush1.bf16.msra.mxu0 %v3536
    %3560 = vmatprep.subr.bf16.mxu0 0
    %3561 = vmatpush1.bf16.msra.mxu0 %v3537
    %3562 = vmatprep.subr.bf16.mxu0 0
    %3563 = vmatpush1.bf16.msra.mxu0 0
    %3564 = vmatprep.subr.bf16.mxu0 0
    %3565 = vmatpush1.bf16.msra.mxu0 0
    %3566 = vmatprep.subr.bf16.mxu0 0
    %3567 = vmatpush1.bf16.msra.mxu0 0
    %3568 = vmatprep.subr.bf16.mxu0 0
    %3569 = vmatpush1.bf16.msra.mxu0 0
    %3570 = vmatprep.subr.bf16.mxu0 0
    %3571 = vmatpush1.bf16.msra.mxu0 0
    %3572 = vmatprep.subr.bf16.mxu0 0
    %3573 = vmatpush1.bf16.msra.mxu0 0
    %3574 = vmatprep.subr.bf16.mxu0 0
    %3575 = vmatpush1.bf16.msra.mxu0 0
    %3576 = vmatprep.subr.bf16.mxu0 0
    %3577 = vmatpush1.bf16.msra.mxu0 0
    %3578 = vmatprep.mubr.bf16.mxu0 0
    %3579 = vmatmul.mubr.bf16.gmra.mrb[0].mxu0 %v3253
    %v3580 = vpop.f32.mrb[0].mxu0
    %v3581 = vadd.f32 0.0, %v3580
    %v3582 = vpop.f32.mrb[0].mxu0
    %v3583 = vpop.f32.mrb[0].mxu0
    %v3584 = vpop.f32.mrb[0].mxu0
    %3585 = vdwg.mxu0
    %v3586 = vadd.f32 %v3481, %v3581
    %v3587 = vtanh.pop %v3586
    %v3588 = vld [vmem:[%s3256 + $0x18] sm:$0xff]
    %v3589 = vld [vmem:[#allocation10 + $0xc] sm:$0xf]
    %v3590 = vld [vmem:[#allocation10 + $0x1c] sm:$0xf]
    %v3591 = vld [vmem:[#allocation10 + $0x2c] sm:$0xf]
    %v3592 = vld [vmem:[#allocation10 + $0x3c] sm:$0xf]
    %v3593 = vld [vmem:[#allocation10 + $0x4c] sm:$0xf]
    %v3594 = vld [vmem:[#allocation10 + $0x5c] sm:$0xf]
    %v3595 = vld [vmem:[#allocation10 + $0x6c] sm:$0xf]
    %v3596 = vld [vmem:[#allocation10 + $0x7c] sm:$0xf]
    %v3597 = vld [vmem:[#allocation10 + $0x8c] sm:$0xf]
    %v3598 = vld [vmem:[#allocation10 + $0x9c] sm:$0xf]
    %v3599 = vld [vmem:[#allocation10 + $0xac] sm:$0xf]
    %v3600 = vld [vmem:[#allocation10 + $0xbc] sm:$0xf]
    %v3601 = vld [vmem:[#allocation10 + $0xcc] sm:$0xf]
    %v3602 = vld [vmem:[#allocation10 + $0xdc] sm:$0xf]
    %v3603 = vld [vmem:[#allocation10 + $0xec] sm:$0xf]
    %v3604 = vld [vmem:[#allocation10 + $0xfc] sm:$0xf]
    %v3621 = vunpack.c.l.b16 %v3589
    %v3622 = vunpack.c.l.b16 %v3590
    %v3623 = vunpack.c.l.b16 %v3591
    %v3624 = vunpack.c.l.b16 %v3592
    %v3625 = vunpack.c.l.b16 %v3593
    %v3626 = vunpack.c.l.b16 %v3594
    %v3627 = vunpack.c.l.b16 %v3595
    %v3628 = vunpack.c.l.b16 %v3596
    %v3629 = vunpack.c.l.b16 %v3597
    %v3630 = vunpack.c.l.b16 %v3598
    %v3631 = vunpack.c.l.b16 %v3599
    %v3632 = vunpack.c.l.b16 %v3600
    %v3633 = vunpack.c.l.b16 %v3601
    %v3634 = vunpack.c.l.b16 %v3602
    %v3635 = vunpack.c.l.b16 %v3603
    %v3636 = vunpack.c.l.b16 %v3604
    %v3637 = vpack.c.b16 %v3622, %v3621
    %v3638 = vpack.c.b16 %v3624, %v3623
    %v3639 = vpack.c.b16 %v3626, %v3625
    %v3640 = vpack.c.b16 %v3628, %v3627
    %v3641 = vpack.c.b16 %v3630, %v3629
    %v3642 = vpack.c.b16 %v3632, %v3631
    %v3643 = vpack.c.b16 %v3634, %v3633
    %v3644 = vpack.c.b16 %v3636, %v3635
    %3653 = vmatprep.subr.bf16.mxu0 0
    %3654 = vmatpush1.bf16.msra.mxu0 %v3637
    %3655 = vmatprep.subr.bf16.mxu0 0
    %3656 = vmatpush1.bf16.msra.mxu0 %v3638
    %3657 = vmatprep.subr.bf16.mxu0 0
    %3658 = vmatpush1.bf16.msra.mxu0 %v3639
    %3659 = vmatprep.subr.bf16.mxu0 0
    %3660 = vmatpush1.bf16.msra.mxu0 %v3640
    %3661 = vmatprep.subr.bf16.mxu0 0
    %3662 = vmatpush1.bf16.msra.mxu0 %v3641
    %3663 = vmatprep.subr.bf16.mxu0 0
    %3664 = vmatpush1.bf16.msra.mxu0 %v3642
    %3665 = vmatprep.subr.bf16.mxu0 0
    %3666 = vmatpush1.bf16.msra.mxu0 %v3643
    %3667 = vmatprep.subr.bf16.mxu0 0
    %3668 = vmatpush1.bf16.msra.mxu0 %v3644
    %3669 = vmatprep.subr.bf16.mxu0 0
    %3670 = vmatpush1.bf16.msra.mxu0 0
    %3671 = vmatprep.subr.bf16.mxu0 0
    %3672 = vmatpush1.bf16.msra.mxu0 0
    %3673 = vmatprep.subr.bf16.mxu0 0
    %3674 = vmatpush1.bf16.msra.mxu0 0
    %3675 = vmatprep.subr.bf16.mxu0 0
    %3676 = vmatpush1.bf16.msra.mxu0 0
    %3677 = vmatprep.subr.bf16.mxu0 0
    %3678 = vmatpush1.bf16.msra.mxu0 0
    %3679 = vmatprep.subr.bf16.mxu0 0
    %3680 = vmatpush1.bf16.msra.mxu0 0
    %3681 = vmatprep.subr.bf16.mxu0 0
    %3682 = vmatpush1.bf16.msra.mxu0 0
    %3683 = vmatprep.subr.bf16.mxu0 0
    %3684 = vmatpush1.bf16.msra.mxu0 0
    %3685 = vmatprep.mubr.bf16.mxu0 0
    %3686 = vmatmul.mubr.bf16.gmra.mrb[0].mxu0 %v3253
    %v3687 = vpop.f32.mrb[0].mxu0
    %v3688 = vadd.f32 0.0, %v3687
    %v3689 = vpop.f32.mrb[0].mxu0
    %v3690 = vpop.f32.mrb[0].mxu0
    %v3691 = vpop.f32.mrb[0].mxu0
    %3692 = vdwg.mxu0
    %v3693 = vadd.f32 %v3588, %v3688
    %v3694 = vxor.u32 %v3693, 2147483648
    %v3695 = vmul.f32 %v3694, 1.442695
    %v3696 = vpow.pop %v3695
    %v3697 = vadd.f32 %v3696, 1.0
    %v3698 = vrcp.pop %v3697
    %v3699 = vmul.f32 1.0, %v3698
    %v3700 = vld [vmem:[#allocation4] sm:$0xff]
    %v3701 = vmul.f32 %v3480, %v3700
    %v3702 = vmul.f32 %v3368, %v3587
    %v3703 = vadd.f32 %v3701, %v3702
    %3704 = vst [vmem:[#allocation4] sm:$0xff] %v3703
    %v3705 = vtanh.pop %v3703
    %v3706 = vmul.f32 %v3699, %v3705
    %s3707 = scalar_lea.vmem [#allocation3], 56
    %3708 = vst [vmem:[%s3707] sm:$0xff] %v3706
    %v3709 = vld [vmem:[%s3707] sm:$0xff]
    %v3710 = vpack.c.bf16 %v3709, %v3709
    %s3711 = smul.u32 7, 4
    %s3712 = smul.addr %s3711, 8
    %s3713 = scalar_lea.vmem [#allocation2], %s3712
    %v3714 = vld [vmem:[%s3713] sm:$0xff]
    %v3715 = vld [vmem:[#allocation10] sm:$0xf]
    %v3716 = vld [vmem:[#allocation10 + $0x10] sm:$0xf]
    %v3717 = vld [vmem:[#allocation10 + $0x20] sm:$0xf]
    %v3718 = vld [vmem:[#allocation10 + $0x30] sm:$0xf]
    %v3719 = vld [vmem:[#allocation10 + $0x40] sm:$0xf]
    %v3720 = vld [vmem:[#allocation10 + $0x50] sm:$0xf]
    %v3721 = vld [vmem:[#allocation10 + $0x60] sm:$0xf]
    %v3722 = vld [vmem:[#allocation10 + $0x70] sm:$0xf]
    %v3723 = vld [vmem:[#allocation10 + $0x80] sm:$0xf]
    %v3724 = vld [vmem:[#allocation10 + $0x90] sm:$0xf]
    %v3725 = vld [vmem:[#allocation10 + $0xa0] sm:$0xf]
    %v3726 = vld [vmem:[#allocation10 + $0xb0] sm:$0xf]
    %v3727 = vld [vmem:[#allocation10 + $0xc0] sm:$0xf]
    %v3728 = vld [vmem:[#allocation10 + $0xd0] sm:$0xf]
    %v3729 = vld [vmem:[#allocation10 + $0xe0] sm:$0xf]
    %v3730 = vld [vmem:[#allocation10 + $0xf0] sm:$0xf]
    %v3747 = vunpack.c.l.b16 %v3715
    %v3748 = vunpack.c.l.b16 %v3716
    %v3749 = vunpack.c.l.b16 %v3717
    %v3750 = vunpack.c.l.b16 %v3718
    %v3751 = vunpack.c.l.b16 %v3719
    %v3752 = vunpack.c.l.b16 %v3720
    %v3753 = vunpack.c.l.b16 %v3721
    %v3754 = vunpack.c.l.b16 %v3722
    %v3755 = vunpack.c.l.b16 %v3723
    %v3756 = vunpack.c.l.b16 %v3724
    %v3757 = vunpack.c.l.b16 %v3725
    %v3758 = vunpack.c.l.b16 %v3726
    %v3759 = vunpack.c.l.b16 %v3727
    %v3760 = vunpack.c.l.b16 %v3728
    %v3761 = vunpack.c.l.b16 %v3729
    %v3762 = vunpack.c.l.b16 %v3730
    %v3763 = vpack.c.b16 %v3748, %v3747
    %v3764 = vpack.c.b16 %v3750, %v3749
    %v3765 = vpack.c.b16 %v3752, %v3751
    %v3766 = vpack.c.b16 %v3754, %v3753
    %v3767 = vpack.c.b16 %v3756, %v3755
    %v3768 = vpack.c.b16 %v3758, %v3757
    %v3769 = vpack.c.b16 %v3760, %v3759
    %v3770 = vpack.c.b16 %v3762, %v3761
    %3779 = vmatprep.subr.bf16.mxu0 0
    %3780 = vmatpush1.bf16.msra.mxu0 %v3763
    %3781 = vmatprep.subr.bf16.mxu0 0
    %3782 = vmatpush1.bf16.msra.mxu0 %v3764
    %3783 = vmatprep.subr.bf16.mxu0 0
    %3784 = vmatpush1.bf16.msra.mxu0 %v3765
    %3785 = vmatprep.subr.bf16.mxu0 0
    %3786 = vmatpush1.bf16.msra.mxu0 %v3766
    %3787 = vmatprep.subr.bf16.mxu0 0
    %3788 = vmatpush1.bf16.msra.mxu0 %v3767
    %3789 = vmatprep.subr.bf16.mxu0 0
    %3790 = vmatpush1.bf16.msra.mxu0 %v3768
    %3791 = vmatprep.subr.bf16.mxu0 0
    %3792 = vmatpush1.bf16.msra.mxu0 %v3769
    %3793 = vmatprep.subr.bf16.mxu0 0
    %3794 = vmatpush1.bf16.msra.mxu0 %v3770
    %3795 = vmatprep.subr.bf16.mxu0 0
    %3796 = vmatpush1.bf16.msra.mxu0 0
    %3797 = vmatprep.subr.bf16.mxu0 0
    %3798 = vmatpush1.bf16.msra.mxu0 0
    %3799 = vmatprep.subr.bf16.mxu0 0
    %3800 = vmatpush1.bf16.msra.mxu0 0
    %3801 = vmatprep.subr.bf16.mxu0 0
    %3802 = vmatpush1.bf16.msra.mxu0 0
    %3803 = vmatprep.subr.bf16.mxu0 0
    %3804 = vmatpush1.bf16.msra.mxu0 0
    %3805 = vmatprep.subr.bf16.mxu0 0
    %3806 = vmatpush1.bf16.msra.mxu0 0
    %3807 = vmatprep.subr.bf16.mxu0 0
    %3808 = vmatpush1.bf16.msra.mxu0 0
    %3809 = vmatprep.subr.bf16.mxu0 0
    %3810 = vmatpush1.bf16.msra.mxu0 0
    %3811 = vmatprep.mubr.bf16.mxu0 0
    %3812 = vmatmul.mubr.bf16.gmra.mrb[0].mxu0 %v3710
    %v3813 = vpop.f32.mrb[0].mxu0
    %v3814 = vadd.f32 0.0, %v3813
    %v3815 = vpop.f32.mrb[0].mxu0
    %v3816 = vpop.f32.mrb[0].mxu0
    %v3817 = vpop.f32.mrb[0].mxu0
    %3818 = vdwg.mxu0
    %v3819 = vadd.f32 %v3714, %v3814
    %v3820 = vxor.u32 %v3819, 2147483648
    %v3821 = vmul.f32 %v3820, 1.442695
    %v3822 = vpow.pop %v3821
    %v3823 = vadd.f32 %v3822, 1.0
    %v3824 = vrcp.pop %v3823
    %v3825 = vmul.f32 1.0, %v3824
    %v3826 = vld [vmem:[%s3713 + $0x8] sm:$0xff]
    %v3827 = vld [vmem:[#allocation10 + $0x4] sm:$0xf]
    %v3828 = vld [vmem:[#allocation10 + $0x14] sm:$0xf]
    %v3829 = vld [vmem:[#allocation10 + $0x24] sm:$0xf]
    %v3830 = vld [vmem:[#allocation10 + $0x34] sm:$0xf]
    %v3831 = vld [vmem:[#allocation10 + $0x44] sm:$0xf]
    %v3832 = vld [vmem:[#allocation10 + $0x54] sm:$0xf]
    %v3833 = vld [vmem:[#allocation10 + $0x64] sm:$0xf]
    %v3834 = vld [vmem:[#allocation10 + $0x74] sm:$0xf]
    %v3835 = vld [vmem:[#allocation10 + $0x84] sm:$0xf]
    %v3836 = vld [vmem:[#allocation10 + $0x94] sm:$0xf]
    %v3837 = vld [vmem:[#allocation10 + $0xa4] sm:$0xf]
    %v3838 = vld [vmem:[#allocation10 + $0xb4] sm:$0xf]
    %v3839 = vld [vmem:[#allocation10 + $0xc4] sm:$0xf]
    %v3840 = vld [vmem:[#allocation10 + $0xd4] sm:$0xf]
    %v3841 = vld [vmem:[#allocation10 + $0xe4] sm:$0xf]
    %v3842 = vld [vmem:[#allocation10 + $0xf4] sm:$0xf]
    %v3859 = vunpack.c.l.b16 %v3827
    %v3860 = vunpack.c.l.b16 %v3828
    %v3861 = vunpack.c.l.b16 %v3829
    %v3862 = vunpack.c.l.b16 %v3830
    %v3863 = vunpack.c.l.b16 %v3831
    %v3864 = vunpack.c.l.b16 %v3832
    %v3865 = vunpack.c.l.b16 %v3833
    %v3866 = vunpack.c.l.b16 %v3834
    %v3867 = vunpack.c.l.b16 %v3835
    %v3868 = vunpack.c.l.b16 %v3836
    %v3869 = vunpack.c.l.b16 %v3837
    %v3870 = vunpack.c.l.b16 %v3838
    %v3871 = vunpack.c.l.b16 %v3839
    %v3872 = vunpack.c.l.b16 %v3840
    %v3873 = vunpack.c.l.b16 %v3841
    %v3874 = vunpack.c.l.b16 %v3842
    %v3875 = vpack.c.b16 %v3860, %v3859
    %v3876 = vpack.c.b16 %v3862, %v3861
    %v3877 = vpack.c.b16 %v3864, %v3863
    %v3878 = vpack.c.b16 %v3866, %v3865
    %v3879 = vpack.c.b16 %v3868, %v3867
    %v3880 = vpack.c.b16 %v3870, %v3869
    %v3881 = vpack.c.b16 %v3872, %v3871
    %v3882 = vpack.c.b16 %v3874, %v3873
    %3891 = vmatprep.subr.bf16.mxu0 0
    %3892 = vmatpush1.bf16.msra.mxu0 %v3875
    %3893 = vmatprep.subr.bf16.mxu0 0
    %3894 = vmatpush1.bf16.msra.mxu0 %v3876
    %3895 = vmatprep.subr.bf16.mxu0 0
    %3896 = vmatpush1.bf16.msra.mxu0 %v3877
    %3897 = vmatprep.subr.bf16.mxu0 0
    %3898 = vmatpush1.bf16.msra.mxu0 %v3878
    %3899 = vmatprep.subr.bf16.mxu0 0
    %3900 = vmatpush1.bf16.msra.mxu0 %v3879
    %3901 = vmatprep.subr.bf16.mxu0 0
    %3902 = vmatpush1.bf16.msra.mxu0 %v3880
    %3903 = vmatprep.subr.bf16.mxu0 0
    %3904 = vmatpush1.bf16.msra.mxu0 %v3881
    %3905 = vmatprep.subr.bf16.mxu0 0
    %3906 = vmatpush1.bf16.msra.mxu0 %v3882
    %3907 = vmatprep.subr.bf16.mxu0 0
    %3908 = vmatpush1.bf16.msra.mxu0 0
    %3909 = vmatprep.subr.bf16.mxu0 0
    %3910 = vmatpush1.bf16.msra.mxu0 0
    %3911 = vmatprep.subr.bf16.mxu0 0
    %3912 = vmatpush1.bf16.msra.mxu0 0
    %3913 = vmatprep.subr.bf16.mxu0 0
    %3914 = vmatpush1.bf16.msra.mxu0 0
    %3915 = vmatprep.subr.bf16.mxu0 0
    %3916 = vmatpush1.bf16.msra.mxu0 0
    %3917 = vmatprep.subr.bf16.mxu0 0
    %3918 = vmatpush1.bf16.msra.mxu0 0
    %3919 = vmatprep.subr.bf16.mxu0 0
    %3920 = vmatpush1.bf16.msra.mxu0 0
    %3921 = vmatprep.subr.bf16.mxu0 0
    %3922 = vmatpush1.bf16.msra.mxu0 0
    %3923 = vmatprep.mubr.bf16.mxu0 0
    %3924 = vmatmul.mubr.bf16.gmra.mrb[0].mxu0 %v3710
    %v3925 = vpop.f32.mrb[0].mxu0
    %v3926 = vadd.f32 0.0, %v3925
    %v3927 = vpop.f32.mrb[0].mxu0
    %v3928 = vpop.f32.mrb[0].mxu0
    %v3929 = vpop.f32.mrb[0].mxu0
    %3930 = vdwg.mxu0
    %v3931 = vadd.f32 %v3826, %v3926
    %v3932 = vxor.u32 %v3931, 2147483648
    %v3933 = vmul.f32 %v3932, 1.442695
    %v3934 = vpow.pop %v3933
    %v3935 = vadd.f32 %v3934, 1.0
    %v3936 = vrcp.pop %v3935
    %v3937 = vmul.f32 1.0, %v3936
    %v3938 = vld [vmem:[%s3713 + $0x10] sm:$0xff]
    %v3939 = vld [vmem:[#allocation10 + $0x8] sm:$0xf]
    %v3940 = vld [vmem:[#allocation10 + $0x18] sm:$0xf]
    %v3941 = vld [vmem:[#allocation10 + $0x28] sm:$0xf]
    %v3942 = vld [vmem:[#allocation10 + $0x38] sm:$0xf]
    %v3943 = vld [vmem:[#allocation10 + $0x48] sm:$0xf]
    %v3944 = vld [vmem:[#allocation10 + $0x58] sm:$0xf]
    %v3945 = vld [vmem:[#allocation10 + $0x68] sm:$0xf]
    %v3946 = vld [vmem:[#allocation10 + $0x78] sm:$0xf]
    %v3947 = vld [vmem:[#allocation10 + $0x88] sm:$0xf]
    %v3948 = vld [vmem:[#allocation10 + $0x98] sm:$0xf]
    %v3949 = vld [vmem:[#allocation10 + $0xa8] sm:$0xf]
    %v3950 = vld [vmem:[#allocation10 + $0xb8] sm:$0xf]
    %v3951 = vld [vmem:[#allocation10 + $0xc8] sm:$0xf]
    %v3952 = vld [vmem:[#allocation10 + $0xd8] sm:$0xf]
    %v3953 = vld [vmem:[#allocation10 + $0xe8] sm:$0xf]
    %v3954 = vld [vmem:[#allocation10 + $0xf8] sm:$0xf]
    %v3971 = vunpack.c.l.b16 %v3939
    %v3972 = vunpack.c.l.b16 %v3940
    %v3973 = vunpack.c.l.b16 %v3941
    %v3974 = vunpack.c.l.b16 %v3942
    %v3975 = vunpack.c.l.b16 %v3943
    %v3976 = vunpack.c.l.b16 %v3944
    %v3977 = vunpack.c.l.b16 %v3945
    %v3978 = vunpack.c.l.b16 %v3946
    %v3979 = vunpack.c.l.b16 %v3947
    %v3980 = vunpack.c.l.b16 %v3948
    %v3981 = vunpack.c.l.b16 %v3949
    %v3982 = vunpack.c.l.b16 %v3950
    %v3983 = vunpack.c.l.b16 %v3951
    %v3984 = vunpack.c.l.b16 %v3952
    %v3985 = vunpack.c.l.b16 %v3953
    %v3986 = vunpack.c.l.b16 %v3954
    %v3987 = vpack.c.b16 %v3972, %v3971
    %v3988 = vpack.c.b16 %v3974, %v3973
    %v3989 = vpack.c.b16 %v3976, %v3975
    %v3990 = vpack.c.b16 %v3978, %v3977
    %v3991 = vpack.c.b16 %v3980, %v3979
    %v3992 = vpack.c.b16 %v3982, %v3981
    %v3993 = vpack.c.b16 %v3984, %v3983
    %v3994 = vpack.c.b16 %v3986, %v3985
    %4003 = vmatprep.subr.bf16.mxu0 0
    %4004 = vmatpush1.bf16.msra.mxu0 %v3987
    %4005 = vmatprep.subr.bf16.mxu0 0
    %4006 = vmatpush1.bf16.msra.mxu0 %v3988
    %4007 = vmatprep.subr.bf16.mxu0 0
    %4008 = vmatpush1.bf16.msra.mxu0 %v3989
    %4009 = vmatprep.subr.bf16.mxu0 0
    %4010 = vmatpush1.bf16.msra.mxu0 %v3990
    %4011 = vmatprep.subr.bf16.mxu0 0
    %4012 = vmatpush1.bf16.msra.mxu0 %v3991
    %4013 = vmatprep.subr.bf16.mxu0 0
    %4014 = vmatpush1.bf16.msra.mxu0 %v3992
    %4015 = vmatprep.subr.bf16.mxu0 0
    %4016 = vmatpush1.bf16.msra.mxu0 %v3993
    %4017 = vmatprep.subr.bf16.mxu0 0
    %4018 = vmatpush1.bf16.msra.mxu0 %v3994
    %4019 = vmatprep.subr.bf16.mxu0 0
    %4020 = vmatpush1.bf16.msra.mxu0 0
    %4021 = vmatprep.subr.bf16.mxu0 0
    %4022 = vmatpush1.bf16.msra.mxu0 0
    %4023 = vmatprep.subr.bf16.mxu0 0
    %4024 = vmatpush1.bf16.msra.mxu0 0
    %4025 = vmatprep.subr.bf16.mxu0 0
    %4026 = vmatpush1.bf16.msra.mxu0 0
    %4027 = vmatprep.subr.bf16.mxu0 0
    %4028 = vmatpush1.bf16.msra.mxu0 0
    %4029 = vmatprep.subr.bf16.mxu0 0
    %4030 = vmatpush1.bf16.msra.mxu0 0
    %4031 = vmatprep.subr.bf16.mxu0 0
    %4032 = vmatpush1.bf16.msra.mxu0 0
    %4033 = vmatprep.subr.bf16.mxu0 0
    %4034 = vmatpush1.bf16.msra.mxu0 0
    %4035 = vmatprep.mubr.bf16.mxu0 0
    %4036 = vmatmul.mubr.bf16.gmra.mrb[0].mxu0 %v3710
    %v4037 = vpop.f32.mrb[0].mxu0
    %v4038 = vadd.f32 0.0, %v4037
    %v4039 = vpop.f32.mrb[0].mxu0
    %v4040 = vpop.f32.mrb[0].mxu0
    %v4041 = vpop.f32.mrb[0].mxu0
    %4042 = vdwg.mxu0
    %v4043 = vadd.f32 %v3938, %v4038
    %v4044 = vtanh.pop %v4043
    %v4045 = vld [vmem:[%s3713 + $0x18] sm:$0xff]
    %v4046 = vld [vmem:[#allocation10 + $0xc] sm:$0xf]
    %v4047 = vld [vmem:[#allocation10 + $0x1c] sm:$0xf]
    %v4048 = vld [vmem:[#allocation10 + $0x2c] sm:$0xf]
    %v4049 = vld [vmem:[#allocation10 + $0x3c] sm:$0xf]
    %v4050 = vld [vmem:[#allocation10 + $0x4c] sm:$0xf]
    %v4051 = vld [vmem:[#allocation10 + $0x5c] sm:$0xf]
    %v4052 = vld [vmem:[#allocation10 + $0x6c] sm:$0xf]
    %v4053 = vld [vmem:[#allocation10 + $0x7c] sm:$0xf]
    %v4054 = vld [vmem:[#allocation10 + $0x8c] sm:$0xf]
    %v4055 = vld [vmem:[#allocation10 + $0x9c] sm:$0xf]
    %v4056 = vld [vmem:[#allocation10 + $0xac] sm:$0xf]
    %v4057 = vld [vmem:[#allocation10 + $0xbc] sm:$0xf]
    %v4058 = vld [vmem:[#allocation10 + $0xcc] sm:$0xf]
    %v4059 = vld [vmem:[#allocation10 + $0xdc] sm:$0xf]
    %v4060 = vld [vmem:[#allocation10 + $0xec] sm:$0xf]
    %v4061 = vld [vmem:[#allocation10 + $0xfc] sm:$0xf]
    %v4078 = vunpack.c.l.b16 %v4046
    %v4079 = vunpack.c.l.b16 %v4047
    %v4080 = vunpack.c.l.b16 %v4048
    %v4081 = vunpack.c.l.b16 %v4049
    %v4082 = vunpack.c.l.b16 %v4050
    %v4083 = vunpack.c.l.b16 %v4051
    %v4084 = vunpack.c.l.b16 %v4052
    %v4085 = vunpack.c.l.b16 %v4053
    %v4086 = vunpack.c.l.b16 %v4054
    %v4087 = vunpack.c.l.b16 %v4055
    %v4088 = vunpack.c.l.b16 %v4056
    %v4089 = vunpack.c.l.b16 %v4057
    %v4090 = vunpack.c.l.b16 %v4058
    %v4091 = vunpack.c.l.b16 %v4059
    %v4092 = vunpack.c.l.b16 %v4060
    %v4093 = vunpack.c.l.b16 %v4061
    %v4094 = vpack.c.b16 %v4079, %v4078
    %v4095 = vpack.c.b16 %v4081, %v4080
    %v4096 = vpack.c.b16 %v4083, %v4082
    %v4097 = vpack.c.b16 %v4085, %v4084
    %v4098 = vpack.c.b16 %v4087, %v4086
    %v4099 = vpack.c.b16 %v4089, %v4088
    %v4100 = vpack.c.b16 %v4091, %v4090
    %v4101 = vpack.c.b16 %v4093, %v4092
    %4110 = vmatprep.subr.bf16.mxu0 0
    %4111 = vmatpush1.bf16.msra.mxu0 %v4094
    %4112 = vmatprep.subr.bf16.mxu0 0
    %4113 = vmatpush1.bf16.msra.mxu0 %v4095
    %4114 = vmatprep.subr.bf16.mxu0 0
    %4115 = vmatpush1.bf16.msra.mxu0 %v4096
    %4116 = vmatprep.subr.bf16.mxu0 0
    %4117 = vmatpush1.bf16.msra.mxu0 %v4097
    %4118 = vmatprep.subr.bf16.mxu0 0
    %4119 = vmatpush1.bf16.msra.mxu0 %v4098
    %4120 = vmatprep.subr.bf16.mxu0 0
    %4121 = vmatpush1.bf16.msra.mxu0 %v4099
    %4122 = vmatprep.subr.bf16.mxu0 0
    %4123 = vmatpush1.bf16.msra.mxu0 %v4100
    %4124 = vmatprep.subr.bf16.mxu0 0
    %4125 = vmatpush1.bf16.msra.mxu0 %v4101
    %4126 = vmatprep.subr.bf16.mxu0 0
    %4127 = vmatpush1.bf16.msra.mxu0 0
    %4128 = vmatprep.subr.bf16.mxu0 0
    %4129 = vmatpush1.bf16.msra.mxu0 0
    %4130 = vmatprep.subr.bf16.mxu0 0
    %4131 = vmatpush1.bf16.msra.mxu0 0
    %4132 = vmatprep.subr.bf16.mxu0 0
    %4133 = vmatpush1.bf16.msra.mxu0 0
    %4134 = vmatprep.subr.bf16.mxu0 0
    %4135 = vmatpush1.bf16.msra.mxu0 0
    %4136 = vmatprep.subr.bf16.mxu0 0
    %4137 = vmatpush1.bf16.msra.mxu0 0
    %4138 = vmatprep.subr.bf16.mxu0 0
    %4139 = vmatpush1.bf16.msra.mxu0 0
    %4140 = vmatprep.subr.bf16.mxu0 0
    %4141 = vmatpush1.bf16.msra.mxu0 0
    %4142 = vmatprep.mubr.bf16.mxu0 0
    %4143 = vmatmul.mubr.bf16.gmra.mrb[0].mxu0 %v3710
    %v4144 = vpop.f32.mrb[0].mxu0
    %v4145 = vadd.f32 0.0, %v4144
    %v4146 = vpop.f32.mrb[0].mxu0
    %v4147 = vpop.f32.mrb[0].mxu0
    %v4148 = vpop.f32.mrb[0].mxu0
    %4149 = vdwg.mxu0
    %v4150 = vadd.f32 %v4045, %v4145
    %v4151 = vxor.u32 %v4150, 2147483648
    %v4152 = vmul.f32 %v4151, 1.442695
    %v4153 = vpow.pop %v4152
    %v4154 = vadd.f32 %v4153, 1.0
    %v4155 = vrcp.pop %v4154
    %v4156 = vmul.f32 1.0, %v4155
    %v4157 = vld [vmem:[#allocation4] sm:$0xff]
    %v4158 = vmul.f32 %v3937, %v4157
    %v4159 = vmul.f32 %v3825, %v4044
    %v4160 = vadd.f32 %v4158, %v4159
    %4161 = vst [vmem:[#allocation4] sm:$0xff] %v4160
    %v4162 = vtanh.pop %v4160
    %v4163 = vmul.f32 %v4156, %v4162
    %s4164 = scalar_lea.vmem [#allocation3], 64
    %4165 = vst [vmem:[%s4164] sm:$0xff] %v4163
    %v4166 = vld [vmem:[#allocation3 + $0x40] sm:$0xff]
    %4167 = vst [vmem:[#allocation3] sm:$0xff] %v4166
    %v4168 = vld [vmem:[#allocation3 + $0x8] sm:$0xff]
    %v4169 = vld [vmem:[#allocation3 + $0x10] sm:$0xff]
    %v4170 = vld [vmem:[#allocation3 + $0x18] sm:$0xff]
    %v4171 = vld [vmem:[#allocation3 + $0x20] sm:$0xff]
    %v4172 = vld [vmem:[#allocation3 + $0x28] sm:$0xff]
    %v4173 = vld [vmem:[#allocation3 + $0x30] sm:$0xff]
    %v4174 = vld [vmem:[#allocation3 + $0x38] sm:$0xff]
    %v4175 = vld [vmem:[#allocation3 + $0x40] sm:$0xff]
    %v4176 = vpack.c.bf16 %v4169, %v4168
    %v4177 = vpack.c.bf16 %v4171, %v4170
    %v4178 = vpack.c.bf16 %v4173, %v4172
    %v4179 = vpack.c.bf16 %v4175, %v4174
    %v4180 = vld [vmem:[#allocation11] sm:$0xf]
    %v4181 = vld [vmem:[#allocation11 + $0x4] sm:$0xf]
    %v4182 = vld [vmem:[#allocation11 + $0x8] sm:$0xf]
    %v4183 = vld [vmem:[#allocation11 + $0xc] sm:$0xf]
    %v4184 = vld [vmem:[#allocation11 + $0x10] sm:$0xf]
    %v4185 = vld [vmem:[#allocation11 + $0x14] sm:$0xf]
    %v4186 = vld [vmem:[#allocation11 + $0x18] sm:$0xf]
    %v4187 = vld [vmem:[#allocation11 + $0x1c] sm:$0xf]
    %v4188 = vld [vmem:[#allocation11 + $0x20] sm:$0xf]
    %v4189 = vld [vmem:[#allocation11 + $0x24] sm:$0xf]
    %v4190 = vld [vmem:[#allocation11 + $0x28] sm:$0xf]
    %v4191 = vld [vmem:[#allocation11 + $0x2c] sm:$0xf]
    %v4192 = vld [vmem:[#allocation11 + $0x30] sm:$0xf]
    %v4193 = vld [vmem:[#allocation11 + $0x34] sm:$0xf]
    %v4194 = vld [vmem:[#allocation11 + $0x38] sm:$0xf]
    %v4195 = vld [vmem:[#allocation11 + $0x3c] sm:$0xf]
    %v4196 = vld [vmem:[%s5] sm:$0x1]
    %v4198 = vlaneseq
    %v4199 = vshrl.u32 %v4198, 7
    %v4200 = vsub.s32 0, %v4199
    %v4201 = vrot.slane %v4196, %v4200
    %v4219 = vunpack.c.l.b16 %v4180
    %v4220 = vunpack.c.l.b16 %v4181
    %v4221 = vunpack.c.l.b16 %v4182
    %v4222 = vunpack.c.l.b16 %v4183
    %v4223 = vunpack.c.l.b16 %v4184
    %v4224 = vunpack.c.l.b16 %v4185
    %v4225 = vunpack.c.l.b16 %v4186
    %v4226 = vunpack.c.l.b16 %v4187
    %v4227 = vunpack.c.l.b16 %v4188
    %v4228 = vunpack.c.l.b16 %v4189
    %v4229 = vunpack.c.l.b16 %v4190
    %v4230 = vunpack.c.l.b16 %v4191
    %v4231 = vunpack.c.l.b16 %v4192
    %v4232 = vunpack.c.l.b16 %v4193
    %v4233 = vunpack.c.l.b16 %v4194
    %v4234 = vunpack.c.l.b16 %v4195
    %v4235 = vpack.c.b16 %v4220, %v4219
    %v4236 = vpack.c.b16 %v4222, %v4221
    %v4237 = vpack.c.b16 %v4224, %v4223
    %v4238 = vpack.c.b16 %v4226, %v4225
    %v4239 = vpack.c.b16 %v4228, %v4227
    %v4240 = vpack.c.b16 %v4230, %v4229
    %v4241 = vpack.c.b16 %v4232, %v4231
    %v4242 = vpack.c.b16 %v4234, %v4233
    %4251 = vmatprep.subr.bf16.mxu0 0
    %4252 = vmatpush1.bf16.msra.mxu0 %v4235
    %4253 = vmatprep.subr.bf16.mxu0 0
    %4254 = vmatpush1.bf16.msra.mxu0 %v4236
    %4255 = vmatprep.subr.bf16.mxu0 0
    %4256 = vmatpush1.bf16.msra.mxu0 %v4237
    %4257 = vmatprep.subr.bf16.mxu0 0
    %4258 = vmatpush1.bf16.msra.mxu0 %v4238
    %4259 = vmatprep.subr.bf16.mxu0 0
    %4260 = vmatpush1.bf16.msra.mxu0 %v4239
    %4261 = vmatprep.subr.bf16.mxu0 0
    %4262 = vmatpush1.bf16.msra.mxu0 %v4240
    %4263 = vmatprep.subr.bf16.mxu0 0
    %4264 = vmatpush1.bf16.msra.mxu0 %v4241
    %4265 = vmatprep.subr.bf16.mxu0 0
    %4266 = vmatpush1.bf16.msra.mxu0 %v4242
    %4267 = vmatprep.subr.bf16.mxu0 0
    %4268 = vmatpush1.bf16.msra.mxu0 0
    %4269 = vmatprep.subr.bf16.mxu0 0
    %4270 = vmatpush1.bf16.msra.mxu0 0
    %4271 = vmatprep.subr.bf16.mxu0 0
    %4272 = vmatpush1.bf16.msra.mxu0 0
    %4273 = vmatprep.subr.bf16.mxu0 0
    %4274 = vmatpush1.bf16.msra.mxu0 0
    %4275 = vmatprep.subr.bf16.mxu0 0
    %4276 = vmatpush1.bf16.msra.mxu0 0
    %4277 = vmatprep.subr.bf16.mxu0 0
    %4278 = vmatpush1.bf16.msra.mxu0 0
    %4279 = vmatprep.subr.bf16.mxu0 0
    %4280 = vmatpush1.bf16.msra.mxu0 0
    %4281 = vmatprep.subr.bf16.mxu0 0
    %4282 = vmatpush1.bf16.msra.mxu0 0
    %4283 = vmatprep.mubr.bf16.mxu0 0
    %4284 = vmatmul.mubr.bf16.gmra.mrb[0].mxu0 %v4176
    %v4285 = vpop.f32.mrb[0].mxu0
    %v4286 = vadd.f32 %v4201, %v4285
    %v4287 = vpop.f32.mrb[0].mxu0
    %v4288 = vpop.f32.mrb[0].mxu0
    %v4289 = vadd.f32 %v4201, %v4288
    %v4290 = vpop.f32.mrb[0].mxu0
    %4291 = vmatprep.mubr.bf16.mxu0 0
    %4292 = vmatmul.mubr.bf16.gmra.mrb[0].mxu0 %v4177
    %v4293 = vpop.f32.mrb[0].mxu0
    %v4294 = vadd.f32 %v4201, %v4293
    %v4295 = vpop.f32.mrb[0].mxu0
    %v4296 = vpop.f32.mrb[0].mxu0
    %v4297 = vadd.f32 %v4201, %v4296
    %v4298 = vpop.f32.mrb[0].mxu0
    %4299 = vmatprep.mubr.bf16.mxu0 0
    %4300 = vmatmul.mubr.bf16.gmra.mrb[0].mxu0 %v4178
    %v4301 = vpop.f32.mrb[0].mxu0
    %v4302 = vadd.f32 %v4201, %v4301
    %v4303 = vpop.f32.mrb[0].mxu0
    %v4304 = vpop.f32.mrb[0].mxu0
    %v4305 = vadd.f32 %v4201, %v4304
    %v4306 = vpop.f32.mrb[0].mxu0
    %4307 = vmatprep.mubr.bf16.mxu0 0
    %4308 = vmatmul.mubr.bf16.gmra.mrb[0].mxu0 %v4179
    %v4309 = vpop.f32.mrb[0].mxu0
    %v4310 = vadd.f32 %v4201, %v4309
    %v4311 = vpop.f32.mrb[0].mxu0
    %v4312 = vpop.f32.mrb[0].mxu0
    %v4313 = vadd.f32 %v4201, %v4312
    %v4314 = vpop.f32.mrb[0].mxu0
    %4315 = vdwg.mxu0
    %4316 = vst [vmem:[#allocation13] sm:$0xff] %v4286
    %4317 = vst [vmem:[#allocation13 + $0x8] sm:$0xff] %v4289
    %4318 = vst [vmem:[#allocation13 + $0x10] sm:$0xff] %v4294
    %4319 = vst [vmem:[#allocation13 + $0x18] sm:$0xff] %v4297
    %4320 = vst [vmem:[#allocation13 + $0x20] sm:$0xff] %v4302
    %4321 = vst [vmem:[#allocation13 + $0x28] sm:$0xff] %v4305
    %4322 = vst [vmem:[#allocation13 + $0x30] sm:$0xff] %v4310
    %4323 = vst [vmem:[#allocation13 + $0x38] sm:$0xff] %v4313
    // Predicated region
    $region46: #{tpu_custom_call.1} parent=1 // pred_check
      _
    $region47: #{tpu_custom_call.1} parent=1 // pred_check_branch
      %4325 = sbr.rel (0) target = $region49
    $region48: #{tpu_custom_call.1} parent=1 // pred_region
      %s4327 = ssub.s32 1024, 1024
      %4328 = vsyncadd [#allocation7], %s4327
      %s4329 = sshll.u32 [#allocation13], 4
      %s4330 = int_to_ptr.vmem [resolvable:$true] %s4329
      %4335 = dma.vmem_to_hbm [thread:$0]  %s4330, 1024, %s6, [#allocation7], 128, 128, 8
    $region49: #{tpu_custom_call.1} parent=1 // pred_fallthru
      _
    // Predicated region
    $region50: #{tpu_custom_call.1} parent=1 // pred_check
      _
    $region51: #{tpu_custom_call.1} parent=1 // pred_check_branch
      %4337 = sbr.rel (0) target = $region53
    $region52: #{tpu_custom_call.1} parent=1 // pred_region
      %4338 = dma.done [#allocation7], 1024
    $region53: #{tpu_custom_call.1} parent=1 // pred_fallthru
      _
    %4339 = vsyncpa [#allocation6], 1
    %4340 = vsyncpa [#allocation9], 1
    %4341 = vsyncpa [#allocation12], 1
    %4342 = vsyncpa [#allocation7], 1

</llo_original>
